<compile_context>
chip_gen: v7x
topology: tpu7x:2x2x1
jax: 0.10.0
libtpu: 0.0.40
codegen_flags: <defaults>
</compile_context>

<pallas_src>
import jax
import jax.numpy as jnp
from jax import lax
from jax.experimental import pallas as pl
from jax.experimental.pallas import tpu as pltpu


# TODO(synk): FunActivation is not shown in the source file; assumed
# 'SiLU_Sin' = sin(silu(x)) and 'SiLU_Id' = silu(x).
def _act_x(x):  # activation_x = 'SiLU_Sin'
    return jnp.sin(jax.nn.silu(x))


def _act_a(x):  # activation_a = 'SiLU_Id'
    return jax.nn.silu(x)


def _round_up(v, m):
    return (v + m - 1) // m * m


def _tpu_generation():
    try:
        kind = jax.devices()[0].device_kind.lower()
    except Exception:
        return "unknown"
    if "v5" in kind:
        return "v5"
    if "v6" in kind:
        return "v6"
    if "v7" in kind or "7x" in kind:
        return "v7"
    return "unknown"


def _make_kernel(num_layers, b_tile, n_mesh, latent, hidden, out_size,
                 compute_dtype, act_in_compute_dtype):
    cdt = compute_dtype
    f32 = jnp.float32
    LH = num_layers * hidden
    Mx = b_tile * n_mesh
    Ma = b_tile * latent

    # On v6e/v7x (bf16 VPU/EUP) the activation runs in compute dtype so the
    # next matmul consumes it directly; on v5e / f32 path it stays f32.
    def act_x(v):
        if act_in_compute_dtype:
            v = v.astype(cdt)
        return _act_x(v)

    def act_a(v):
        if act_in_compute_dtype:
            v = v.astype(cdt)
        return _act_a(v)

    def kernel(x_ref, a_ref,
               wx_in_ref, bx_in_ref, wa_in_ref, ba_in_ref,
               wx_l_ref, bx_l_ref, wa_l_ref, ba_l_ref,
               w_out_ref, b_out_ref,
               out_ref,
               xcat_ref, acat_ref):
        dx = x_ref.shape[-1]
        da = a_ref.shape[-1]

        # Collapse the batch tile into the matmul M dim (leading-dim reshape
        # only; the lane dim is untouched, so this is layout-free).
        x2 = x_ref[...].reshape(Mx, dx).astype(cdt)
        a2 = a_ref[...].reshape(Ma, da).astype(cdt)

        # Input projections: compute-dtype operands, f32 MXU accumulation,
        # f32 bias add, then activation.
        x2 = act_x(jnp.dot(x2, wx_in_ref[...], preferred_element_type=f32)
                   + bx_in_ref[...])
        a2 = act_a(jnp.dot(a2, wa_in_ref[...], preferred_element_type=f32)
                   + ba_in_ref[...])

        # Branch/trunk MLP stacks.  Each layer's activated output is parked in
        # a (M, L*H) VMEM scratch so the L per-layer interaction matmuls fuse
        # into a single K = L*H contraction below (static slices: i is Python).
        # TODO(synk): for very large L*H on v7x (64 MiB VMEM) switch to a
        # layer-streamed grid axis with (1, H, H) weight blocks instead of
        # fully-resident stacked weights.
        for i in range(num_layers):
            a2 = act_a(jnp.dot(a2.astype(cdt), wa_l_ref[i],
                               preferred_element_type=f32) + ba_l_ref[i])
            x2 = act_x(jnp.dot(x2.astype(cdt), wx_l_ref[i],
                               preferred_element_type=f32) + bx_l_ref[i])
            xcat_ref[:, i * hidden:(i + 1) * hidden] = x2.astype(cdt)
            acat_ref[:, i * hidden:(i + 1) * hidden] = a2.astype(cdt)

        # sum_i einsum('bnh,bmh->bnm')  ==  einsum('bnk,bmk->bnm'), k = L*H:
        # one batched MXU contraction over the last dim of both operands
        # (transposed-RHS path, no XLU relayout), f32 accumulation.
        inter = lax.dot_general(
            xcat_ref[...].reshape(b_tile, n_mesh, LH),
            acat_ref[...].reshape(b_tile, latent, LH),
            dimension_numbers=(((2,), (2,)), ((0,), (0,))),
            preferred_element_type=f32)

        # Final projection in f32; 1/num_layers is pre-folded into w_out.
        out2 = jnp.dot(inter.reshape(Mx, latent), w_out_ref[...],
                       preferred_element_type=f32) + b_out_ref[...]
        out_ref[...] = out2.reshape(b_tile, n_mesh, out_size).astype(out_ref.dtype)

    return kernel


def pack_params(params, hidden_list, compute_dtype=jnp.bfloat16, lane=128):
    """Pad / stack / pre-scale the flat parameter tuple.

    Returns (packed_params, hidden_padded).  Weights are cast to
    `compute_dtype` (MXU operands); biases and fc_out stay f32.  hidden is
    lane-padded to a multiple of 128; zero-padding is exact because the bias
    pad is 0 and act(0)=0 for both assumed activations.
    """
    f32 = jnp.float32
    num_layers = len(hidden_list)
    wx_in, bx_in, wa_in, ba_in = params[:4]
    w_out, b_out = params[-2], params[-1]
    layer_p = params[4:-2]

    hidden = _round_up(max(hidden_list), lane)

    def pad2(w, rows, cols):
        w = w.astype(f32)
        return jnp.pad(w, ((0, rows - w.shape[0]), (0, cols - w.shape[1])))

    wx_in_p = pad2(wx_in, wx_in.shape[0], hidden).astype(compute_dtype)
    wa_in_p = pad2(wa_in, wa_in.shape[0], hidden).astype(compute_dtype)
    bx_in_p = pad2(bx_in, 1, hidden)
    ba_in_p = pad2(ba_in, 1, hidden)

    wx_l, bx_l, wa_l, ba_l = [], [], [], []
    for i in range(num_layers):
        wx, bx = layer_p[4 * i + 0], layer_p[4 * i + 1]
        wa, ba = layer_p[4 * i + 2], layer_p[4 * i + 3]
        wx_l.append(pad2(wx, hidden, hidden))
        wa_l.append(pad2(wa, hidden, hidden))
        bx_l.append(pad2(bx, 1, hidden))
        ba_l.append(pad2(ba, 1, hidden))
    wx_l = jnp.stack(wx_l).astype(compute_dtype)   # (L, H, H)
    wa_l = jnp.stack(wa_l).astype(compute_dtype)   # (L, H, H)
    bx_l = jnp.stack(bx_l)                         # (L, 1, H) f32
    ba_l = jnp.stack(ba_l)                         # (L, 1, H) f32

    # fc_out stays f32 and UNPADDED on the output dim (tiny out_size padded to
    # 128 would be up to 16x HBM write amplification + an extra slice copy).
    w_out_p = w_out.astype(f32) / float(num_layers)   # fold 1/L into the weight
    b_out_p = b_out.astype(f32)

    packed = (wx_in_p, bx_in_p, wa_in_p, ba_in_p,
              wx_l, bx_l, wa_l, ba_l, w_out_p, b_out_p)
    return packed, hidden


def multionet_batch_x_pallas(x, a_mesh, params, hidden_list,
                             compute_dtype=jnp.bfloat16, batch_tile=None,
                             act_in_compute_dtype=None):
    n_batch, n_mesh, dx = x.shape
    _, latent, da = a_mesh.shape
    out_size = params[-1].shape[-1]
    num_layers = len(hidden_list)

    packed, hidden = pack_params(params, hidden_list, compute_dtype)
    param_bytes = sum(int(p.size) * p.dtype.itemsize for p in packed)

    gen = _tpu_generation()
    # Per-generation VMEM budget (physical: 128 MiB on v5e/v6e, 64 MiB/TC v7x).
    budget = {"v5": 100 << 20, "v6": 100 << 20, "v7": 56 << 20}.get(gen, 48 << 20)
    # MXU M-dim target: 2x256^2 MXUs on v6e/v7x want M~512; v5e's 4x128^2 is
    # already filled at a clean multiple of 128.
    m_target = {"v5": 256, "v6": 512, "v7": 512}.get(gen, 256)

    if act_in_compute_dtype is None:
        # bf16 activations only where VPU/EUP have a bf16 path (v6e/v7x);
        # keep f32 activations on v5e (no bf16 VPU -> casts are pure overhead).
        act_in_compute_dtype = (jnp.dtype(compute_dtype) == jnp.dtype(jnp.bfloat16)
                                and gen in ("v6", "v7"))

    cdt_isz = jnp.dtype(compute_dtype).itemsize
    in_isz = jnp.dtype(x.dtype).itemsize
    out_isz = jnp.dtype(x.dtype).itemsize

    def vmem_estimate(bt):
        mx, ma = bt * n_mesh, bt * latent
        lh = num_layers * hidden
        blocks = 2 * (mx * dx * in_isz + ma * da * in_isz
                      + bt * n_mesh * out_size * out_isz)     # double-buffered I/O
        weights = 2 * param_bytes                             # const blocks, 2 bufs
        scratch = (mx + ma) * lh * cdt_isz                    # xcat / acat
        live = ((mx + ma) * hidden * 8                        # x2/a2 live values
                + bt * n_mesh * latent * 4                    # interaction result
                + mx * max(out_size, 128) * 4)                # final projection
        return blocks + weights + scratch + live

    if batch_tile is None:
        batch_tile = max(1, min(n_batch, m_target // max(n_mesh, 1)))
        if gen == "v7" and n_batch >= 2:
            # keep grid length >= 2 so both v7x TensorCores get work
            batch_tile = min(batch_tile, -(-n_batch // 2))
        while batch_tile > 1 and vmem_estimate(batch_tile) > budget:
            batch_tile -= 1
    batch_tile = max(1, min(batch_tile, n_batch))
    grid = (pl.cdiv(n_batch, batch_tile),)

    vmem_limit = int(min(budget, max(2 * vmem_estimate(batch_tile), 32 << 20)))

    kernel = _make_kernel(num_layers, batch_tile, n_mesh, latent, hidden,
                          out_size, compute_dtype, act_in_compute_dtype)

    def const_spec(arr):
        nd = arr.ndim
        return pl.BlockSpec(arr.shape, lambda b, _nd=nd: (0,) * _nd)

    # TODO(synk): for very large n_mesh add a second ("parallel") mesh-tile
    # grid axis so x/out blocks stay within the v7x VMEM budget.
    in_specs = [
        pl.BlockSpec((batch_tile, n_mesh, dx), lambda b: (b, 0, 0)),
        pl.BlockSpec((batch_tile, latent, da), lambda b: (b, 0, 0)),
    ] + [const_spec(p) for p in packed]

    out_specs = pl.BlockSpec((batch_tile, n_mesh, out_size), lambda b: (b, 0, 0))

    scratch_shapes = [
        pltpu.VMEM((batch_tile * n_mesh, num_layers * hidden), compute_dtype),
        pltpu.VMEM((batch_tile * latent, num_layers * hidden), compute_dtype),
    ]

    # Advisory cost estimate (weights are resident: fetched once).
    mm_flops = 2 * n_batch * (
        n_mesh * dx * hidden + latent * da * hidden
        + num_layers * (n_mesh + latent) * hidden * hidden
        + n_mesh * latent * num_layers * hidden
        + n_mesh * latent * out_size)
    transcendentals = n_batch * (num_layers + 1) * hidden * (2 * n_mesh + latent)
    bytes_accessed = (int(x.size) * in_isz + int(a_mesh.size) * in_isz
                      + n_batch * n_mesh * out_size * out_isz + param_bytes)

    out = pl.pallas_call(
        kernel,
        out_shape=jax.ShapeDtypeStruct((n_batch, n_mesh, out_size), x.dtype),
        grid_spec=pltpu.PrefetchScalarGridSpec(
            num_scalar_prefetch=0,
            grid=grid,
            in_specs=in_specs,
            out_specs=out_specs,
            scratch_shapes=scratch_shapes),
        compiler_params=pltpu.CompilerParams(
            dimension_semantics=("parallel",),
            vmem_limit_bytes=vmem_limit),
        cost_estimate=pl.CostEstimate(
            flops=int(mm_flops),
            transcendentals=int(transcendentals),
            bytes_accessed=int(bytes_accessed)),
    )(x, a_mesh, *packed)

    return out


def init_params(key, in_size_x, in_size_a, latent_size, out_size, hidden_list,
                dtype=jnp.float32):
    """Deterministic synthetic parameters. Weights stored as (in, out)."""
    params = []

    def linear(key, fan_in, fan_out):
        kw, kb = jax.random.split(key)
        bound = 1.0 / jnp.sqrt(fan_in)
        w = jax.random.uniform(kw, (fan_in, fan_out), dtype, -bound, bound)
        b = jax.random.uniform(kb, (1, fan_out), dtype, -bound, bound)
        return w, b

    n_layers = len(hidden_list)
    keys = jax.random.split(key, 3 + 2 * n_layers)
    ki = 0

    wx_in, bx_in = linear(keys[ki], in_size_x, hidden_list[0]); ki += 1
    wa_in, ba_in = linear(keys[ki], in_size_a, hidden_list[0]); ki += 1
    params += [wx_in, bx_in, wa_in, ba_in]

    h_in = hidden_list[0]
    for h in hidden_list:
        wx, bx = linear(keys[ki], h_in, h); ki += 1
        wa, ba = linear(keys[ki], h_in, h); ki += 1
        params += [wx, bx, wa, ba]
        h_in = h

    w_out, b_out = linear(keys[ki], latent_size, out_size); ki += 1
    params += [w_out, b_out]
    return tuple(params)


def reference_forward(x, a, params, hidden_list):
    """Plain-JAX f32 reference mirroring the PyTorch forward."""
    f32 = jnp.float32
    wx_in, bx_in, wa_in, ba_in = params[0], params[1], params[2], params[3]
    w_out, b_out = params[-2], params[-1]
    layer_p = params[4:-2]
    L = len(hidden_list)

    hp = lambda u, w, b: jnp.einsum("bnd,dh->bnh", u.astype(f32), w.astype(f32),
                                    precision="highest") + b.astype(f32)
    x = _act_x(hp(x, wx_in, bx_in))
    a = _act_a(hp(a, wa_in, ba_in))
    out = 0.0
    for i in range(L):
        wx, bx = layer_p[4 * i + 0], layer_p[4 * i + 1]
        wa, ba = layer_p[4 * i + 2], layer_p[4 * i + 3]
        a = _act_a(hp(a, wa, ba))
        x = _act_x(hp(x, wx, bx))
        out = out + jnp.einsum("bnh,bmh->bnm", x, a, precision="highest")
    out = jnp.einsum("bnm,mo->bno", out / L, w_out.astype(f32),
                     precision="highest") + b_out.astype(f32)
    return out


if __name__ == "__main__":
    # Small shapes consistent with the module's forward signature.
    n_batch, n_mesh, dx = 4, 16, 8
    latent_size, da = 16, 8
    hidden_list = [32, 32]
    out_size = 8

    key = jax.random.PRNGKey(0)
    kx, ka, kp = jax.random.split(key, 3)
    x = jax.random.normal(kx, (n_batch, n_mesh, dx), jnp.float32)
    a_mesh = jax.random.normal(ka, (n_batch, latent_size, da), jnp.float32)
    params = init_params(kp, dx, da, latent_size, out_size, hidden_list)

    ref = jax.block_until_ready(reference_forward(x, a_mesh, params, hidden_list))

    # f32 MXU path: tight check of the forward semantics.
    out_f32 = jax.block_until_ready(
        multionet_batch_x_pallas(x, a_mesh, params, hidden_list,
                                 compute_dtype=jnp.float32))
    assert out_f32.shape == (n_batch, n_mesh, out_size)
    assert jnp.allclose(out_f32, ref, rtol=2e-2, atol=2e-2)

    # bf16-operand / f32-accumulation path (default fast path): looser check.
    out_bf16 = jax.block_until_ready(
        multionet_batch_x_pallas(x, a_mesh, params, hidden_list,
                                 compute_dtype=jnp.bfloat16))
    assert out_bf16.shape == (n_batch, n_mesh, out_size)
    assert jnp.allclose(out_bf16, ref, rtol=1e-1, atol=1e-1)

    # Non-divisible batch: exercises the partial last grid step (OOB rows are
    # dropped at the store; valid rows must be exact).
    n_batch2 = 5
    x_b = jax.random.normal(jax.random.PRNGKey(1), (n_batch2, n_mesh, dx), jnp.float32)
    a_b = jax.random.normal(jax.random.PRNGKey(2), (n_batch2, latent_size, da), jnp.float32)
    ref_b = reference_forward(x_b, a_b, params, hidden_list)
    out_b = jax.block_until_ready(
        multionet_batch_x_pallas(x_b, a_b, params, hidden_list,
                                 compute_dtype=jnp.float32, batch_tile=2))
    assert out_b.shape == (n_batch2, n_mesh, out_size)
    assert jnp.allclose(out_b, ref_b, rtol=2e-2, atol=2e-2)
    assert bool(jnp.all(jnp.isfinite(out_b)))

    print("KERNEL_OK")
</pallas_src>

<mosaic_0001>
module attributes {stable_mosaic.version = 11 : i64} {
  func.func @kernel(%arg0: i32, %arg1: memref<4x16x8xf32, #tpu.memory_space<vmem>>, %arg2: memref<4x16x8xf32, #tpu.memory_space<vmem>>, %arg3: memref<8x128xf32, #tpu.memory_space<vmem>>, %arg4: memref<1x128xf32, #tpu.memory_space<vmem>>, %arg5: memref<8x128xf32, #tpu.memory_space<vmem>>, %arg6: memref<1x128xf32, #tpu.memory_space<vmem>>, %arg7: memref<2x128x128xf32, #tpu.memory_space<vmem>>, %arg8: memref<2x1x128xf32, #tpu.memory_space<vmem>>, %arg9: memref<2x128x128xf32, #tpu.memory_space<vmem>>, %arg10: memref<2x1x128xf32, #tpu.memory_space<vmem>>, %arg11: memref<16x8xf32, #tpu.memory_space<vmem>>, %arg12: memref<1x8xf32, #tpu.memory_space<vmem>>, %arg13: memref<4x16x8xf32, #tpu.memory_space<vmem>>, %arg14: memref<64x256xf32, #tpu.memory_space<vmem>>, %arg15: memref<64x256xf32, #tpu.memory_space<vmem>>) attributes {dimension_semantics = [#tpu.dimension_semantics<parallel>], iteration_bounds = array<i64: 1>, scalar_prefetch = 0 : i64, scratch_operands = 2 : i64, tpu.core_type = #tpu.core_type<tc>, window_params = [{transform_indices = @transform_0, window_bounds = array<i64: 4, 16, 8>}, {transform_indices = @transform_1, window_bounds = array<i64: 4, 16, 8>}, {pipeline_mode = #tpu.pipeline_mode<synchronous>, transform_indices = @transform_2, window_bounds = array<i64: 8, 128>}, {pipeline_mode = #tpu.pipeline_mode<synchronous>, transform_indices = @transform_3, window_bounds = array<i64: 1, 128>}, {pipeline_mode = #tpu.pipeline_mode<synchronous>, transform_indices = @transform_4, window_bounds = array<i64: 8, 128>}, {pipeline_mode = #tpu.pipeline_mode<synchronous>, transform_indices = @transform_5, window_bounds = array<i64: 1, 128>}, {pipeline_mode = #tpu.pipeline_mode<synchronous>, transform_indices = @transform_6, window_bounds = array<i64: 2, 128, 128>}, {pipeline_mode = #tpu.pipeline_mode<synchronous>, transform_indices = @transform_7, window_bounds = array<i64: 2, 1, 128>}, {pipeline_mode = #tpu.pipeline_mode<synchronous>, transform_indices = @transform_8, window_bounds = array<i64: 2, 128, 128>}, {pipeline_mode = #tpu.pipeline_mode<synchronous>, transform_indices = @transform_9, window_bounds = array<i64: 2, 1, 128>}, {pipeline_mode = #tpu.pipeline_mode<synchronous>, transform_indices = @transform_10, window_bounds = array<i64: 16, 8>}, {pipeline_mode = #tpu.pipeline_mode<synchronous>, transform_indices = @transform_11, window_bounds = array<i64: 1, 8>}, {transform_indices = @transform_12, window_bounds = array<i64: 4, 16, 8>}]} {
    %c0 = arith.constant 0 : index
    %c0_0 = arith.constant 0 : index
    %c0_1 = arith.constant 0 : index
    %0 = vector.load %arg1[%c0, %c0_0, %c0_1] : memref<4x16x8xf32, #tpu.memory_space<vmem>>, vector<4x16x8xf32>
    %1 = vector.shape_cast %0 : vector<4x16x8xf32> to vector<64x8xf32>
    %c0_2 = arith.constant 0 : index
    %c0_3 = arith.constant 0 : index
    %c0_4 = arith.constant 0 : index
    %2 = vector.load %arg2[%c0_2, %c0_3, %c0_4] : memref<4x16x8xf32, #tpu.memory_space<vmem>>, vector<4x16x8xf32>
    %3 = vector.shape_cast %2 : vector<4x16x8xf32> to vector<64x8xf32>
    %c0_5 = arith.constant 0 : index
    %c0_6 = arith.constant 0 : index
    %4 = vector.load %arg3[%c0_5, %c0_6] : memref<8x128xf32, #tpu.memory_space<vmem>>, vector<8x128xf32>
    %cst = arith.constant dense<0.000000e+00> : vector<64x128xf32>
    %5 = tpu.matmul %1, %4, %cst {dimension_numbers = #tpu.dot_dimension_numbers<[1], [0], [0], [1], [0, 0, 1, 1], [], []>} : vector<64x8xf32>, vector<8x128xf32>, vector<64x128xf32> -> vector<64x128xf32>
    %c0_7 = arith.constant 0 : index
    %c0_8 = arith.constant 0 : index
    %6 = vector.load %arg4[%c0_7, %c0_8] : memref<1x128xf32, #tpu.memory_space<vmem>>, vector<1x128xf32>
    %7 = vector.broadcast %6 : vector<1x128xf32> to vector<64x128xf32>
    %8 = arith.addf %5, %7 : vector<64x128xf32>
    %9 = arith.negf %8 : vector<64x128xf32>
    %10 = math.exp %9 : vector<64x128xf32>
    %cst_9 = arith.constant 1.000000e+00 : f32
    %11 = vector.broadcast %cst_9 : f32 to vector<64x128xf32>
    %12 = arith.addf %11, %10 : vector<64x128xf32>
    %13 = arith.divf %11, %12 : vector<64x128xf32>
    %14 = arith.mulf %8, %13 : vector<64x128xf32>
    %15 = math.sin %14 : vector<64x128xf32>
    %c0_10 = arith.constant 0 : index
    %c0_11 = arith.constant 0 : index
    %16 = vector.load %arg5[%c0_10, %c0_11] : memref<8x128xf32, #tpu.memory_space<vmem>>, vector<8x128xf32>
    %cst_12 = arith.constant dense<0.000000e+00> : vector<64x128xf32>
    %17 = tpu.matmul %3, %16, %cst_12 {dimension_numbers = #tpu.dot_dimension_numbers<[1], [0], [0], [1], [0, 0, 1, 1], [], []>} : vector<64x8xf32>, vector<8x128xf32>, vector<64x128xf32> -> vector<64x128xf32>
    %c0_13 = arith.constant 0 : index
    %c0_14 = arith.constant 0 : index
    %18 = vector.load %arg6[%c0_13, %c0_14] : memref<1x128xf32, #tpu.memory_space<vmem>>, vector<1x128xf32>
    %19 = vector.broadcast %18 : vector<1x128xf32> to vector<64x128xf32>
    %20 = arith.addf %17, %19 : vector<64x128xf32>
    %21 = arith.negf %20 : vector<64x128xf32>
    %22 = math.exp %21 : vector<64x128xf32>
    %cst_15 = arith.constant 1.000000e+00 : f32
    %23 = vector.broadcast %cst_15 : f32 to vector<64x128xf32>
    %24 = arith.addf %23, %22 : vector<64x128xf32>
    %25 = arith.divf %23, %24 : vector<64x128xf32>
    %26 = arith.mulf %20, %25 : vector<64x128xf32>
    %c0_16 = arith.constant 0 : index
    %c0_17 = arith.constant 0 : index
    %c0_18 = arith.constant 0 : index
    %27 = vector.load %arg9[%c0_16, %c0_17, %c0_18] : memref<2x128x128xf32, #tpu.memory_space<vmem>>, vector<1x128x128xf32>
    %28 = vector.shape_cast %27 : vector<1x128x128xf32> to vector<128x128xf32>
    %cst_19 = arith.constant dense<0.000000e+00> : vector<64x128xf32>
    %29 = tpu.matmul %26, %28, %cst_19 {dimension_numbers = #tpu.dot_dimension_numbers<[1], [0], [0], [1], [0, 0, 1, 1], [], []>} : vector<64x128xf32>, vector<128x128xf32>, vector<64x128xf32> -> vector<64x128xf32>
    %c0_20 = arith.constant 0 : index
    %c0_21 = arith.constant 0 : index
    %c0_22 = arith.constant 0 : index
    %30 = vector.load %arg10[%c0_20, %c0_21, %c0_22] : memref<2x1x128xf32, #tpu.memory_space<vmem>>, vector<1x1x128xf32>
    %31 = vector.shape_cast %30 : vector<1x1x128xf32> to vector<1x128xf32>
    %32 = vector.broadcast %31 : vector<1x128xf32> to vector<64x128xf32>
    %33 = arith.addf %29, %32 : vector<64x128xf32>
    %34 = arith.negf %33 : vector<64x128xf32>
    %35 = math.exp %34 : vector<64x128xf32>
    %cst_23 = arith.constant 1.000000e+00 : f32
    %36 = vector.broadcast %cst_23 : f32 to vector<64x128xf32>
    %37 = arith.addf %36, %35 : vector<64x128xf32>
    %38 = arith.divf %36, %37 : vector<64x128xf32>
    %39 = arith.mulf %33, %38 : vector<64x128xf32>
    %c0_24 = arith.constant 0 : index
    %c0_25 = arith.constant 0 : index
    %c0_26 = arith.constant 0 : index
    %40 = vector.load %arg7[%c0_24, %c0_25, %c0_26] : memref<2x128x128xf32, #tpu.memory_space<vmem>>, vector<1x128x128xf32>
    %41 = vector.shape_cast %40 : vector<1x128x128xf32> to vector<128x128xf32>
    %cst_27 = arith.constant dense<0.000000e+00> : vector<64x128xf32>
    %42 = tpu.matmul %15, %41, %cst_27 {dimension_numbers = #tpu.dot_dimension_numbers<[1], [0], [0], [1], [0, 0, 1, 1], [], []>} : vector<64x128xf32>, vector<128x128xf32>, vector<64x128xf32> -> vector<64x128xf32>
    %c0_28 = arith.constant 0 : index
    %c0_29 = arith.constant 0 : index
    %c0_30 = arith.constant 0 : index
    %43 = vector.load %arg8[%c0_28, %c0_29, %c0_30] : memref<2x1x128xf32, #tpu.memory_space<vmem>>, vector<1x1x128xf32>
    %44 = vector.shape_cast %43 : vector<1x1x128xf32> to vector<1x128xf32>
    %45 = vector.broadcast %44 : vector<1x128xf32> to vector<64x128xf32>
    %46 = arith.addf %42, %45 : vector<64x128xf32>
    %47 = arith.negf %46 : vector<64x128xf32>
    %48 = math.exp %47 : vector<64x128xf32>
    %cst_31 = arith.constant 1.000000e+00 : f32
    %49 = vector.broadcast %cst_31 : f32 to vector<64x128xf32>
    %50 = arith.addf %49, %48 : vector<64x128xf32>
    %51 = arith.divf %49, %50 : vector<64x128xf32>
    %52 = arith.mulf %46, %51 : vector<64x128xf32>
    %53 = math.sin %52 : vector<64x128xf32>
    %c0_32 = arith.constant 0 : index
    %c0_33 = arith.constant 0 : index
    %54 = vector.load %arg14[%c0_32, %c0_33] : memref<64x256xf32, #tpu.memory_space<vmem>>, vector<64x128xf32>
    tpu.vector_store %arg14[%c0_32, %c0_33], %53 {strides = array<i32>} : memref<64x256xf32, #tpu.memory_space<vmem>>, vector<64x128xf32>,
    %c0_34 = arith.constant 0 : index
    %c0_35 = arith.constant 0 : index
    %55 = vector.load %arg15[%c0_34, %c0_35] : memref<64x256xf32, #tpu.memory_space<vmem>>, vector<64x128xf32>
    tpu.vector_store %arg15[%c0_34, %c0_35], %39 {strides = array<i32>} : memref<64x256xf32, #tpu.memory_space<vmem>>, vector<64x128xf32>,
    %c1 = arith.constant 1 : index
    %c0_36 = arith.constant 0 : index
    %c0_37 = arith.constant 0 : index
    %56 = vector.load %arg9[%c1, %c0_36, %c0_37] : memref<2x128x128xf32, #tpu.memory_space<vmem>>, vector<1x128x128xf32>
    %57 = vector.shape_cast %56 : vector<1x128x128xf32> to vector<128x128xf32>
    %cst_38 = arith.constant dense<0.000000e+00> : vector<64x128xf32>
    %58 = tpu.matmul %39, %57, %cst_38 {dimension_numbers = #tpu.dot_dimension_numbers<[1], [0], [0], [1], [0, 0, 1, 1], [], []>} : vector<64x128xf32>, vector<128x128xf32>, vector<64x128xf32> -> vector<64x128xf32>
    %c1_39 = arith.constant 1 : index
    %c0_40 = arith.constant 0 : index
    %c0_41 = arith.constant 0 : index
    %59 = vector.load %arg10[%c1_39, %c0_40, %c0_41] : memref<2x1x128xf32, #tpu.memory_space<vmem>>, vector<1x1x128xf32>
    %60 = vector.shape_cast %59 : vector<1x1x128xf32> to vector<1x128xf32>
    %61 = vector.broadcast %60 : vector<1x128xf32> to vector<64x128xf32>
    %62 = arith.addf %58, %61 : vector<64x128xf32>
    %63 = arith.negf %62 : vector<64x128xf32>
    %64 = math.exp %63 : vector<64x128xf32>
    %cst_42 = arith.constant 1.000000e+00 : f32
    %65 = vector.broadcast %cst_42 : f32 to vector<64x128xf32>
    %66 = arith.addf %65, %64 : vector<64x128xf32>
    %67 = arith.divf %65, %66 : vector<64x128xf32>
    %68 = arith.mulf %62, %67 : vector<64x128xf32>
    %c1_43 = arith.constant 1 : index
    %c0_44 = arith.constant 0 : index
    %c0_45 = arith.constant 0 : index
    %69 = vector.load %arg7[%c1_43, %c0_44, %c0_45] : memref<2x128x128xf32, #tpu.memory_space<vmem>>, vector<1x128x128xf32>
    %70 = vector.shape_cast %69 : vector<1x128x128xf32> to vector<128x128xf32>
    %cst_46 = arith.constant dense<0.000000e+00> : vector<64x128xf32>
    %71 = tpu.matmul %53, %70, %cst_46 {dimension_numbers = #tpu.dot_dimension_numbers<[1], [0], [0], [1], [0, 0, 1, 1], [], []>} : vector<64x128xf32>, vector<128x128xf32>, vector<64x128xf32> -> vector<64x128xf32>
    %c1_47 = arith.constant 1 : index
    %c0_48 = arith.constant 0 : index
    %c0_49 = arith.constant 0 : index
    %72 = vector.load %arg8[%c1_47, %c0_48, %c0_49] : memref<2x1x128xf32, #tpu.memory_space<vmem>>, vector<1x1x128xf32>
    %73 = vector.shape_cast %72 : vector<1x1x128xf32> to vector<1x128xf32>
    %74 = vector.broadcast %73 : vector<1x128xf32> to vector<64x128xf32>
    %75 = arith.addf %71, %74 : vector<64x128xf32>
    %76 = arith.negf %75 : vector<64x128xf32>
    %77 = math.exp %76 : vector<64x128xf32>
    %cst_50 = arith.constant 1.000000e+00 : f32
    %78 = vector.broadcast %cst_50 : f32 to vector<64x128xf32>
    %79 = arith.addf %78, %77 : vector<64x128xf32>
    %80 = arith.divf %78, %79 : vector<64x128xf32>
    %81 = arith.mulf %75, %80 : vector<64x128xf32>
    %82 = math.sin %81 : vector<64x128xf32>
    %c0_51 = arith.constant 0 : index
    %c128 = arith.constant 128 : index
    %83 = vector.load %arg14[%c0_51, %c128] : memref<64x256xf32, #tpu.memory_space<vmem>>, vector<64x128xf32>
    tpu.vector_store %arg14[%c0_51, %c128], %82 {strides = array<i32>} : memref<64x256xf32, #tpu.memory_space<vmem>>, vector<64x128xf32>,
    %c0_52 = arith.constant 0 : index
    %c128_53 = arith.constant 128 : index
    %84 = vector.load %arg15[%c0_52, %c128_53] : memref<64x256xf32, #tpu.memory_space<vmem>>, vector<64x128xf32>
    tpu.vector_store %arg15[%c0_52, %c128_53], %68 {strides = array<i32>} : memref<64x256xf32, #tpu.memory_space<vmem>>, vector<64x128xf32>,
    %c0_54 = arith.constant 0 : index
    %c0_55 = arith.constant 0 : index
    %85 = vector.load %arg14[%c0_54, %c0_55] : memref<64x256xf32, #tpu.memory_space<vmem>>, vector<64x256xf32>
    %86 = vector.shape_cast %85 : vector<64x256xf32> to vector<4x16x256xf32>
    %c0_56 = arith.constant 0 : index
    %c0_57 = arith.constant 0 : index
    %87 = vector.load %arg15[%c0_56, %c0_57] : memref<64x256xf32, #tpu.memory_space<vmem>>, vector<64x256xf32>
    %88 = vector.shape_cast %87 : vector<64x256xf32> to vector<4x16x256xf32>
    %cst_58 = arith.constant dense<0.000000e+00> : vector<4x16x16xf32>
    %89 = tpu.matmul %86, %88, %cst_58 {dimension_numbers = #tpu.dot_dimension_numbers<[2], [2], [1], [1], [0, 0, 0, 1, 1, 1], [0], [0]>} : vector<4x16x256xf32>, vector<4x16x256xf32>, vector<4x16x16xf32> -> vector<4x16x16xf32>
    %90 = vector.shape_cast %89 : vector<4x16x16xf32> to vector<64x16xf32>
    %c0_59 = arith.constant 0 : index
    %c0_60 = arith.constant 0 : index
    %91 = vector.load %arg11[%c0_59, %c0_60] : memref<16x8xf32, #tpu.memory_space<vmem>>, vector<16x8xf32>
    %cst_61 = arith.constant dense<0.000000e+00> : vector<64x8xf32>
    %92 = tpu.matmul %90, %91, %cst_61 {dimension_numbers = #tpu.dot_dimension_numbers<[1], [0], [0], [1], [0, 0, 1, 1], [], []>} : vector<64x16xf32>, vector<16x8xf32>, vector<64x8xf32> -> vector<64x8xf32>
    %c0_62 = arith.constant 0 : index
    %c0_63 = arith.constant 0 : index
    %93 = vector.load %arg12[%c0_62, %c0_63] : memref<1x8xf32, #tpu.memory_space<vmem>>, vector<1x8xf32>
    %94 = vector.broadcast %93 : vector<1x8xf32> to vector<64x8xf32>
    %95 = arith.addf %92, %94 : vector<64x8xf32>
    %96 = vector.shape_cast %95 : vector<64x8xf32> to vector<4x16x8xf32>
    %c0_64 = arith.constant 0 : index
    %c0_65 = arith.constant 0 : index
    %c0_66 = arith.constant 0 : index
    %97 = vector.load %arg13[%c0_64, %c0_65, %c0_66] : memref<4x16x8xf32, #tpu.memory_space<vmem>>, vector<4x16x8xf32>
    tpu.vector_store %arg13[%c0_64, %c0_65, %c0_66], %96 {strides = array<i32>} : memref<4x16x8xf32, #tpu.memory_space<vmem>>, vector<4x16x8xf32>,
    return
  }
  func.func @transform_0(%arg0: i32) -> (i32, i32, i32) {
    %c0_i32 = arith.constant 0 : i32
    %c0_i32_0 = arith.constant 0 : i32
    %c0_i32_1 = arith.constant 0 : i32
    return %arg0, %c0_i32, %c0_i32_0 : i32, i32, i32
  }
  func.func @transform_1(%arg0: i32) -> (i32, i32, i32) {
    %c0_i32 = arith.constant 0 : i32
    %c0_i32_0 = arith.constant 0 : i32
    %c0_i32_1 = arith.constant 0 : i32
    return %arg0, %c0_i32, %c0_i32_0 : i32, i32, i32
  }
  func.func @transform_2(%arg0: i32) -> (i32, i32) {
    %c0_i32 = arith.constant 0 : i32
    %c0_i32_0 = arith.constant 0 : i32
    %c0_i32_1 = arith.constant 0 : i32
    return %c0_i32, %c0_i32_0 : i32, i32
  }
  func.func @transform_3(%arg0: i32) -> (i32, i32) {
    %c0_i32 = arith.constant 0 : i32
    %c0_i32_0 = arith.constant 0 : i32
    %c0_i32_1 = arith.constant 0 : i32
    return %c0_i32, %c0_i32_0 : i32, i32
  }
  func.func @transform_4(%arg0: i32) -> (i32, i32) {
    %c0_i32 = arith.constant 0 : i32
    %c0_i32_0 = arith.constant 0 : i32
    %c0_i32_1 = arith.constant 0 : i32
    return %c0_i32, %c0_i32_0 : i32, i32
  }
  func.func @transform_5(%arg0: i32) -> (i32, i32) {
    %c0_i32 = arith.constant 0 : i32
    %c0_i32_0 = arith.constant 0 : i32
    %c0_i32_1 = arith.constant 0 : i32
    return %c0_i32, %c0_i32_0 : i32, i32
  }
  func.func @transform_6(%arg0: i32) -> (i32, i32, i32) {
    %c0_i32 = arith.constant 0 : i32
    %c0_i32_0 = arith.constant 0 : i32
    %c0_i32_1 = arith.constant 0 : i32
    %c0_i32_2 = arith.constant 0 : i32
    return %c0_i32, %c0_i32_0, %c0_i32_1 : i32, i32, i32
  }
  func.func @transform_7(%arg0: i32) -> (i32, i32, i32) {
    %c0_i32 = arith.constant 0 : i32
    %c0_i32_0 = arith.constant 0 : i32
    %c0_i32_1 = arith.constant 0 : i32
    %c0_i32_2 = arith.constant 0 : i32
    return %c0_i32, %c0_i32_0, %c0_i32_1 : i32, i32, i32
  }
  func.func @transform_8(%arg0: i32) -> (i32, i32, i32) {
    %c0_i32 = arith.constant 0 : i32
    %c0_i32_0 = arith.constant 0 : i32
    %c0_i32_1 = arith.constant 0 : i32
    %c0_i32_2 = arith.constant 0 : i32
    return %c0_i32, %c0_i32_0, %c0_i32_1 : i32, i32, i32
  }
  func.func @transform_9(%arg0: i32) -> (i32, i32, i32) {
    %c0_i32 = arith.constant 0 : i32
    %c0_i32_0 = arith.constant 0 : i32
    %c0_i32_1 = arith.constant 0 : i32
    %c0_i32_2 = arith.constant 0 : i32
    return %c0_i32, %c0_i32_0, %c0_i32_1 : i32, i32, i32
  }
  func.func @transform_10(%arg0: i32) -> (i32, i32) {
    %c0_i32 = arith.constant 0 : i32
    %c0_i32_0 = arith.constant 0 : i32
    %c0_i32_1 = arith.constant 0 : i32
    return %c0_i32, %c0_i32_0 : i32, i32
  }
  func.func @transform_11(%arg0: i32) -> (i32, i32) {
    %c0_i32 = arith.constant 0 : i32
    %c0_i32_0 = arith.constant 0 : i32
    %c0_i32_1 = arith.constant 0 : i32
    return %c0_i32, %c0_i32_0 : i32, i32
  }
  func.func @transform_12(%arg0: i32) -> (i32, i32, i32) {
    %c0_i32 = arith.constant 0 : i32
    %c0_i32_0 = arith.constant 0 : i32
    %c0_i32_1 = arith.constant 0 : i32
    return %arg0, %c0_i32, %c0_i32_0 : i32, i32, i32
  }
}

</mosaic_0001>

<llo_original>
// kernel: tpu_custom_call.1
$region0: #{tpu_custom_call.1}
  #allocation0 [shape = 'u32[]', space=smem, size = 0x4, offset = 0x4, fixed_abs, tag = 'smem constant byte address 0x4 - core index']
  #allocation1 [shape = 'u32[144,128]{1,0:T(1,128)}', space=vmem, size = 0x12000, scoped, tag = 'internal scratch']
  #allocation2 [shape = 'f32[64,256]{1,0:T(8,128)}', space=vmem, size = 0x10000, scoped, tag = 'scratch operand']
  #allocation3 [shape = 'f32[64,256]{1,0:T(8,128)}', space=vmem, size = 0x10000, scoped, tag = 'scratch operand']
  %s0 = inlined_call_operand.vmem [shape: f32[4,16,8], index: 0, kind: input, shape index: {}]
  %s1 = inlined_call_operand.vmem [shape: f32[4,16,8], index: 1, kind: input, shape index: {}]
  %s2 = inlined_call_operand.vmem [shape: f32[8,128], index: 2, kind: input, shape index: {}]
  %s3 = inlined_call_operand.vmem [shape: f32[1,128], index: 3, kind: input, shape index: {}]
  %s4 = inlined_call_operand.vmem [shape: f32[8,128], index: 4, kind: input, shape index: {}]
  %s5 = inlined_call_operand.vmem [shape: f32[1,128], index: 5, kind: input, shape index: {}]
  %s6 = inlined_call_operand.hbm [shape: f32[2,128,128], index: 6, kind: input, shape index: {}]
  %s7 = inlined_call_operand.vmem [shape: f32[2,1,128], index: 7, kind: input, shape index: {}]
  %s8 = inlined_call_operand.hbm [shape: f32[2,128,128], index: 8, kind: input, shape index: {}]
  %s9 = inlined_call_operand.vmem [shape: f32[2,1,128], index: 9, kind: input, shape index: {}]
  %s10 = inlined_call_operand.vmem [shape: f32[16,8], index: 10, kind: input, shape index: {}]
  %s11 = inlined_call_operand.vmem [shape: f32[1,8], index: 11, kind: input, shape index: {}]
  %s12 = inlined_call_operand.vmem [shape: f32[4,16,8], index: 12, kind: output, shape index: {}]
  %s13 = sld [smem:[#allocation0]]
  $region66: #{tpu_custom_call.1} parent=0
    _
  %s15 = ssub.s32 1, %s13
  %s16 = scalar_select 0, %s15, %s13
  $region1: #{tpu_custom_call.1} parent=0
    #allocation4 [shape = 'u8[131072]{0}', space=vmem, size = 0x20000, scoped, tag = 'input window, operand 6, single buffered']
    #allocation5 [shape = 's32[1]{0}', space=sflag, size = 0x4, scoped, tag = 'scoped memory for tpu_custom_call.1']
    #allocation6 [shape = 'u8[131072]{0}', space=vmem, size = 0x20000, scoped, tag = 'input window, operand 8, single buffered']
    #allocation7 [shape = 's32[1]{0}', space=sflag, size = 0x4, scoped, tag = 'scoped memory for tpu_custom_call.1']
    %17 = vsyncpa [#allocation5], 0
    %18 = vsyncpa [#allocation7], 0
    // Predicated region
    $region2: #{tpu_custom_call.1} parent=1 // pred_check
      _
    $region3: #{tpu_custom_call.1} parent=1 // pred_check_branch
      %20 = sbr.rel (0) target = $region5
    $region4: #{tpu_custom_call.1} parent=1 // pred_region
      _
    $region5: #{tpu_custom_call.1} parent=1 // pred_fallthru
      _
    // Predicated region
    $region6: #{tpu_custom_call.1} parent=1 // pred_check
      _
    $region7: #{tpu_custom_call.1} parent=1 // pred_check_branch
      %22 = sbr.rel (0) target = $region9
    $region8: #{tpu_custom_call.1} parent=1 // pred_region
      _
    $region9: #{tpu_custom_call.1} parent=1 // pred_fallthru
      _
    // Predicated region
    $region10: #{tpu_custom_call.1} parent=1 // pred_check
      _
    $region11: #{tpu_custom_call.1} parent=1 // pred_check_branch
      %24 = sbr.rel (0) target = $region13
    $region12: #{tpu_custom_call.1} parent=1 // pred_region
      _
    $region13: #{tpu_custom_call.1} parent=1 // pred_fallthru
      _
    // Predicated region
    $region14: #{tpu_custom_call.1} parent=1 // pred_check
      _
    $region15: #{tpu_custom_call.1} parent=1 // pred_check_branch
      %26 = sbr.rel (0) target = $region17
    $region16: #{tpu_custom_call.1} parent=1 // pred_region
      _
    $region17: #{tpu_custom_call.1} parent=1 // pred_fallthru
      _
    // Predicated region
    $region18: #{tpu_custom_call.1} parent=1 // pred_check
      _
    $region19: #{tpu_custom_call.1} parent=1 // pred_check_branch
      %28 = sbr.rel (0) target = $region21
    $region20: #{tpu_custom_call.1} parent=1 // pred_region
      _
    $region21: #{tpu_custom_call.1} parent=1 // pred_fallthru
      _
    // Predicated region
    $region22: #{tpu_custom_call.1} parent=1 // pred_check
      _
    $region23: #{tpu_custom_call.1} parent=1 // pred_check_branch
      %30 = sbr.rel (0) target = $region25
    $region24: #{tpu_custom_call.1} parent=1 // pred_region
      _
    $region25: #{tpu_custom_call.1} parent=1 // pred_fallthru
      _
    // Predicated region
    $region26: #{tpu_custom_call.1} parent=1 // pred_check
      _
    $region27: #{tpu_custom_call.1} parent=1 // pred_check_branch
      %32 = sbr.rel (0) target = $region29
    $region28: #{tpu_custom_call.1} parent=1 // pred_region
      %s34 = ssub.s32 4096, 4096
      %35 = vsyncadd [#allocation5], %s34
      %s36 = sshll.u32 [#allocation4], 4
      %s37 = int_to_ptr.vmem [resolvable:$true] %s36
      %42 = dma.hbm_to_vmem [thread:$0]  %s6, 4096, %s37, [#allocation5], 128, 128, 8
    $region29: #{tpu_custom_call.1} parent=1 // pred_fallthru
      _
    // Predicated region
    $region30: #{tpu_custom_call.1} parent=1 // pred_check
      _
    $region31: #{tpu_custom_call.1} parent=1 // pred_check_branch
      %44 = sbr.rel (0) target = $region33
    $region32: #{tpu_custom_call.1} parent=1 // pred_region
      _
    $region33: #{tpu_custom_call.1} parent=1 // pred_fallthru
      _
    // Predicated region
    $region34: #{tpu_custom_call.1} parent=1 // pred_check
      _
    $region35: #{tpu_custom_call.1} parent=1 // pred_check_branch
      %46 = sbr.rel (0) target = $region37
    $region36: #{tpu_custom_call.1} parent=1 // pred_region
      %s48 = ssub.s32 4096, 4096
      %49 = vsyncadd [#allocation7], %s48
      %s50 = sshll.u32 [#allocation6], 4
      %s51 = int_to_ptr.vmem [resolvable:$true] %s50
      %56 = dma.hbm_to_vmem [thread:$0]  %s8, 4096, %s51, [#allocation7], 128, 128, 8
    $region37: #{tpu_custom_call.1} parent=1 // pred_fallthru
      _
    // Predicated region
    $region38: #{tpu_custom_call.1} parent=1 // pred_check
      _
    $region39: #{tpu_custom_call.1} parent=1 // pred_check_branch
      %58 = sbr.rel (0) target = $region41
    $region40: #{tpu_custom_call.1} parent=1 // pred_region
      _
    $region41: #{tpu_custom_call.1} parent=1 // pred_fallthru
      _
    // Predicated region
    $region42: #{tpu_custom_call.1} parent=1 // pred_check
      _
    $region43: #{tpu_custom_call.1} parent=1 // pred_check_branch
      %60 = sbr.rel (0) target = $region45
    $region44: #{tpu_custom_call.1} parent=1 // pred_region
      _
    $region45: #{tpu_custom_call.1} parent=1 // pred_fallthru
      _
    // Predicated region
    $region46: #{tpu_custom_call.1} parent=1 // pred_check
      _
    $region47: #{tpu_custom_call.1} parent=1 // pred_check_branch
      %62 = sbr.rel (0) target = $region49
    $region48: #{tpu_custom_call.1} parent=1 // pred_region
      _
    $region49: #{tpu_custom_call.1} parent=1 // pred_fallthru
      _
    // Predicated region
    $region50: #{tpu_custom_call.1} parent=1 // pred_check
      _
    $region51: #{tpu_custom_call.1} parent=1 // pred_check_branch
      %64 = sbr.rel (0) target = $region53
    $region52: #{tpu_custom_call.1} parent=1 // pred_region
      %65 = dma.done [#allocation5], 4096
    $region53: #{tpu_custom_call.1} parent=1 // pred_fallthru
      _
    // Predicated region
    $region54: #{tpu_custom_call.1} parent=1 // pred_check
      _
    $region55: #{tpu_custom_call.1} parent=1 // pred_check_branch
      %67 = sbr.rel (0) target = $region57
    $region56: #{tpu_custom_call.1} parent=1 // pred_region
      %68 = dma.done [#allocation7], 4096
    $region57: #{tpu_custom_call.1} parent=1 // pred_fallthru
      _
    %v69 = vld [vmem:[%s0] sm:$0xff]
    %v70 = vld [vmem:[%s0 + $0x8] sm:$0xff]
    %v71 = vld [vmem:[%s0 + $0x10] sm:$0xff]
    %v72 = vld [vmem:[%s0 + $0x18] sm:$0xff]
    %v73 = vld [vmem:[%s0 + $0x20] sm:$0xff]
    %v74 = vld [vmem:[%s0 + $0x28] sm:$0xff]
    %v75 = vld [vmem:[%s0 + $0x30] sm:$0xff]
    %v76 = vld [vmem:[%s0 + $0x38] sm:$0xff]
    %v77 = vld [vmem:[%s1] sm:$0xff]
    %v78 = vld [vmem:[%s1 + $0x8] sm:$0xff]
    %v79 = vld [vmem:[%s1 + $0x10] sm:$0xff]
    %v80 = vld [vmem:[%s1 + $0x18] sm:$0xff]
    %v81 = vld [vmem:[%s1 + $0x20] sm:$0xff]
    %v82 = vld [vmem:[%s1 + $0x28] sm:$0xff]
    %v83 = vld [vmem:[%s1 + $0x30] sm:$0xff]
    %v84 = vld [vmem:[%s1 + $0x38] sm:$0xff]
    %v85 = vld [vmem:[%s2] sm:$0xff]
    %v86 = vld [vmem:[%s3] sm:$0x1]
    %v88 = vlaneseq
    %v89 = vshrl.u32 %v88, 7
    %v90 = vsub.s32 0, %v89
    %v91 = vrot.slane %v86, %v90
    %vm93 = vcmask 64512
    %v95 = vsel %vm93, %v69, 0
    %v98 = vsel %vm93, %v70, 0
    %v101 = vsel %vm93, %v71, 0
    %v104 = vsel %vm93, %v72, 0
    %v107 = vsel %vm93, %v73, 0
    %v110 = vsel %vm93, %v74, 0
    %v113 = vsel %vm93, %v75, 0
    %v116 = vsel %vm93, %v76, 0
    %118 = vmatprep.subr.mxu0 0.0
    %119 = vmatpush1.msra.mxu0 %v85
    %120 = vmatprep.subr.mxu0 0.0
    %121 = vmatpush1.msra.mxu0 0.0
    %122 = vmatprep.subr.mxu0 0.0
    %123 = vmatpush1.msra.mxu0 0.0
    %124 = vmatprep.subr.mxu0 0.0
    %125 = vmatpush1.msra.mxu0 0.0
    %126 = vmatprep.subr.mxu0 0.0
    %127 = vmatpush1.msra.mxu0 0.0
    %128 = vmatprep.subr.mxu0 0.0
    %129 = vmatpush1.msra.mxu0 0.0
    %130 = vmatprep.subr.mxu0 0.0
    %131 = vmatpush1.msra.mxu0 0.0
    %132 = vmatprep.subr.mxu0 0.0
    %133 = vmatpush1.msra.mxu0 0.0
    %134 = vmatprep.subr.mxu0 0.0
    %135 = vmatpush1.msra.mxu0 0.0
    %136 = vmatprep.subr.mxu0 0.0
    %137 = vmatpush1.msra.mxu0 0.0
    %138 = vmatprep.subr.mxu0 0.0
    %139 = vmatpush1.msra.mxu0 0.0
    %140 = vmatprep.subr.mxu0 0.0
    %141 = vmatpush1.msra.mxu0 0.0
    %142 = vmatprep.subr.mxu0 0.0
    %143 = vmatpush1.msra.mxu0 0.0
    %144 = vmatprep.subr.mxu0 0.0
    %145 = vmatpush1.msra.mxu0 0.0
    %146 = vmatprep.subr.mxu0 0.0
    %147 = vmatpush1.msra.mxu0 0.0
    %148 = vmatprep.subr.mxu0 0.0
    %149 = vmatpush1.msra.mxu0 0.0
    %150 = vmatprep.subr.mxu0 0.0
    %151 = vmatpush1.msra.mxu0 0.0
    %152 = vmatprep.subr.mxu0 0.0
    %153 = vmatpush1.msra.mxu0 0.0
    %154 = vmatprep.subr.mxu0 0.0
    %155 = vmatpush1.msra.mxu0 0.0
    %156 = vmatprep.subr.mxu0 0.0
    %157 = vmatpush1.msra.mxu0 0.0
    %158 = vmatprep.subr.mxu0 0.0
    %159 = vmatpush1.msra.mxu0 0.0
    %160 = vmatprep.subr.mxu0 0.0
    %161 = vmatpush1.msra.mxu0 0.0
    %162 = vmatprep.subr.mxu0 0.0
    %163 = vmatpush1.msra.mxu0 0.0
    %164 = vmatprep.subr.mxu0 0.0
    %165 = vmatpush1.msra.mxu0 0.0
    %166 = vmatprep.subr.mxu0 0.0
    %167 = vmatpush1.msra.mxu0 0.0
    %168 = vmatprep.subr.mxu0 0.0
    %169 = vmatpush1.msra.mxu0 0.0
    %170 = vmatprep.subr.mxu0 0.0
    %171 = vmatpush1.msra.mxu0 0.0
    %172 = vmatprep.subr.mxu0 0.0
    %173 = vmatpush1.msra.mxu0 0.0
    %174 = vmatprep.subr.mxu0 0.0
    %175 = vmatpush1.msra.mxu0 0.0
    %176 = vmatprep.subr.mxu0 0.0
    %177 = vmatpush1.msra.mxu0 0.0
    %178 = vmatprep.subr.mxu0 0.0
    %179 = vmatpush1.msra.mxu0 0.0
    %180 = vmatprep.subr.mxu0 0.0
    %181 = vmatpush1.msra.mxu0 0.0
    %182 = vmatprep.mubr.f32.mxu0 0.0
    %183 = vmatmul.mubr.f32.gmra.mrb[0].mxu0 %v95
    %v184 = vpop.f32.mrb[0].mxu0
    %v185 = vadd.f32 %v91, %v184
    %v186 = vpop.f32.mrb[0].mxu0
    %187 = vmatprep.mubr.f32.mxu0 0.0
    %188 = vmatmul.mubr.f32.gmra.mrb[0].mxu0 %v98
    %v189 = vpop.f32.mrb[0].mxu0
    %v190 = vadd.f32 %v91, %v189
    %v191 = vpop.f32.mrb[0].mxu0
    %192 = vmatprep.mubr.f32.mxu0 0.0
    %193 = vmatmul.mubr.f32.gmra.mrb[0].mxu0 %v101
    %v194 = vpop.f32.mrb[0].mxu0
    %v195 = vadd.f32 %v91, %v194
    %v196 = vpop.f32.mrb[0].mxu0
    %197 = vmatprep.mubr.f32.mxu0 0.0
    %198 = vmatmul.mubr.f32.gmra.mrb[0].mxu0 %v104
    %v199 = vpop.f32.mrb[0].mxu0
    %v200 = vadd.f32 %v91, %v199
    %v201 = vpop.f32.mrb[0].mxu0
    %202 = vmatprep.mubr.f32.mxu0 0.0
    %203 = vmatmul.mubr.f32.gmra.mrb[0].mxu0 %v107
    %v204 = vpop.f32.mrb[0].mxu0
    %v205 = vadd.f32 %v91, %v204
    %v206 = vpop.f32.mrb[0].mxu0
    %207 = vmatprep.mubr.f32.mxu0 0.0
    %208 = vmatmul.mubr.f32.gmra.mrb[0].mxu0 %v110
    %v209 = vpop.f32.mrb[0].mxu0
    %v210 = vadd.f32 %v91, %v209
    %v211 = vpop.f32.mrb[0].mxu0
    %212 = vmatprep.mubr.f32.mxu0 0.0
    %213 = vmatmul.mubr.f32.gmra.mrb[0].mxu0 %v113
    %v214 = vpop.f32.mrb[0].mxu0
    %v215 = vadd.f32 %v91, %v214
    %v216 = vpop.f32.mrb[0].mxu0
    %217 = vmatprep.mubr.f32.mxu0 0.0
    %218 = vmatmul.mubr.f32.gmra.mrb[0].mxu0 %v116
    %v219 = vpop.f32.mrb[0].mxu0
    %v220 = vadd.f32 %v91, %v219
    %v221 = vpop.f32.mrb[0].mxu0
    %222 = vdwg.mxu0
    %v223 = vxor.u32 %v185, 2147483648
    %v224 = vxor.u32 %v190, 2147483648
    %v225 = vxor.u32 %v195, 2147483648
    %v226 = vxor.u32 %v200, 2147483648
    %v227 = vxor.u32 %v205, 2147483648
    %v228 = vxor.u32 %v210, 2147483648
    %v229 = vxor.u32 %v215, 2147483648
    %v230 = vxor.u32 %v220, 2147483648
    %v231 = vmul.f32 %v223, 1.442695
    %v232 = vpow.pop %v231
    %v233 = vmul.f32 %v224, 1.442695
    %v234 = vpow.pop %v233
    %v235 = vmul.f32 %v225, 1.442695
    %v236 = vpow.pop %v235
    %v237 = vmul.f32 %v226, 1.442695
    %v238 = vpow.pop %v237
    %v239 = vmul.f32 %v227, 1.442695
    %v240 = vpow.pop %v239
    %v241 = vmul.f32 %v228, 1.442695
    %v242 = vpow.pop %v241
    %v243 = vmul.f32 %v229, 1.442695
    %v244 = vpow.pop %v243
    %v245 = vmul.f32 %v230, 1.442695
    %v246 = vpow.pop %v245
    %v247 = vadd.f32 %v232, 1.0
    %v248 = vadd.f32 %v234, 1.0
    %v249 = vadd.f32 %v236, 1.0
    %v250 = vadd.f32 %v238, 1.0
    %v251 = vadd.f32 %v240, 1.0
    %v252 = vadd.f32 %v242, 1.0
    %v253 = vadd.f32 %v244, 1.0
    %v254 = vadd.f32 %v246, 1.0
    %v255 = vrcp.pop %v247
    %v256 = vmul.f32 1.0, %v255
    %v257 = vrcp.pop %v248
    %v258 = vmul.f32 1.0, %v257
    %v259 = vrcp.pop %v249
    %v260 = vmul.f32 1.0, %v259
    %v261 = vrcp.pop %v250
    %v262 = vmul.f32 1.0, %v261
    %v263 = vrcp.pop %v251
    %v264 = vmul.f32 1.0, %v263
    %v265 = vrcp.pop %v252
    %v266 = vmul.f32 1.0, %v265
    %v267 = vrcp.pop %v253
    %v268 = vmul.f32 1.0, %v267
    %v269 = vrcp.pop %v254
    %v270 = vmul.f32 1.0, %v269
    %v271 = vmul.f32 %v185, %v256
    %v272 = vmul.f32 %v190, %v258
    %v273 = vmul.f32 %v195, %v260
    %v274 = vmul.f32 %v200, %v262
    %v275 = vmul.f32 %v205, %v264
    %v276 = vmul.f32 %v210, %v266
    %v277 = vmul.f32 %v215, %v268
    %v278 = vmul.f32 %v220, %v270
    %v279 = vand.u32 2147483647, %v271
    %vm280 = vcmp.le.f32.partialorder %v279, 0.7853982
    %vm281 = vcmp.lt.s32.totalorder %v271, 0
    %v282 = vand.u32 %v271, 2139095040
    %v283 = vshrl.u32 %v282, 23
    %v284 = vsub.s32 %v283, 127
    %v285 = vand.u32 2147483647, %v271
    %v286 = vand.u32 %v285, 8388607
    %v287 = vor.u32 %v286, 8388608
    %v288 = vsub.s32 0, %v287
    %v289 = vadd.s32 %v284, 1
    %vm290 = vcmp.gt.s32.totalorder %v289, 0
    %v291 = vsel %vm290, %v289, 0
    %v292 = vshrl.u32 %v291, 5
    %v293 = vand.u32 %v291, 31
    %v294 = vsub.s32 32, %v293
    %v295 = vshrl.u32 683565275, %v294
    %v296 = vshll.u32 683565275, %v293
    %v297 = vshrl.u32 2475754826, %v294
    %v298 = vor.u32 %v296, %v297
    %v299 = vshll.u32 2475754826, %v293
    %v300 = vshrl.u32 2131351028, %v294
    %v301 = vor.u32 %v299, %v300
    %v302 = vshll.u32 2131351028, %v293
    %v303 = vshrl.u32 2102212464, %v294
    %v304 = vor.u32 %v302, %v303
    %v305 = vshll.u32 2102212464, %v293
    %v306 = vshrl.u32 920167782, %v294
    %v307 = vor.u32 %v305, %v306
    %v308 = vshll.u32 920167782, %v293
    %v309 = vshrl.u32 1326507024, %v294
    %v310 = vor.u32 %v308, %v309
    %vm311 = vcmp.lt.s32.totalorder %v292, 1
    %vm312 = vcmp.lt.s32.totalorder %v292, 2
    %vm313 = vcmp.lt.s32.totalorder %v292, 3
    %vm314 = vcmp.lt.s32.totalorder %v292, 4
    %v315 = vsel %vm311, %v295, %v298
    %v316 = vsel %vm314, %v304, 2102212464
    %v317 = vsel %vm313, %v301, %v316
    %v318 = vsel %vm312, %v315, %v317
    %v319 = vsel %vm311, %v298, %v301
    %v320 = vsel %vm314, %v307, 920167782
    %v321 = vsel %vm313, %v304, %v320
    %v322 = vsel %vm312, %v319, %v321
    %v323 = vsel %vm311, %v301, %v304
    %v324 = vsel %vm314, %v310, 1326507024
    %v325 = vsel %vm313, %v307, %v324
    %v326 = vsel %vm312, %v323, %v325
    %v327 = vshll.u32 %v287, 8
    %v328 = vmul.u32.u64.compose %v327, %v326
    %v329 = vextract.low.u32 %v328
    %v330 = vextract.high.u32 %v328
    %v331 = vmul.u32.u64.compose %v327, %v322
    %v332 = vextract.low.u32 %v331
    %v333 = vextract.high.u32 %v331
    %v334 = vmul.u32 %v327, %v318
    %v335 = vadd.s32 %v330, %v332
    %vm336 = vc.u32 %v330, %v332
    %v337 = vadd.s32 %v333, 1
    %v338 = vsel %vm336, %v337, %v333
    %v339 = vadd.s32 %v334, %v338
    %v340 = vadd.s32 %v339, 536870912
    %v341 = vshrl.u32 %v340, 30
    %v342 = vshll.u32 %v341, 30
    %v343 = vsub.s32 %v339, %v342
    %vm344 = vcmp.lt.s32.totalorder %v343, 0
    %v345 = vsub.s32 0, %v343
    %v346 = vsel %vm344, %v345, %v343
    %v347 = vclz %v346
    %v348 = vsub.s32 %v347, 2
    %vm349 = vcmp.gt.s32.totalorder 0, %v348
    %v350 = vsel %vm349, 0, %v348
    %v351 = vsub.s32 32, %v350
    %v352 = vshll.u32 %v343, %v350
    %v353 = vshrl.u32 %v335, %v351
    %v354 = vor.u32 %v352, %v353
    %v355 = vsub.s32 4294967266, %v350
    %v356 = vadd.s32 %v355, 127
    %v357 = vshll.u32 %v356, 23
    %v358 = vor.u32 4788187, %v357
    %v359 = vand.u32 2147483647, %v358
    %v361 = vcvt.s32.f32 %v354
    %v362 = vmul.f32 %v361, %v359
    %v363 = vxor.u32 %v362, 2147483648
    %v364 = vsel %vm281, %v363, %v362
    %v365 = vsub.s32 4, %v341
    %v366 = vsel %vm281, %v365, %v341
    %v367 = vsel %vm280, %v271, %v364
    %v368 = vsel %vm280, 0, %v366
    %v369 = vcosq.f32.pop %v367
    %v370 = vsinq.f32.pop %v367
    %vm371 = vweird.f32 %v271
    %v372 = vadd.s32 %v368, 3
    %v373 = vand.u32 %v372, 3
    %vm374 = vcmp.lt.s32.totalorder %v373, 2
    %vm375 = vcmp.eq.s32.totalorder %v373, 0
    %v376 = vxor.u32 %v370, 2147483648
    %v377 = vsel %vm375, %v369, %v376
    %vm378 = vcmp.eq.s32.totalorder %v373, 2
    %v379 = vxor.u32 %v369, 2147483648
    %v380 = vsel %vm378, %v379, %v370
    %v381 = vsel %vm374, %v377, %v380
    %v382 = vsel %vm371, nan, %v381
    %v383 = vand.u32 2147483647, %v272
    %vm384 = vcmp.le.f32.partialorder %v383, 0.7853982
    %vm385 = vcmp.lt.s32.totalorder %v272, 0
    %v386 = vand.u32 %v272, 2139095040
    %v387 = vshrl.u32 %v386, 23
    %v388 = vsub.s32 %v387, 127
    %v389 = vand.u32 2147483647, %v272
    %v390 = vand.u32 %v389, 8388607
    %v391 = vor.u32 %v390, 8388608
    %v392 = vsub.s32 0, %v391
    %v393 = vadd.s32 %v388, 1
    %vm394 = vcmp.gt.s32.totalorder %v393, 0
    %v395 = vsel %vm394, %v393, 0
    %v396 = vshrl.u32 %v395, 5
    %v397 = vand.u32 %v395, 31
    %v398 = vsub.s32 32, %v397
    %v399 = vshrl.u32 683565275, %v398
    %v400 = vshll.u32 683565275, %v397
    %v401 = vshrl.u32 2475754826, %v398
    %v402 = vor.u32 %v400, %v401
    %v403 = vshll.u32 2475754826, %v397
    %v404 = vshrl.u32 2131351028, %v398
    %v405 = vor.u32 %v403, %v404
    %v406 = vshll.u32 2131351028, %v397
    %v407 = vshrl.u32 2102212464, %v398
    %v408 = vor.u32 %v406, %v407
    %v409 = vshll.u32 2102212464, %v397
    %v410 = vshrl.u32 920167782, %v398
    %v411 = vor.u32 %v409, %v410
    %v412 = vshll.u32 920167782, %v397
    %v413 = vshrl.u32 1326507024, %v398
    %v414 = vor.u32 %v412, %v413
    %vm415 = vcmp.lt.s32.totalorder %v396, 1
    %vm416 = vcmp.lt.s32.totalorder %v396, 2
    %vm417 = vcmp.lt.s32.totalorder %v396, 3
    %vm418 = vcmp.lt.s32.totalorder %v396, 4
    %v419 = vsel %vm415, %v399, %v402
    %v420 = vsel %vm418, %v408, 2102212464
    %v421 = vsel %vm417, %v405, %v420
    %v422 = vsel %vm416, %v419, %v421
    %v423 = vsel %vm415, %v402, %v405
    %v424 = vsel %vm418, %v411, 920167782
    %v425 = vsel %vm417, %v408, %v424
    %v426 = vsel %vm416, %v423, %v425
    %v427 = vsel %vm415, %v405, %v408
    %v428 = vsel %vm418, %v414, 1326507024
    %v429 = vsel %vm417, %v411, %v428
    %v430 = vsel %vm416, %v427, %v429
    %v431 = vshll.u32 %v391, 8
    %v432 = vmul.u32.u64.compose %v431, %v430
    %v433 = vextract.low.u32 %v432
    %v434 = vextract.high.u32 %v432
    %v435 = vmul.u32.u64.compose %v431, %v426
    %v436 = vextract.low.u32 %v435
    %v437 = vextract.high.u32 %v435
    %v438 = vmul.u32 %v431, %v422
    %v439 = vadd.s32 %v434, %v436
    %vm440 = vc.u32 %v434, %v436
    %v441 = vadd.s32 %v437, 1
    %v442 = vsel %vm440, %v441, %v437
    %v443 = vadd.s32 %v438, %v442
    %v444 = vadd.s32 %v443, 536870912
    %v445 = vshrl.u32 %v444, 30
    %v446 = vshll.u32 %v445, 30
    %v447 = vsub.s32 %v443, %v446
    %vm448 = vcmp.lt.s32.totalorder %v447, 0
    %v449 = vsub.s32 0, %v447
    %v450 = vsel %vm448, %v449, %v447
    %v451 = vclz %v450
    %v452 = vsub.s32 %v451, 2
    %vm453 = vcmp.gt.s32.totalorder 0, %v452
    %v454 = vsel %vm453, 0, %v452
    %v455 = vsub.s32 32, %v454
    %v456 = vshll.u32 %v447, %v454
    %v457 = vshrl.u32 %v439, %v455
    %v458 = vor.u32 %v456, %v457
    %v459 = vsub.s32 4294967266, %v454
    %v460 = vadd.s32 %v459, 127
    %v461 = vshll.u32 %v460, 23
    %v462 = vor.u32 4788187, %v461
    %v463 = vand.u32 2147483647, %v462
    %v465 = vcvt.s32.f32 %v458
    %v466 = vmul.f32 %v465, %v463
    %v467 = vxor.u32 %v466, 2147483648
    %v468 = vsel %vm385, %v467, %v466
    %v469 = vsub.s32 4, %v445
    %v470 = vsel %vm385, %v469, %v445
    %v471 = vsel %vm384, %v272, %v468
    %v472 = vsel %vm384, 0, %v470
    %v473 = vcosq.f32.pop %v471
    %v474 = vsinq.f32.pop %v471
    %vm475 = vweird.f32 %v272
    %v476 = vadd.s32 %v472, 3
    %v477 = vand.u32 %v476, 3
    %vm478 = vcmp.lt.s32.totalorder %v477, 2
    %vm479 = vcmp.eq.s32.totalorder %v477, 0
    %v480 = vxor.u32 %v474, 2147483648
    %v481 = vsel %vm479, %v473, %v480
    %vm482 = vcmp.eq.s32.totalorder %v477, 2
    %v483 = vxor.u32 %v473, 2147483648
    %v484 = vsel %vm482, %v483, %v474
    %v485 = vsel %vm478, %v481, %v484
    %v486 = vsel %vm475, nan, %v485
    %v487 = vand.u32 2147483647, %v273
    %vm488 = vcmp.le.f32.partialorder %v487, 0.7853982
    %vm489 = vcmp.lt.s32.totalorder %v273, 0
    %v490 = vand.u32 %v273, 2139095040
    %v491 = vshrl.u32 %v490, 23
    %v492 = vsub.s32 %v491, 127
    %v493 = vand.u32 2147483647, %v273
    %v494 = vand.u32 %v493, 8388607
    %v495 = vor.u32 %v494, 8388608
    %v496 = vsub.s32 0, %v495
    %v497 = vadd.s32 %v492, 1
    %vm498 = vcmp.gt.s32.totalorder %v497, 0
    %v499 = vsel %vm498, %v497, 0
    %v500 = vshrl.u32 %v499, 5
    %v501 = vand.u32 %v499, 31
    %v502 = vsub.s32 32, %v501
    %v503 = vshrl.u32 683565275, %v502
    %v504 = vshll.u32 683565275, %v501
    %v505 = vshrl.u32 2475754826, %v502
    %v506 = vor.u32 %v504, %v505
    %v507 = vshll.u32 2475754826, %v501
    %v508 = vshrl.u32 2131351028, %v502
    %v509 = vor.u32 %v507, %v508
    %v510 = vshll.u32 2131351028, %v501
    %v511 = vshrl.u32 2102212464, %v502
    %v512 = vor.u32 %v510, %v511
    %v513 = vshll.u32 2102212464, %v501
    %v514 = vshrl.u32 920167782, %v502
    %v515 = vor.u32 %v513, %v514
    %v516 = vshll.u32 920167782, %v501
    %v517 = vshrl.u32 1326507024, %v502
    %v518 = vor.u32 %v516, %v517
    %vm519 = vcmp.lt.s32.totalorder %v500, 1
    %vm520 = vcmp.lt.s32.totalorder %v500, 2
    %vm521 = vcmp.lt.s32.totalorder %v500, 3
    %vm522 = vcmp.lt.s32.totalorder %v500, 4
    %v523 = vsel %vm519, %v503, %v506
    %v524 = vsel %vm522, %v512, 2102212464
    %v525 = vsel %vm521, %v509, %v524
    %v526 = vsel %vm520, %v523, %v525
    %v527 = vsel %vm519, %v506, %v509
    %v528 = vsel %vm522, %v515, 920167782
    %v529 = vsel %vm521, %v512, %v528
    %v530 = vsel %vm520, %v527, %v529
    %v531 = vsel %vm519, %v509, %v512
    %v532 = vsel %vm522, %v518, 1326507024
    %v533 = vsel %vm521, %v515, %v532
    %v534 = vsel %vm520, %v531, %v533
    %v535 = vshll.u32 %v495, 8
    %v536 = vmul.u32.u64.compose %v535, %v534
    %v537 = vextract.low.u32 %v536
    %v538 = vextract.high.u32 %v536
    %v539 = vmul.u32.u64.compose %v535, %v530
    %v540 = vextract.low.u32 %v539
    %v541 = vextract.high.u32 %v539
    %v542 = vmul.u32 %v535, %v526
    %v543 = vadd.s32 %v538, %v540
    %vm544 = vc.u32 %v538, %v540
    %v545 = vadd.s32 %v541, 1
    %v546 = vsel %vm544, %v545, %v541
    %v547 = vadd.s32 %v542, %v546
    %v548 = vadd.s32 %v547, 536870912
    %v549 = vshrl.u32 %v548, 30
    %v550 = vshll.u32 %v549, 30
    %v551 = vsub.s32 %v547, %v550
    %vm552 = vcmp.lt.s32.totalorder %v551, 0
    %v553 = vsub.s32 0, %v551
    %v554 = vsel %vm552, %v553, %v551
    %v555 = vclz %v554
    %v556 = vsub.s32 %v555, 2
    %vm557 = vcmp.gt.s32.totalorder 0, %v556
    %v558 = vsel %vm557, 0, %v556
    %v559 = vsub.s32 32, %v558
    %v560 = vshll.u32 %v551, %v558
    %v561 = vshrl.u32 %v543, %v559
    %v562 = vor.u32 %v560, %v561
    %v563 = vsub.s32 4294967266, %v558
    %v564 = vadd.s32 %v563, 127
    %v565 = vshll.u32 %v564, 23
    %v566 = vor.u32 4788187, %v565
    %v567 = vand.u32 2147483647, %v566
    %v569 = vcvt.s32.f32 %v562
    %v570 = vmul.f32 %v569, %v567
    %v571 = vxor.u32 %v570, 2147483648
    %v572 = vsel %vm489, %v571, %v570
    %v573 = vsub.s32 4, %v549
    %v574 = vsel %vm489, %v573, %v549
    %v575 = vsel %vm488, %v273, %v572
    %v576 = vsel %vm488, 0, %v574
    %v577 = vcosq.f32.pop %v575
    %v578 = vsinq.f32.pop %v575
    %vm579 = vweird.f32 %v273
    %v580 = vadd.s32 %v576, 3
    %v581 = vand.u32 %v580, 3
    %vm582 = vcmp.lt.s32.totalorder %v581, 2
    %vm583 = vcmp.eq.s32.totalorder %v581, 0
    %v584 = vxor.u32 %v578, 2147483648
    %v585 = vsel %vm583, %v577, %v584
    %vm586 = vcmp.eq.s32.totalorder %v581, 2
    %v587 = vxor.u32 %v577, 2147483648
    %v588 = vsel %vm586, %v587, %v578
    %v589 = vsel %vm582, %v585, %v588
    %v590 = vsel %vm579, nan, %v589
    %v591 = vand.u32 2147483647, %v274
    %vm592 = vcmp.le.f32.partialorder %v591, 0.7853982
    %vm593 = vcmp.lt.s32.totalorder %v274, 0
    %v594 = vand.u32 %v274, 2139095040
    %v595 = vshrl.u32 %v594, 23
    %v596 = vsub.s32 %v595, 127
    %v597 = vand.u32 2147483647, %v274
    %v598 = vand.u32 %v597, 8388607
    %v599 = vor.u32 %v598, 8388608
    %v600 = vsub.s32 0, %v599
    %v601 = vadd.s32 %v596, 1
    %vm602 = vcmp.gt.s32.totalorder %v601, 0
    %v603 = vsel %vm602, %v601, 0
    %v604 = vshrl.u32 %v603, 5
    %v605 = vand.u32 %v603, 31
    %v606 = vsub.s32 32, %v605
    %v607 = vshrl.u32 683565275, %v606
    %v608 = vshll.u32 683565275, %v605
    %v609 = vshrl.u32 2475754826, %v606
    %v610 = vor.u32 %v608, %v609
    %v611 = vshll.u32 2475754826, %v605
    %v612 = vshrl.u32 2131351028, %v606
    %v613 = vor.u32 %v611, %v612
    %v614 = vshll.u32 2131351028, %v605
    %v615 = vshrl.u32 2102212464, %v606
    %v616 = vor.u32 %v614, %v615
    %v617 = vshll.u32 2102212464, %v605
    %v618 = vshrl.u32 920167782, %v606
    %v619 = vor.u32 %v617, %v618
    %v620 = vshll.u32 920167782, %v605
    %v621 = vshrl.u32 1326507024, %v606
    %v622 = vor.u32 %v620, %v621
    %vm623 = vcmp.lt.s32.totalorder %v604, 1
    %vm624 = vcmp.lt.s32.totalorder %v604, 2
    %vm625 = vcmp.lt.s32.totalorder %v604, 3
    %vm626 = vcmp.lt.s32.totalorder %v604, 4
    %v627 = vsel %vm623, %v607, %v610
    %v628 = vsel %vm626, %v616, 2102212464
    %v629 = vsel %vm625, %v613, %v628
    %v630 = vsel %vm624, %v627, %v629
    %v631 = vsel %vm623, %v610, %v613
    %v632 = vsel %vm626, %v619, 920167782
    %v633 = vsel %vm625, %v616, %v632
    %v634 = vsel %vm624, %v631, %v633
    %v635 = vsel %vm623, %v613, %v616
    %v636 = vsel %vm626, %v622, 1326507024
    %v637 = vsel %vm625, %v619, %v636
    %v638 = vsel %vm624, %v635, %v637
    %v639 = vshll.u32 %v599, 8
    %v640 = vmul.u32.u64.compose %v639, %v638
    %v641 = vextract.low.u32 %v640
    %v642 = vextract.high.u32 %v640
    %v643 = vmul.u32.u64.compose %v639, %v634
    %v644 = vextract.low.u32 %v643
    %v645 = vextract.high.u32 %v643
    %v646 = vmul.u32 %v639, %v630
    %v647 = vadd.s32 %v642, %v644
    %vm648 = vc.u32 %v642, %v644
    %v649 = vadd.s32 %v645, 1
    %v650 = vsel %vm648, %v649, %v645
    %v651 = vadd.s32 %v646, %v650
    %v652 = vadd.s32 %v651, 536870912
    %v653 = vshrl.u32 %v652, 30
    %v654 = vshll.u32 %v653, 30
    %v655 = vsub.s32 %v651, %v654
    %vm656 = vcmp.lt.s32.totalorder %v655, 0
    %v657 = vsub.s32 0, %v655
    %v658 = vsel %vm656, %v657, %v655
    %v659 = vclz %v658
    %v660 = vsub.s32 %v659, 2
    %vm661 = vcmp.gt.s32.totalorder 0, %v660
    %v662 = vsel %vm661, 0, %v660
    %v663 = vsub.s32 32, %v662
    %v664 = vshll.u32 %v655, %v662
    %v665 = vshrl.u32 %v647, %v663
    %v666 = vor.u32 %v664, %v665
    %v667 = vsub.s32 4294967266, %v662
    %v668 = vadd.s32 %v667, 127
    %v669 = vshll.u32 %v668, 23
    %v670 = vor.u32 4788187, %v669
    %v671 = vand.u32 2147483647, %v670
    %v673 = vcvt.s32.f32 %v666
    %v674 = vmul.f32 %v673, %v671
    %v675 = vxor.u32 %v674, 2147483648
    %v676 = vsel %vm593, %v675, %v674
    %v677 = vsub.s32 4, %v653
    %v678 = vsel %vm593, %v677, %v653
    %v679 = vsel %vm592, %v274, %v676
    %v680 = vsel %vm592, 0, %v678
    %v681 = vcosq.f32.pop %v679
    %v682 = vsinq.f32.pop %v679
    %vm683 = vweird.f32 %v274
    %v684 = vadd.s32 %v680, 3
    %v685 = vand.u32 %v684, 3
    %vm686 = vcmp.lt.s32.totalorder %v685, 2
    %vm687 = vcmp.eq.s32.totalorder %v685, 0
    %v688 = vxor.u32 %v682, 2147483648
    %v689 = vsel %vm687, %v681, %v688
    %vm690 = vcmp.eq.s32.totalorder %v685, 2
    %v691 = vxor.u32 %v681, 2147483648
    %v692 = vsel %vm690, %v691, %v682
    %v693 = vsel %vm686, %v689, %v692
    %v694 = vsel %vm683, nan, %v693
    %v695 = vand.u32 2147483647, %v275
    %vm696 = vcmp.le.f32.partialorder %v695, 0.7853982
    %vm697 = vcmp.lt.s32.totalorder %v275, 0
    %v698 = vand.u32 %v275, 2139095040
    %v699 = vshrl.u32 %v698, 23
    %v700 = vsub.s32 %v699, 127
    %v701 = vand.u32 2147483647, %v275
    %v702 = vand.u32 %v701, 8388607
    %v703 = vor.u32 %v702, 8388608
    %v704 = vsub.s32 0, %v703
    %v705 = vadd.s32 %v700, 1
    %vm706 = vcmp.gt.s32.totalorder %v705, 0
    %v707 = vsel %vm706, %v705, 0
    %v708 = vshrl.u32 %v707, 5
    %v709 = vand.u32 %v707, 31
    %v710 = vsub.s32 32, %v709
    %v711 = vshrl.u32 683565275, %v710
    %v712 = vshll.u32 683565275, %v709
    %v713 = vshrl.u32 2475754826, %v710
    %v714 = vor.u32 %v712, %v713
    %v715 = vshll.u32 2475754826, %v709
    %v716 = vshrl.u32 2131351028, %v710
    %v717 = vor.u32 %v715, %v716
    %v718 = vshll.u32 2131351028, %v709
    %v719 = vshrl.u32 2102212464, %v710
    %v720 = vor.u32 %v718, %v719
    %v721 = vshll.u32 2102212464, %v709
    %v722 = vshrl.u32 920167782, %v710
    %v723 = vor.u32 %v721, %v722
    %v724 = vshll.u32 920167782, %v709
    %v725 = vshrl.u32 1326507024, %v710
    %v726 = vor.u32 %v724, %v725
    %vm727 = vcmp.lt.s32.totalorder %v708, 1
    %vm728 = vcmp.lt.s32.totalorder %v708, 2
    %vm729 = vcmp.lt.s32.totalorder %v708, 3
    %vm730 = vcmp.lt.s32.totalorder %v708, 4
    %v731 = vsel %vm727, %v711, %v714
    %v732 = vsel %vm730, %v720, 2102212464
    %v733 = vsel %vm729, %v717, %v732
    %v734 = vsel %vm728, %v731, %v733
    %v735 = vsel %vm727, %v714, %v717
    %v736 = vsel %vm730, %v723, 920167782
    %v737 = vsel %vm729, %v720, %v736
    %v738 = vsel %vm728, %v735, %v737
    %v739 = vsel %vm727, %v717, %v720
    %v740 = vsel %vm730, %v726, 1326507024
    %v741 = vsel %vm729, %v723, %v740
    %v742 = vsel %vm728, %v739, %v741
    %v743 = vshll.u32 %v703, 8
    %v744 = vmul.u32.u64.compose %v743, %v742
    %v745 = vextract.low.u32 %v744
    %v746 = vextract.high.u32 %v744
    %v747 = vmul.u32.u64.compose %v743, %v738
    %v748 = vextract.low.u32 %v747
    %v749 = vextract.high.u32 %v747
    %v750 = vmul.u32 %v743, %v734
    %v751 = vadd.s32 %v746, %v748
    %vm752 = vc.u32 %v746, %v748
    %v753 = vadd.s32 %v749, 1
    %v754 = vsel %vm752, %v753, %v749
    %v755 = vadd.s32 %v750, %v754
    %v756 = vadd.s32 %v755, 536870912
    %v757 = vshrl.u32 %v756, 30
    %v758 = vshll.u32 %v757, 30
    %v759 = vsub.s32 %v755, %v758
    %vm760 = vcmp.lt.s32.totalorder %v759, 0
    %v761 = vsub.s32 0, %v759
    %v762 = vsel %vm760, %v761, %v759
    %v763 = vclz %v762
    %v764 = vsub.s32 %v763, 2
    %vm765 = vcmp.gt.s32.totalorder 0, %v764
    %v766 = vsel %vm765, 0, %v764
    %v767 = vsub.s32 32, %v766
    %v768 = vshll.u32 %v759, %v766
    %v769 = vshrl.u32 %v751, %v767
    %v770 = vor.u32 %v768, %v769
    %v771 = vsub.s32 4294967266, %v766
    %v772 = vadd.s32 %v771, 127
    %v773 = vshll.u32 %v772, 23
    %v774 = vor.u32 4788187, %v773
    %v775 = vand.u32 2147483647, %v774
    %v777 = vcvt.s32.f32 %v770
    %v778 = vmul.f32 %v777, %v775
    %v779 = vxor.u32 %v778, 2147483648
    %v780 = vsel %vm697, %v779, %v778
    %v781 = vsub.s32 4, %v757
    %v782 = vsel %vm697, %v781, %v757
    %v783 = vsel %vm696, %v275, %v780
    %v784 = vsel %vm696, 0, %v782
    %v785 = vcosq.f32.pop %v783
    %v786 = vsinq.f32.pop %v783
    %vm787 = vweird.f32 %v275
    %v788 = vadd.s32 %v784, 3
    %v789 = vand.u32 %v788, 3
    %vm790 = vcmp.lt.s32.totalorder %v789, 2
    %vm791 = vcmp.eq.s32.totalorder %v789, 0
    %v792 = vxor.u32 %v786, 2147483648
    %v793 = vsel %vm791, %v785, %v792
    %vm794 = vcmp.eq.s32.totalorder %v789, 2
    %v795 = vxor.u32 %v785, 2147483648
    %v796 = vsel %vm794, %v795, %v786
    %v797 = vsel %vm790, %v793, %v796
    %v798 = vsel %vm787, nan, %v797
    %v799 = vand.u32 2147483647, %v276
    %vm800 = vcmp.le.f32.partialorder %v799, 0.7853982
    %vm801 = vcmp.lt.s32.totalorder %v276, 0
    %v802 = vand.u32 %v276, 2139095040
    %v803 = vshrl.u32 %v802, 23
    %v804 = vsub.s32 %v803, 127
    %v805 = vand.u32 2147483647, %v276
    %v806 = vand.u32 %v805, 8388607
    %v807 = vor.u32 %v806, 8388608
    %v808 = vsub.s32 0, %v807
    %v809 = vadd.s32 %v804, 1
    %vm810 = vcmp.gt.s32.totalorder %v809, 0
    %v811 = vsel %vm810, %v809, 0
    %v812 = vshrl.u32 %v811, 5
    %v813 = vand.u32 %v811, 31
    %v814 = vsub.s32 32, %v813
    %v815 = vshrl.u32 683565275, %v814
    %v816 = vshll.u32 683565275, %v813
    %v817 = vshrl.u32 2475754826, %v814
    %v818 = vor.u32 %v816, %v817
    %v819 = vshll.u32 2475754826, %v813
    %v820 = vshrl.u32 2131351028, %v814
    %v821 = vor.u32 %v819, %v820
    %v822 = vshll.u32 2131351028, %v813
    %v823 = vshrl.u32 2102212464, %v814
    %v824 = vor.u32 %v822, %v823
    %v825 = vshll.u32 2102212464, %v813
    %v826 = vshrl.u32 920167782, %v814
    %v827 = vor.u32 %v825, %v826
    %v828 = vshll.u32 920167782, %v813
    %v829 = vshrl.u32 1326507024, %v814
    %v830 = vor.u32 %v828, %v829
    %vm831 = vcmp.lt.s32.totalorder %v812, 1
    %vm832 = vcmp.lt.s32.totalorder %v812, 2
    %vm833 = vcmp.lt.s32.totalorder %v812, 3
    %vm834 = vcmp.lt.s32.totalorder %v812, 4
    %v835 = vsel %vm831, %v815, %v818
    %v836 = vsel %vm834, %v824, 2102212464
    %v837 = vsel %vm833, %v821, %v836
    %v838 = vsel %vm832, %v835, %v837
    %v839 = vsel %vm831, %v818, %v821
    %v840 = vsel %vm834, %v827, 920167782
    %v841 = vsel %vm833, %v824, %v840
    %v842 = vsel %vm832, %v839, %v841
    %v843 = vsel %vm831, %v821, %v824
    %v844 = vsel %vm834, %v830, 1326507024
    %v845 = vsel %vm833, %v827, %v844
    %v846 = vsel %vm832, %v843, %v845
    %v847 = vshll.u32 %v807, 8
    %v848 = vmul.u32.u64.compose %v847, %v846
    %v849 = vextract.low.u32 %v848
    %v850 = vextract.high.u32 %v848
    %v851 = vmul.u32.u64.compose %v847, %v842
    %v852 = vextract.low.u32 %v851
    %v853 = vextract.high.u32 %v851
    %v854 = vmul.u32 %v847, %v838
    %v855 = vadd.s32 %v850, %v852
    %vm856 = vc.u32 %v850, %v852
    %v857 = vadd.s32 %v853, 1
    %v858 = vsel %vm856, %v857, %v853
    %v859 = vadd.s32 %v854, %v858
    %v860 = vadd.s32 %v859, 536870912
    %v861 = vshrl.u32 %v860, 30
    %v862 = vshll.u32 %v861, 30
    %v863 = vsub.s32 %v859, %v862
    %vm864 = vcmp.lt.s32.totalorder %v863, 0
    %v865 = vsub.s32 0, %v863
    %v866 = vsel %vm864, %v865, %v863
    %v867 = vclz %v866
    %v868 = vsub.s32 %v867, 2
    %vm869 = vcmp.gt.s32.totalorder 0, %v868
    %v870 = vsel %vm869, 0, %v868
    %v871 = vsub.s32 32, %v870
    %v872 = vshll.u32 %v863, %v870
    %v873 = vshrl.u32 %v855, %v871
    %v874 = vor.u32 %v872, %v873
    %v875 = vsub.s32 4294967266, %v870
    %v876 = vadd.s32 %v875, 127
    %v877 = vshll.u32 %v876, 23
    %v878 = vor.u32 4788187, %v877
    %v879 = vand.u32 2147483647, %v878
    %v881 = vcvt.s32.f32 %v874
    %v882 = vmul.f32 %v881, %v879
    %v883 = vxor.u32 %v882, 2147483648
    %v884 = vsel %vm801, %v883, %v882
    %v885 = vsub.s32 4, %v861
    %v886 = vsel %vm801, %v885, %v861
    %v887 = vsel %vm800, %v276, %v884
    %v888 = vsel %vm800, 0, %v886
    %v889 = vcosq.f32.pop %v887
    %v890 = vsinq.f32.pop %v887
    %vm891 = vweird.f32 %v276
    %v892 = vadd.s32 %v888, 3
    %v893 = vand.u32 %v892, 3
    %vm894 = vcmp.lt.s32.totalorder %v893, 2
    %vm895 = vcmp.eq.s32.totalorder %v893, 0
    %v896 = vxor.u32 %v890, 2147483648
    %v897 = vsel %vm895, %v889, %v896
    %vm898 = vcmp.eq.s32.totalorder %v893, 2
    %v899 = vxor.u32 %v889, 2147483648
    %v900 = vsel %vm898, %v899, %v890
    %v901 = vsel %vm894, %v897, %v900
    %v902 = vsel %vm891, nan, %v901
    %v903 = vand.u32 2147483647, %v277
    %vm904 = vcmp.le.f32.partialorder %v903, 0.7853982
    %vm905 = vcmp.lt.s32.totalorder %v277, 0
    %v906 = vand.u32 %v277, 2139095040
    %v907 = vshrl.u32 %v906, 23
    %v908 = vsub.s32 %v907, 127
    %v909 = vand.u32 2147483647, %v277
    %v910 = vand.u32 %v909, 8388607
    %v911 = vor.u32 %v910, 8388608
    %v912 = vsub.s32 0, %v911
    %v913 = vadd.s32 %v908, 1
    %vm914 = vcmp.gt.s32.totalorder %v913, 0
    %v915 = vsel %vm914, %v913, 0
    %v916 = vshrl.u32 %v915, 5
    %v917 = vand.u32 %v915, 31
    %v918 = vsub.s32 32, %v917
    %v919 = vshrl.u32 683565275, %v918
    %v920 = vshll.u32 683565275, %v917
    %v921 = vshrl.u32 2475754826, %v918
    %v922 = vor.u32 %v920, %v921
    %v923 = vshll.u32 2475754826, %v917
    %v924 = vshrl.u32 2131351028, %v918
    %v925 = vor.u32 %v923, %v924
    %v926 = vshll.u32 2131351028, %v917
    %v927 = vshrl.u32 2102212464, %v918
    %v928 = vor.u32 %v926, %v927
    %v929 = vshll.u32 2102212464, %v917
    %v930 = vshrl.u32 920167782, %v918
    %v931 = vor.u32 %v929, %v930
    %v932 = vshll.u32 920167782, %v917
    %v933 = vshrl.u32 1326507024, %v918
    %v934 = vor.u32 %v932, %v933
    %vm935 = vcmp.lt.s32.totalorder %v916, 1
    %vm936 = vcmp.lt.s32.totalorder %v916, 2
    %vm937 = vcmp.lt.s32.totalorder %v916, 3
    %vm938 = vcmp.lt.s32.totalorder %v916, 4
    %v939 = vsel %vm935, %v919, %v922
    %v940 = vsel %vm938, %v928, 2102212464
    %v941 = vsel %vm937, %v925, %v940
    %v942 = vsel %vm936, %v939, %v941
    %v943 = vsel %vm935, %v922, %v925
    %v944 = vsel %vm938, %v931, 920167782
    %v945 = vsel %vm937, %v928, %v944
    %v946 = vsel %vm936, %v943, %v945
    %v947 = vsel %vm935, %v925, %v928
    %v948 = vsel %vm938, %v934, 1326507024
    %v949 = vsel %vm937, %v931, %v948
    %v950 = vsel %vm936, %v947, %v949
    %v951 = vshll.u32 %v911, 8
    %v952 = vmul.u32.u64.compose %v951, %v950
    %v953 = vextract.low.u32 %v952
    %v954 = vextract.high.u32 %v952
    %v955 = vmul.u32.u64.compose %v951, %v946
    %v956 = vextract.low.u32 %v955
    %v957 = vextract.high.u32 %v955
    %v958 = vmul.u32 %v951, %v942
    %v959 = vadd.s32 %v954, %v956
    %vm960 = vc.u32 %v954, %v956
    %v961 = vadd.s32 %v957, 1
    %v962 = vsel %vm960, %v961, %v957
    %v963 = vadd.s32 %v958, %v962
    %v964 = vadd.s32 %v963, 536870912
    %v965 = vshrl.u32 %v964, 30
    %v966 = vshll.u32 %v965, 30
    %v967 = vsub.s32 %v963, %v966
    %vm968 = vcmp.lt.s32.totalorder %v967, 0
    %v969 = vsub.s32 0, %v967
    %v970 = vsel %vm968, %v969, %v967
    %v971 = vclz %v970
    %v972 = vsub.s32 %v971, 2
    %vm973 = vcmp.gt.s32.totalorder 0, %v972
    %v974 = vsel %vm973, 0, %v972
    %v975 = vsub.s32 32, %v974
    %v976 = vshll.u32 %v967, %v974
    %v977 = vshrl.u32 %v959, %v975
    %v978 = vor.u32 %v976, %v977
    %v979 = vsub.s32 4294967266, %v974
    %v980 = vadd.s32 %v979, 127
    %v981 = vshll.u32 %v980, 23
    %v982 = vor.u32 4788187, %v981
    %v983 = vand.u32 2147483647, %v982
    %v985 = vcvt.s32.f32 %v978
    %v986 = vmul.f32 %v985, %v983
    %v987 = vxor.u32 %v986, 2147483648
    %v988 = vsel %vm905, %v987, %v986
    %v989 = vsub.s32 4, %v965
    %v990 = vsel %vm905, %v989, %v965
    %v991 = vsel %vm904, %v277, %v988
    %v992 = vsel %vm904, 0, %v990
    %v993 = vcosq.f32.pop %v991
    %v994 = vsinq.f32.pop %v991
    %vm995 = vweird.f32 %v277
    %v996 = vadd.s32 %v992, 3
    %v997 = vand.u32 %v996, 3
    %vm998 = vcmp.lt.s32.totalorder %v997, 2
    %vm999 = vcmp.eq.s32.totalorder %v997, 0
    %v1000 = vxor.u32 %v994, 2147483648
    %v1001 = vsel %vm999, %v993, %v1000
    %vm1002 = vcmp.eq.s32.totalorder %v997, 2
    %v1003 = vxor.u32 %v993, 2147483648
    %v1004 = vsel %vm1002, %v1003, %v994
    %v1005 = vsel %vm998, %v1001, %v1004
    %v1006 = vsel %vm995, nan, %v1005
    %v1007 = vand.u32 2147483647, %v278
    %vm1008 = vcmp.le.f32.partialorder %v1007, 0.7853982
    %vm1009 = vcmp.lt.s32.totalorder %v278, 0
    %v1010 = vand.u32 %v278, 2139095040
    %v1011 = vshrl.u32 %v1010, 23
    %v1012 = vsub.s32 %v1011, 127
    %v1013 = vand.u32 2147483647, %v278
    %v1014 = vand.u32 %v1013, 8388607
    %v1015 = vor.u32 %v1014, 8388608
    %v1016 = vsub.s32 0, %v1015
    %v1017 = vadd.s32 %v1012, 1
    %vm1018 = vcmp.gt.s32.totalorder %v1017, 0
    %v1019 = vsel %vm1018, %v1017, 0
    %v1020 = vshrl.u32 %v1019, 5
    %v1021 = vand.u32 %v1019, 31
    %v1022 = vsub.s32 32, %v1021
    %v1023 = vshrl.u32 683565275, %v1022
    %v1024 = vshll.u32 683565275, %v1021
    %v1025 = vshrl.u32 2475754826, %v1022
    %v1026 = vor.u32 %v1024, %v1025
    %v1027 = vshll.u32 2475754826, %v1021
    %v1028 = vshrl.u32 2131351028, %v1022
    %v1029 = vor.u32 %v1027, %v1028
    %v1030 = vshll.u32 2131351028, %v1021
    %v1031 = vshrl.u32 2102212464, %v1022
    %v1032 = vor.u32 %v1030, %v1031
    %v1033 = vshll.u32 2102212464, %v1021
    %v1034 = vshrl.u32 920167782, %v1022
    %v1035 = vor.u32 %v1033, %v1034
    %v1036 = vshll.u32 920167782, %v1021
    %v1037 = vshrl.u32 1326507024, %v1022
    %v1038 = vor.u32 %v1036, %v1037
    %vm1039 = vcmp.lt.s32.totalorder %v1020, 1
    %vm1040 = vcmp.lt.s32.totalorder %v1020, 2
    %vm1041 = vcmp.lt.s32.totalorder %v1020, 3
    %vm1042 = vcmp.lt.s32.totalorder %v1020, 4
    %v1043 = vsel %vm1039, %v1023, %v1026
    %v1044 = vsel %vm1042, %v1032, 2102212464
    %v1045 = vsel %vm1041, %v1029, %v1044
    %v1046 = vsel %vm1040, %v1043, %v1045
    %v1047 = vsel %vm1039, %v1026, %v1029
    %v1048 = vsel %vm1042, %v1035, 920167782
    %v1049 = vsel %vm1041, %v1032, %v1048
    %v1050 = vsel %vm1040, %v1047, %v1049
    %v1051 = vsel %vm1039, %v1029, %v1032
    %v1052 = vsel %vm1042, %v1038, 1326507024
    %v1053 = vsel %vm1041, %v1035, %v1052
    %v1054 = vsel %vm1040, %v1051, %v1053
    %v1055 = vshll.u32 %v1015, 8
    %v1056 = vmul.u32.u64.compose %v1055, %v1054
    %v1057 = vextract.low.u32 %v1056
    %v1058 = vextract.high.u32 %v1056
    %v1059 = vmul.u32.u64.compose %v1055, %v1050
    %v1060 = vextract.low.u32 %v1059
    %v1061 = vextract.high.u32 %v1059
    %v1062 = vmul.u32 %v1055, %v1046
    %v1063 = vadd.s32 %v1058, %v1060
    %vm1064 = vc.u32 %v1058, %v1060
    %v1065 = vadd.s32 %v1061, 1
    %v1066 = vsel %vm1064, %v1065, %v1061
    %v1067 = vadd.s32 %v1062, %v1066
    %v1068 = vadd.s32 %v1067, 536870912
    %v1069 = vshrl.u32 %v1068, 30
    %v1070 = vshll.u32 %v1069, 30
    %v1071 = vsub.s32 %v1067, %v1070
    %vm1072 = vcmp.lt.s32.totalorder %v1071, 0
    %v1073 = vsub.s32 0, %v1071
    %v1074 = vsel %vm1072, %v1073, %v1071
    %v1075 = vclz %v1074
    %v1076 = vsub.s32 %v1075, 2
    %vm1077 = vcmp.gt.s32.totalorder 0, %v1076
    %v1078 = vsel %vm1077, 0, %v1076
    %v1079 = vsub.s32 32, %v1078
    %v1080 = vshll.u32 %v1071, %v1078
    %v1081 = vshrl.u32 %v1063, %v1079
    %v1082 = vor.u32 %v1080, %v1081
    %v1083 = vsub.s32 4294967266, %v1078
    %v1084 = vadd.s32 %v1083, 127
    %v1085 = vshll.u32 %v1084, 23
    %v1086 = vor.u32 4788187, %v1085
    %v1087 = vand.u32 2147483647, %v1086
    %v1089 = vcvt.s32.f32 %v1082
    %v1090 = vmul.f32 %v1089, %v1087
    %v1091 = vxor.u32 %v1090, 2147483648
    %v1092 = vsel %vm1009, %v1091, %v1090
    %v1093 = vsub.s32 4, %v1069
    %v1094 = vsel %vm1009, %v1093, %v1069
    %v1095 = vsel %vm1008, %v278, %v1092
    %v1096 = vsel %vm1008, 0, %v1094
    %v1097 = vcosq.f32.pop %v1095
    %v1098 = vsinq.f32.pop %v1095
    %vm1099 = vweird.f32 %v278
    %v1100 = vadd.s32 %v1096, 3
    %v1101 = vand.u32 %v1100, 3
    %vm1102 = vcmp.lt.s32.totalorder %v1101, 2
    %vm1103 = vcmp.eq.s32.totalorder %v1101, 0
    %v1104 = vxor.u32 %v1098, 2147483648
    %v1105 = vsel %vm1103, %v1097, %v1104
    %vm1106 = vcmp.eq.s32.totalorder %v1101, 2
    %v1107 = vxor.u32 %v1097, 2147483648
    %v1108 = vsel %vm1106, %v1107, %v1098
    %v1109 = vsel %vm1102, %v1105, %v1108
    %v1110 = vsel %vm1099, nan, %v1109
    %v1111 = vld [vmem:[%s4] sm:$0xff]
    %v1112 = vld [vmem:[%s5] sm:$0x1]
    %v1114 = vlaneseq
    %v1115 = vshrl.u32 %v1114, 7
    %v1116 = vsub.s32 0, %v1115
    %v1117 = vrot.slane %v1112, %v1116
    %v1120 = vsel %vm93, %v77, 0
    %v1123 = vsel %vm93, %v78, 0
    %v1126 = vsel %vm93, %v79, 0
    %v1129 = vsel %vm93, %v80, 0
    %v1132 = vsel %vm93, %v81, 0
    %v1135 = vsel %vm93, %v82, 0
    %v1138 = vsel %vm93, %v83, 0
    %v1141 = vsel %vm93, %v84, 0
    %1143 = vmatprep.subr.mxu0 0.0
    %1144 = vmatpush1.msra.mxu0 %v1111
    %1145 = vmatprep.subr.mxu0 0.0
    %1146 = vmatpush1.msra.mxu0 0.0
    %1147 = vmatprep.subr.mxu0 0.0
    %1148 = vmatpush1.msra.mxu0 0.0
    %1149 = vmatprep.subr.mxu0 0.0
    %1150 = vmatpush1.msra.mxu0 0.0
    %1151 = vmatprep.subr.mxu0 0.0
    %1152 = vmatpush1.msra.mxu0 0.0
    %1153 = vmatprep.subr.mxu0 0.0
    %1154 = vmatpush1.msra.mxu0 0.0
    %1155 = vmatprep.subr.mxu0 0.0
    %1156 = vmatpush1.msra.mxu0 0.0
    %1157 = vmatprep.subr.mxu0 0.0
    %1158 = vmatpush1.msra.mxu0 0.0
    %1159 = vmatprep.subr.mxu0 0.0
    %1160 = vmatpush1.msra.mxu0 0.0
    %1161 = vmatprep.subr.mxu0 0.0
    %1162 = vmatpush1.msra.mxu0 0.0
    %1163 = vmatprep.subr.mxu0 0.0
    %1164 = vmatpush1.msra.mxu0 0.0
    %1165 = vmatprep.subr.mxu0 0.0
    %1166 = vmatpush1.msra.mxu0 0.0
    %1167 = vmatprep.subr.mxu0 0.0
    %1168 = vmatpush1.msra.mxu0 0.0
    %1169 = vmatprep.subr.mxu0 0.0
    %1170 = vmatpush1.msra.mxu0 0.0
    %1171 = vmatprep.subr.mxu0 0.0
    %1172 = vmatpush1.msra.mxu0 0.0
    %1173 = vmatprep.subr.mxu0 0.0
    %1174 = vmatpush1.msra.mxu0 0.0
    %1175 = vmatprep.subr.mxu0 0.0
    %1176 = vmatpush1.msra.mxu0 0.0
    %1177 = vmatprep.subr.mxu0 0.0
    %1178 = vmatpush1.msra.mxu0 0.0
    %1179 = vmatprep.subr.mxu0 0.0
    %1180 = vmatpush1.msra.mxu0 0.0
    %1181 = vmatprep.subr.mxu0 0.0
    %1182 = vmatpush1.msra.mxu0 0.0
    %1183 = vmatprep.subr.mxu0 0.0
    %1184 = vmatpush1.msra.mxu0 0.0
    %1185 = vmatprep.subr.mxu0 0.0
    %1186 = vmatpush1.msra.mxu0 0.0
    %1187 = vmatprep.subr.mxu0 0.0
    %1188 = vmatpush1.msra.mxu0 0.0
    %1189 = vmatprep.subr.mxu0 0.0
    %1190 = vmatpush1.msra.mxu0 0.0
    %1191 = vmatprep.subr.mxu0 0.0
    %1192 = vmatpush1.msra.mxu0 0.0
    %1193 = vmatprep.subr.mxu0 0.0
    %1194 = vmatpush1.msra.mxu0 0.0
    %1195 = vmatprep.subr.mxu0 0.0
    %1196 = vmatpush1.msra.mxu0 0.0
    %1197 = vmatprep.subr.mxu0 0.0
    %1198 = vmatpush1.msra.mxu0 0.0
    %1199 = vmatprep.subr.mxu0 0.0
    %1200 = vmatpush1.msra.mxu0 0.0
    %1201 = vmatprep.subr.mxu0 0.0
    %1202 = vmatpush1.msra.mxu0 0.0
    %1203 = vmatprep.subr.mxu0 0.0
    %1204 = vmatpush1.msra.mxu0 0.0
    %1205 = vmatprep.subr.mxu0 0.0
    %1206 = vmatpush1.msra.mxu0 0.0
    %1207 = vmatprep.mubr.f32.mxu0 0.0
    %1208 = vmatmul.mubr.f32.gmra.mrb[0].mxu0 %v1120
    %v1209 = vpop.f32.mrb[0].mxu0
    %v1210 = vadd.f32 %v1117, %v1209
    %v1211 = vpop.f32.mrb[0].mxu0
    %1212 = vmatprep.mubr.f32.mxu0 0.0
    %1213 = vmatmul.mubr.f32.gmra.mrb[0].mxu0 %v1123
    %v1214 = vpop.f32.mrb[0].mxu0
    %v1215 = vadd.f32 %v1117, %v1214
    %v1216 = vpop.f32.mrb[0].mxu0
    %1217 = vmatprep.mubr.f32.mxu0 0.0
    %1218 = vmatmul.mubr.f32.gmra.mrb[0].mxu0 %v1126
    %v1219 = vpop.f32.mrb[0].mxu0
    %v1220 = vadd.f32 %v1117, %v1219
    %v1221 = vpop.f32.mrb[0].mxu0
    %1222 = vmatprep.mubr.f32.mxu0 0.0
    %1223 = vmatmul.mubr.f32.gmra.mrb[0].mxu0 %v1129
    %v1224 = vpop.f32.mrb[0].mxu0
    %v1225 = vadd.f32 %v1117, %v1224
    %v1226 = vpop.f32.mrb[0].mxu0
    %1227 = vmatprep.mubr.f32.mxu0 0.0
    %1228 = vmatmul.mubr.f32.gmra.mrb[0].mxu0 %v1132
    %v1229 = vpop.f32.mrb[0].mxu0
    %v1230 = vadd.f32 %v1117, %v1229
    %v1231 = vpop.f32.mrb[0].mxu0
    %1232 = vmatprep.mubr.f32.mxu0 0.0
    %1233 = vmatmul.mubr.f32.gmra.mrb[0].mxu0 %v1135
    %v1234 = vpop.f32.mrb[0].mxu0
    %v1235 = vadd.f32 %v1117, %v1234
    %v1236 = vpop.f32.mrb[0].mxu0
    %1237 = vmatprep.mubr.f32.mxu0 0.0
    %1238 = vmatmul.mubr.f32.gmra.mrb[0].mxu0 %v1138
    %v1239 = vpop.f32.mrb[0].mxu0
    %v1240 = vadd.f32 %v1117, %v1239
    %v1241 = vpop.f32.mrb[0].mxu0
    %1242 = vmatprep.mubr.f32.mxu0 0.0
    %1243 = vmatmul.mubr.f32.gmra.mrb[0].mxu0 %v1141
    %v1244 = vpop.f32.mrb[0].mxu0
    %v1245 = vadd.f32 %v1117, %v1244
    %v1246 = vpop.f32.mrb[0].mxu0
    %1247 = vdwg.mxu0
    %v1248 = vxor.u32 %v1210, 2147483648
    %v1249 = vxor.u32 %v1215, 2147483648
    %v1250 = vxor.u32 %v1220, 2147483648
    %v1251 = vxor.u32 %v1225, 2147483648
    %v1252 = vxor.u32 %v1230, 2147483648
    %v1253 = vxor.u32 %v1235, 2147483648
    %v1254 = vxor.u32 %v1240, 2147483648
    %v1255 = vxor.u32 %v1245, 2147483648
    %v1256 = vmul.f32 %v1248, 1.442695
    %v1257 = vpow.pop %v1256
    %v1258 = vmul.f32 %v1249, 1.442695
    %v1259 = vpow.pop %v1258
    %v1260 = vmul.f32 %v1250, 1.442695
    %v1261 = vpow.pop %v1260
    %v1262 = vmul.f32 %v1251, 1.442695
    %v1263 = vpow.pop %v1262
    %v1264 = vmul.f32 %v1252, 1.442695
    %v1265 = vpow.pop %v1264
    %v1266 = vmul.f32 %v1253, 1.442695
    %v1267 = vpow.pop %v1266
    %v1268 = vmul.f32 %v1254, 1.442695
    %v1269 = vpow.pop %v1268
    %v1270 = vmul.f32 %v1255, 1.442695
    %v1271 = vpow.pop %v1270
    %v1272 = vadd.f32 %v1257, 1.0
    %v1273 = vadd.f32 %v1259, 1.0
    %v1274 = vadd.f32 %v1261, 1.0
    %v1275 = vadd.f32 %v1263, 1.0
    %v1276 = vadd.f32 %v1265, 1.0
    %v1277 = vadd.f32 %v1267, 1.0
    %v1278 = vadd.f32 %v1269, 1.0
    %v1279 = vadd.f32 %v1271, 1.0
    %v1280 = vrcp.pop %v1272
    %v1281 = vmul.f32 1.0, %v1280
    %v1282 = vrcp.pop %v1273
    %v1283 = vmul.f32 1.0, %v1282
    %v1284 = vrcp.pop %v1274
    %v1285 = vmul.f32 1.0, %v1284
    %v1286 = vrcp.pop %v1275
    %v1287 = vmul.f32 1.0, %v1286
    %v1288 = vrcp.pop %v1276
    %v1289 = vmul.f32 1.0, %v1288
    %v1290 = vrcp.pop %v1277
    %v1291 = vmul.f32 1.0, %v1290
    %v1292 = vrcp.pop %v1278
    %v1293 = vmul.f32 1.0, %v1292
    %v1294 = vrcp.pop %v1279
    %v1295 = vmul.f32 1.0, %v1294
    %v1296 = vmul.f32 %v1210, %v1281
    %v1297 = vmul.f32 %v1215, %v1283
    %v1298 = vmul.f32 %v1220, %v1285
    %v1299 = vmul.f32 %v1225, %v1287
    %v1300 = vmul.f32 %v1230, %v1289
    %v1301 = vmul.f32 %v1235, %v1291
    %v1302 = vmul.f32 %v1240, %v1293
    %v1303 = vmul.f32 %v1245, %v1295
    %v1304 = vld [vmem:[#allocation6] sm:$0xff]
    %v1305 = vld [vmem:[#allocation6 + $0x8] sm:$0xff]
    %v1306 = vld [vmem:[#allocation6 + $0x10] sm:$0xff]
    %v1307 = vld [vmem:[#allocation6 + $0x18] sm:$0xff]
    %v1308 = vld [vmem:[#allocation6 + $0x20] sm:$0xff]
    %v1309 = vld [vmem:[#allocation6 + $0x28] sm:$0xff]
    %v1310 = vld [vmem:[#allocation6 + $0x30] sm:$0xff]
    %v1311 = vld [vmem:[#allocation6 + $0x38] sm:$0xff]
    %v1312 = vld [vmem:[#allocation6 + $0x40] sm:$0xff]
    %v1313 = vld [vmem:[#allocation6 + $0x48] sm:$0xff]
    %v1314 = vld [vmem:[#allocation6 + $0x50] sm:$0xff]
    %v1315 = vld [vmem:[#allocation6 + $0x58] sm:$0xff]
    %v1316 = vld [vmem:[#allocation6 + $0x60] sm:$0xff]
    %v1317 = vld [vmem:[#allocation6 + $0x68] sm:$0xff]
    %v1318 = vld [vmem:[#allocation6 + $0x70] sm:$0xff]
    %v1319 = vld [vmem:[#allocation6 + $0x78] sm:$0xff]
    %v1320 = vld [vmem:[%s9] sm:$0x1]
    %v1322 = vlaneseq
    %v1323 = vshrl.u32 %v1322, 7
    %v1324 = vsub.s32 0, %v1323
    %v1325 = vrot.slane %v1320, %v1324
    %1327 = vmatprep.subr.mxu0 0.0
    %1328 = vmatpush1.msra.mxu0 %v1304
    %1329 = vmatprep.subr.mxu0 0.0
    %1330 = vmatpush1.msra.mxu0 %v1305
    %1331 = vmatprep.subr.mxu0 0.0
    %1332 = vmatpush1.msra.mxu0 %v1306
    %1333 = vmatprep.subr.mxu0 0.0
    %1334 = vmatpush1.msra.mxu0 %v1307
    %1335 = vmatprep.subr.mxu0 0.0
    %1336 = vmatpush1.msra.mxu0 %v1308
    %1337 = vmatprep.subr.mxu0 0.0
    %1338 = vmatpush1.msra.mxu0 %v1309
    %1339 = vmatprep.subr.mxu0 0.0
    %1340 = vmatpush1.msra.mxu0 %v1310
    %1341 = vmatprep.subr.mxu0 0.0
    %1342 = vmatpush1.msra.mxu0 %v1311
    %1343 = vmatprep.subr.mxu0 0.0
    %1344 = vmatpush1.msra.mxu0 %v1312
    %1345 = vmatprep.subr.mxu0 0.0
    %1346 = vmatpush1.msra.mxu0 %v1313
    %1347 = vmatprep.subr.mxu0 0.0
    %1348 = vmatpush1.msra.mxu0 %v1314
    %1349 = vmatprep.subr.mxu0 0.0
    %1350 = vmatpush1.msra.mxu0 %v1315
    %1351 = vmatprep.subr.mxu0 0.0
    %1352 = vmatpush1.msra.mxu0 %v1316
    %1353 = vmatprep.subr.mxu0 0.0
    %1354 = vmatpush1.msra.mxu0 %v1317
    %1355 = vmatprep.subr.mxu0 0.0
    %1356 = vmatpush1.msra.mxu0 %v1318
    %1357 = vmatprep.subr.mxu0 0.0
    %1358 = vmatpush1.msra.mxu0 %v1319
    %1359 = vmatprep.subr.mxu0 0.0
    %1360 = vmatpush1.msra.mxu0 0.0
    %1361 = vmatprep.subr.mxu0 0.0
    %1362 = vmatpush1.msra.mxu0 0.0
    %1363 = vmatprep.subr.mxu0 0.0
    %1364 = vmatpush1.msra.mxu0 0.0
    %1365 = vmatprep.subr.mxu0 0.0
    %1366 = vmatpush1.msra.mxu0 0.0
    %1367 = vmatprep.subr.mxu0 0.0
    %1368 = vmatpush1.msra.mxu0 0.0
    %1369 = vmatprep.subr.mxu0 0.0
    %1370 = vmatpush1.msra.mxu0 0.0
    %1371 = vmatprep.subr.mxu0 0.0
    %1372 = vmatpush1.msra.mxu0 0.0
    %1373 = vmatprep.subr.mxu0 0.0
    %1374 = vmatpush1.msra.mxu0 0.0
    %1375 = vmatprep.subr.mxu0 0.0
    %1376 = vmatpush1.msra.mxu0 0.0
    %1377 = vmatprep.subr.mxu0 0.0
    %1378 = vmatpush1.msra.mxu0 0.0
    %1379 = vmatprep.subr.mxu0 0.0
    %1380 = vmatpush1.msra.mxu0 0.0
    %1381 = vmatprep.subr.mxu0 0.0
    %1382 = vmatpush1.msra.mxu0 0.0
    %1383 = vmatprep.subr.mxu0 0.0
    %1384 = vmatpush1.msra.mxu0 0.0
    %1385 = vmatprep.subr.mxu0 0.0
    %1386 = vmatpush1.msra.mxu0 0.0
    %1387 = vmatprep.subr.mxu0 0.0
    %1388 = vmatpush1.msra.mxu0 0.0
    %1389 = vmatprep.subr.mxu0 0.0
    %1390 = vmatpush1.msra.mxu0 0.0
    %1391 = vmatprep.mubr.f32.mxu0 0.0
    %1392 = vmatmul.mubr.f32.gmra.mrb[0].mxu0 %v1296
    %v1393 = vpop.f32.mrb[0].mxu0
    %v1394 = vadd.f32 %v1325, %v1393
    %v1395 = vpop.f32.mrb[0].mxu0
    %1396 = vmatprep.mubr.f32.mxu0 0.0
    %1397 = vmatmul.mubr.f32.gmra.mrb[0].mxu0 %v1297
    %v1398 = vpop.f32.mrb[0].mxu0
    %v1399 = vadd.f32 %v1325, %v1398
    %v1400 = vpop.f32.mrb[0].mxu0
    %1401 = vmatprep.mubr.f32.mxu0 0.0
    %1402 = vmatmul.mubr.f32.gmra.mrb[0].mxu0 %v1298
    %v1403 = vpop.f32.mrb[0].mxu0
    %v1404 = vadd.f32 %v1325, %v1403
    %v1405 = vpop.f32.mrb[0].mxu0
    %1406 = vmatprep.mubr.f32.mxu0 0.0
    %1407 = vmatmul.mubr.f32.gmra.mrb[0].mxu0 %v1299
    %v1408 = vpop.f32.mrb[0].mxu0
    %v1409 = vadd.f32 %v1325, %v1408
    %v1410 = vpop.f32.mrb[0].mxu0
    %1411 = vmatprep.mubr.f32.mxu0 0.0
    %1412 = vmatmul.mubr.f32.gmra.mrb[0].mxu0 %v1300
    %v1413 = vpop.f32.mrb[0].mxu0
    %v1414 = vadd.f32 %v1325, %v1413
    %v1415 = vpop.f32.mrb[0].mxu0
    %1416 = vmatprep.mubr.f32.mxu0 0.0
    %1417 = vmatmul.mubr.f32.gmra.mrb[0].mxu0 %v1301
    %v1418 = vpop.f32.mrb[0].mxu0
    %v1419 = vadd.f32 %v1325, %v1418
    %v1420 = vpop.f32.mrb[0].mxu0
    %1421 = vmatprep.mubr.f32.mxu0 0.0
    %1422 = vmatmul.mubr.f32.gmra.mrb[0].mxu0 %v1302
    %v1423 = vpop.f32.mrb[0].mxu0
    %v1424 = vadd.f32 %v1325, %v1423
    %v1425 = vpop.f32.mrb[0].mxu0
    %1426 = vmatprep.mubr.f32.mxu0 0.0
    %1427 = vmatmul.mubr.f32.gmra.mrb[0].mxu0 %v1303
    %v1428 = vpop.f32.mrb[0].mxu0
    %v1429 = vadd.f32 %v1325, %v1428
    %v1430 = vpop.f32.mrb[0].mxu0
    %1431 = vdwg.mxu0
    %v1432 = vxor.u32 %v1394, 2147483648
    %v1433 = vxor.u32 %v1399, 2147483648
    %v1434 = vxor.u32 %v1404, 2147483648
    %v1435 = vxor.u32 %v1409, 2147483648
    %v1436 = vxor.u32 %v1414, 2147483648
    %v1437 = vxor.u32 %v1419, 2147483648
    %v1438 = vxor.u32 %v1424, 2147483648
    %v1439 = vxor.u32 %v1429, 2147483648
    %v1440 = vmul.f32 %v1432, 1.442695
    %v1441 = vpow.pop %v1440
    %v1442 = vmul.f32 %v1433, 1.442695
    %v1443 = vpow.pop %v1442
    %v1444 = vmul.f32 %v1434, 1.442695
    %v1445 = vpow.pop %v1444
    %v1446 = vmul.f32 %v1435, 1.442695
    %v1447 = vpow.pop %v1446
    %v1448 = vmul.f32 %v1436, 1.442695
    %v1449 = vpow.pop %v1448
    %v1450 = vmul.f32 %v1437, 1.442695
    %v1451 = vpow.pop %v1450
    %v1452 = vmul.f32 %v1438, 1.442695
    %v1453 = vpow.pop %v1452
    %v1454 = vmul.f32 %v1439, 1.442695
    %v1455 = vpow.pop %v1454
    %v1456 = vadd.f32 %v1441, 1.0
    %v1457 = vadd.f32 %v1443, 1.0
    %v1458 = vadd.f32 %v1445, 1.0
    %v1459 = vadd.f32 %v1447, 1.0
    %v1460 = vadd.f32 %v1449, 1.0
    %v1461 = vadd.f32 %v1451, 1.0
    %v1462 = vadd.f32 %v1453, 1.0
    %v1463 = vadd.f32 %v1455, 1.0
    %v1464 = vrcp.pop %v1456
    %v1465 = vmul.f32 1.0, %v1464
    %v1466 = vrcp.pop %v1457
    %v1467 = vmul.f32 1.0, %v1466
    %v1468 = vrcp.pop %v1458
    %v1469 = vmul.f32 1.0, %v1468
    %v1470 = vrcp.pop %v1459
    %v1471 = vmul.f32 1.0, %v1470
    %v1472 = vrcp.pop %v1460
    %v1473 = vmul.f32 1.0, %v1472
    %v1474 = vrcp.pop %v1461
    %v1475 = vmul.f32 1.0, %v1474
    %v1476 = vrcp.pop %v1462
    %v1477 = vmul.f32 1.0, %v1476
    %v1478 = vrcp.pop %v1463
    %v1479 = vmul.f32 1.0, %v1478
    %v1480 = vmul.f32 %v1394, %v1465
    %v1481 = vmul.f32 %v1399, %v1467
    %v1482 = vmul.f32 %v1404, %v1469
    %v1483 = vmul.f32 %v1409, %v1471
    %v1484 = vmul.f32 %v1414, %v1473
    %v1485 = vmul.f32 %v1419, %v1475
    %v1486 = vmul.f32 %v1424, %v1477
    %v1487 = vmul.f32 %v1429, %v1479
    %v1488 = vld [vmem:[#allocation4] sm:$0xff]
    %v1489 = vld [vmem:[#allocation4 + $0x8] sm:$0xff]
    %v1490 = vld [vmem:[#allocation4 + $0x10] sm:$0xff]
    %v1491 = vld [vmem:[#allocation4 + $0x18] sm:$0xff]
    %v1492 = vld [vmem:[#allocation4 + $0x20] sm:$0xff]
    %v1493 = vld [vmem:[#allocation4 + $0x28] sm:$0xff]
    %v1494 = vld [vmem:[#allocation4 + $0x30] sm:$0xff]
    %v1495 = vld [vmem:[#allocation4 + $0x38] sm:$0xff]
    %v1496 = vld [vmem:[#allocation4 + $0x40] sm:$0xff]
    %v1497 = vld [vmem:[#allocation4 + $0x48] sm:$0xff]
    %v1498 = vld [vmem:[#allocation4 + $0x50] sm:$0xff]
    %v1499 = vld [vmem:[#allocation4 + $0x58] sm:$0xff]
    %v1500 = vld [vmem:[#allocation4 + $0x60] sm:$0xff]
    %v1501 = vld [vmem:[#allocation4 + $0x68] sm:$0xff]
    %v1502 = vld [vmem:[#allocation4 + $0x70] sm:$0xff]
    %v1503 = vld [vmem:[#allocation4 + $0x78] sm:$0xff]
    %v1504 = vld [vmem:[%s7] sm:$0x1]
    %v1506 = vlaneseq
    %v1507 = vshrl.u32 %v1506, 7
    %v1508 = vsub.s32 0, %v1507
    %v1509 = vrot.slane %v1504, %v1508
    %1511 = vmatprep.subr.mxu0 0.0
    %1512 = vmatpush1.msra.mxu0 %v1488
    %1513 = vmatprep.subr.mxu0 0.0
    %1514 = vmatpush1.msra.mxu0 %v1489
    %1515 = vmatprep.subr.mxu0 0.0
    %1516 = vmatpush1.msra.mxu0 %v1490
    %1517 = vmatprep.subr.mxu0 0.0
    %1518 = vmatpush1.msra.mxu0 %v1491
    %1519 = vmatprep.subr.mxu0 0.0
    %1520 = vmatpush1.msra.mxu0 %v1492
    %1521 = vmatprep.subr.mxu0 0.0
    %1522 = vmatpush1.msra.mxu0 %v1493
    %1523 = vmatprep.subr.mxu0 0.0
    %1524 = vmatpush1.msra.mxu0 %v1494
    %1525 = vmatprep.subr.mxu0 0.0
    %1526 = vmatpush1.msra.mxu0 %v1495
    %1527 = vmatprep.subr.mxu0 0.0
    %1528 = vmatpush1.msra.mxu0 %v1496
    %1529 = vmatprep.subr.mxu0 0.0
    %1530 = vmatpush1.msra.mxu0 %v1497
    %1531 = vmatprep.subr.mxu0 0.0
    %1532 = vmatpush1.msra.mxu0 %v1498
    %1533 = vmatprep.subr.mxu0 0.0
    %1534 = vmatpush1.msra.mxu0 %v1499
    %1535 = vmatprep.subr.mxu0 0.0
    %1536 = vmatpush1.msra.mxu0 %v1500
    %1537 = vmatprep.subr.mxu0 0.0
    %1538 = vmatpush1.msra.mxu0 %v1501
    %1539 = vmatprep.subr.mxu0 0.0
    %1540 = vmatpush1.msra.mxu0 %v1502
    %1541 = vmatprep.subr.mxu0 0.0
    %1542 = vmatpush1.msra.mxu0 %v1503
    %1543 = vmatprep.subr.mxu0 0.0
    %1544 = vmatpush1.msra.mxu0 0.0
    %1545 = vmatprep.subr.mxu0 0.0
    %1546 = vmatpush1.msra.mxu0 0.0
    %1547 = vmatprep.subr.mxu0 0.0
    %1548 = vmatpush1.msra.mxu0 0.0
    %1549 = vmatprep.subr.mxu0 0.0
    %1550 = vmatpush1.msra.mxu0 0.0
    %1551 = vmatprep.subr.mxu0 0.0
    %1552 = vmatpush1.msra.mxu0 0.0
    %1553 = vmatprep.subr.mxu0 0.0
    %1554 = vmatpush1.msra.mxu0 0.0
    %1555 = vmatprep.subr.mxu0 0.0
    %1556 = vmatpush1.msra.mxu0 0.0
    %1557 = vmatprep.subr.mxu0 0.0
    %1558 = vmatpush1.msra.mxu0 0.0
    %1559 = vmatprep.subr.mxu0 0.0
    %1560 = vmatpush1.msra.mxu0 0.0
    %1561 = vmatprep.subr.mxu0 0.0
    %1562 = vmatpush1.msra.mxu0 0.0
    %1563 = vmatprep.subr.mxu0 0.0
    %1564 = vmatpush1.msra.mxu0 0.0
    %1565 = vmatprep.subr.mxu0 0.0
    %1566 = vmatpush1.msra.mxu0 0.0
    %1567 = vmatprep.subr.mxu0 0.0
    %1568 = vmatpush1.msra.mxu0 0.0
    %1569 = vmatprep.subr.mxu0 0.0
    %1570 = vmatpush1.msra.mxu0 0.0
    %1571 = vmatprep.subr.mxu0 0.0
    %1572 = vmatpush1.msra.mxu0 0.0
    %1573 = vmatprep.subr.mxu0 0.0
    %1574 = vmatpush1.msra.mxu0 0.0
    %1575 = vmatprep.mubr.f32.mxu0 0.0
    %1576 = vmatmul.mubr.f32.gmra.mrb[0].mxu0 %v382
    %v1577 = vpop.f32.mrb[0].mxu0
    %v1578 = vadd.f32 %v1509, %v1577
    %v1579 = vpop.f32.mrb[0].mxu0
    %1580 = vmatprep.mubr.f32.mxu0 0.0
    %1581 = vmatmul.mubr.f32.gmra.mrb[0].mxu0 %v486
    %v1582 = vpop.f32.mrb[0].mxu0
    %v1583 = vadd.f32 %v1509, %v1582
    %v1584 = vpop.f32.mrb[0].mxu0
    %1585 = vmatprep.mubr.f32.mxu0 0.0
    %1586 = vmatmul.mubr.f32.gmra.mrb[0].mxu0 %v590
    %v1587 = vpop.f32.mrb[0].mxu0
    %v1588 = vadd.f32 %v1509, %v1587
    %v1589 = vpop.f32.mrb[0].mxu0
    %1590 = vmatprep.mubr.f32.mxu0 0.0
    %1591 = vmatmul.mubr.f32.gmra.mrb[0].mxu0 %v694
    %v1592 = vpop.f32.mrb[0].mxu0
    %v1593 = vadd.f32 %v1509, %v1592
    %v1594 = vpop.f32.mrb[0].mxu0
    %1595 = vmatprep.mubr.f32.mxu0 0.0
    %1596 = vmatmul.mubr.f32.gmra.mrb[0].mxu0 %v798
    %v1597 = vpop.f32.mrb[0].mxu0
    %v1598 = vadd.f32 %v1509, %v1597
    %v1599 = vpop.f32.mrb[0].mxu0
    %1600 = vmatprep.mubr.f32.mxu0 0.0
    %1601 = vmatmul.mubr.f32.gmra.mrb[0].mxu0 %v902
    %v1602 = vpop.f32.mrb[0].mxu0
    %v1603 = vadd.f32 %v1509, %v1602
    %v1604 = vpop.f32.mrb[0].mxu0
    %1605 = vmatprep.mubr.f32.mxu0 0.0
    %1606 = vmatmul.mubr.f32.gmra.mrb[0].mxu0 %v1006
    %v1607 = vpop.f32.mrb[0].mxu0
    %v1608 = vadd.f32 %v1509, %v1607
    %v1609 = vpop.f32.mrb[0].mxu0
    %1610 = vmatprep.mubr.f32.mxu0 0.0
    %1611 = vmatmul.mubr.f32.gmra.mrb[0].mxu0 %v1110
    %v1612 = vpop.f32.mrb[0].mxu0
    %v1613 = vadd.f32 %v1509, %v1612
    %v1614 = vpop.f32.mrb[0].mxu0
    %1615 = vdwg.mxu0
    %v1616 = vxor.u32 %v1578, 2147483648
    %v1617 = vxor.u32 %v1583, 2147483648
    %v1618 = vxor.u32 %v1588, 2147483648
    %v1619 = vxor.u32 %v1593, 2147483648
    %v1620 = vxor.u32 %v1598, 2147483648
    %v1621 = vxor.u32 %v1603, 2147483648
    %v1622 = vxor.u32 %v1608, 2147483648
    %v1623 = vxor.u32 %v1613, 2147483648
    %v1624 = vmul.f32 %v1616, 1.442695
    %v1625 = vpow.pop %v1624
    %v1626 = vmul.f32 %v1617, 1.442695
    %v1627 = vpow.pop %v1626
    %v1628 = vmul.f32 %v1618, 1.442695
    %v1629 = vpow.pop %v1628
    %v1630 = vmul.f32 %v1619, 1.442695
    %v1631 = vpow.pop %v1630
    %v1632 = vmul.f32 %v1620, 1.442695
    %v1633 = vpow.pop %v1632
    %v1634 = vmul.f32 %v1621, 1.442695
    %v1635 = vpow.pop %v1634
    %v1636 = vmul.f32 %v1622, 1.442695
    %v1637 = vpow.pop %v1636
    %v1638 = vmul.f32 %v1623, 1.442695
    %v1639 = vpow.pop %v1638
    %v1640 = vadd.f32 %v1625, 1.0
    %v1641 = vadd.f32 %v1627, 1.0
    %v1642 = vadd.f32 %v1629, 1.0
    %v1643 = vadd.f32 %v1631, 1.0
    %v1644 = vadd.f32 %v1633, 1.0
    %v1645 = vadd.f32 %v1635, 1.0
    %v1646 = vadd.f32 %v1637, 1.0
    %v1647 = vadd.f32 %v1639, 1.0
    %v1648 = vrcp.pop %v1640
    %v1649 = vmul.f32 1.0, %v1648
    %v1650 = vrcp.pop %v1641
    %v1651 = vmul.f32 1.0, %v1650
    %v1652 = vrcp.pop %v1642
    %v1653 = vmul.f32 1.0, %v1652
    %v1654 = vrcp.pop %v1643
    %v1655 = vmul.f32 1.0, %v1654
    %v1656 = vrcp.pop %v1644
    %v1657 = vmul.f32 1.0, %v1656
    %v1658 = vrcp.pop %v1645
    %v1659 = vmul.f32 1.0, %v1658
    %v1660 = vrcp.pop %v1646
    %v1661 = vmul.f32 1.0, %v1660
    %v1662 = vrcp.pop %v1647
    %v1663 = vmul.f32 1.0, %v1662
    %v1664 = vmul.f32 %v1578, %v1649
    %v1665 = vmul.f32 %v1583, %v1651
    %v1666 = vmul.f32 %v1588, %v1653
    %v1667 = vmul.f32 %v1593, %v1655
    %v1668 = vmul.f32 %v1598, %v1657
    %v1669 = vmul.f32 %v1603, %v1659
    %v1670 = vmul.f32 %v1608, %v1661
    %v1671 = vmul.f32 %v1613, %v1663
    %v1672 = vand.u32 2147483647, %v1664
    %vm1673 = vcmp.le.f32.partialorder %v1672, 0.7853982
    %vm1674 = vcmp.lt.s32.totalorder %v1664, 0
    %v1675 = vand.u32 %v1664, 2139095040
    %v1676 = vshrl.u32 %v1675, 23
    %v1677 = vsub.s32 %v1676, 127
    %v1678 = vand.u32 2147483647, %v1664
    %v1679 = vand.u32 %v1678, 8388607
    %v1680 = vor.u32 %v1679, 8388608
    %v1681 = vsub.s32 0, %v1680
    %v1682 = vadd.s32 %v1677, 1
    %vm1683 = vcmp.gt.s32.totalorder %v1682, 0
    %v1684 = vsel %vm1683, %v1682, 0
    %v1685 = vshrl.u32 %v1684, 5
    %v1686 = vand.u32 %v1684, 31
    %v1687 = vsub.s32 32, %v1686
    %v1688 = vshrl.u32 683565275, %v1687
    %v1689 = vshll.u32 683565275, %v1686
    %v1690 = vshrl.u32 2475754826, %v1687
    %v1691 = vor.u32 %v1689, %v1690
    %v1692 = vshll.u32 2475754826, %v1686
    %v1693 = vshrl.u32 2131351028, %v1687
    %v1694 = vor.u32 %v1692, %v1693
    %v1695 = vshll.u32 2131351028, %v1686
    %v1696 = vshrl.u32 2102212464, %v1687
    %v1697 = vor.u32 %v1695, %v1696
    %v1698 = vshll.u32 2102212464, %v1686
    %v1699 = vshrl.u32 920167782, %v1687
    %v1700 = vor.u32 %v1698, %v1699
    %v1701 = vshll.u32 920167782, %v1686
    %v1702 = vshrl.u32 1326507024, %v1687
    %v1703 = vor.u32 %v1701, %v1702
    %vm1704 = vcmp.lt.s32.totalorder %v1685, 1
    %vm1705 = vcmp.lt.s32.totalorder %v1685, 2
    %vm1706 = vcmp.lt.s32.totalorder %v1685, 3
    %vm1707 = vcmp.lt.s32.totalorder %v1685, 4
    %v1708 = vsel %vm1704, %v1688, %v1691
    %v1709 = vsel %vm1707, %v1697, 2102212464
    %v1710 = vsel %vm1706, %v1694, %v1709
    %v1711 = vsel %vm1705, %v1708, %v1710
    %v1712 = vsel %vm1704, %v1691, %v1694
    %v1713 = vsel %vm1707, %v1700, 920167782
    %v1714 = vsel %vm1706, %v1697, %v1713
    %v1715 = vsel %vm1705, %v1712, %v1714
    %v1716 = vsel %vm1704, %v1694, %v1697
    %v1717 = vsel %vm1707, %v1703, 1326507024
    %v1718 = vsel %vm1706, %v1700, %v1717
    %v1719 = vsel %vm1705, %v1716, %v1718
    %v1720 = vshll.u32 %v1680, 8
    %v1721 = vmul.u32.u64.compose %v1720, %v1719
    %v1722 = vextract.low.u32 %v1721
    %v1723 = vextract.high.u32 %v1721
    %v1724 = vmul.u32.u64.compose %v1720, %v1715
    %v1725 = vextract.low.u32 %v1724
    %v1726 = vextract.high.u32 %v1724
    %v1727 = vmul.u32 %v1720, %v1711
    %v1728 = vadd.s32 %v1723, %v1725
    %vm1729 = vc.u32 %v1723, %v1725
    %v1730 = vadd.s32 %v1726, 1
    %v1731 = vsel %vm1729, %v1730, %v1726
    %v1732 = vadd.s32 %v1727, %v1731
    %v1733 = vadd.s32 %v1732, 536870912
    %v1734 = vshrl.u32 %v1733, 30
    %v1735 = vshll.u32 %v1734, 30
    %v1736 = vsub.s32 %v1732, %v1735
    %vm1737 = vcmp.lt.s32.totalorder %v1736, 0
    %v1738 = vsub.s32 0, %v1736
    %v1739 = vsel %vm1737, %v1738, %v1736
    %v1740 = vclz %v1739
    %v1741 = vsub.s32 %v1740, 2
    %vm1742 = vcmp.gt.s32.totalorder 0, %v1741
    %v1743 = vsel %vm1742, 0, %v1741
    %v1744 = vsub.s32 32, %v1743
    %v1745 = vshll.u32 %v1736, %v1743
    %v1746 = vshrl.u32 %v1728, %v1744
    %v1747 = vor.u32 %v1745, %v1746
    %v1748 = vsub.s32 4294967266, %v1743
    %v1749 = vadd.s32 %v1748, 127
    %v1750 = vshll.u32 %v1749, 23
    %v1751 = vor.u32 4788187, %v1750
    %v1752 = vand.u32 2147483647, %v1751
    %v1754 = vcvt.s32.f32 %v1747
    %v1755 = vmul.f32 %v1754, %v1752
    %v1756 = vxor.u32 %v1755, 2147483648
    %v1757 = vsel %vm1674, %v1756, %v1755
    %v1758 = vsub.s32 4, %v1734
    %v1759 = vsel %vm1674, %v1758, %v1734
    %v1760 = vsel %vm1673, %v1664, %v1757
    %v1761 = vsel %vm1673, 0, %v1759
    %v1762 = vcosq.f32.pop %v1760
    %v1763 = vsinq.f32.pop %v1760
    %vm1764 = vweird.f32 %v1664
    %v1765 = vadd.s32 %v1761, 3
    %v1766 = vand.u32 %v1765, 3
    %vm1767 = vcmp.lt.s32.totalorder %v1766, 2
    %vm1768 = vcmp.eq.s32.totalorder %v1766, 0
    %v1769 = vxor.u32 %v1763, 2147483648
    %v1770 = vsel %vm1768, %v1762, %v1769
    %vm1771 = vcmp.eq.s32.totalorder %v1766, 2
    %v1772 = vxor.u32 %v1762, 2147483648
    %v1773 = vsel %vm1771, %v1772, %v1763
    %v1774 = vsel %vm1767, %v1770, %v1773
    %v1775 = vsel %vm1764, nan, %v1774
    %v1776 = vand.u32 2147483647, %v1665
    %vm1777 = vcmp.le.f32.partialorder %v1776, 0.7853982
    %vm1778 = vcmp.lt.s32.totalorder %v1665, 0
    %v1779 = vand.u32 %v1665, 2139095040
    %v1780 = vshrl.u32 %v1779, 23
    %v1781 = vsub.s32 %v1780, 127
    %v1782 = vand.u32 2147483647, %v1665
    %v1783 = vand.u32 %v1782, 8388607
    %v1784 = vor.u32 %v1783, 8388608
    %v1785 = vsub.s32 0, %v1784
    %v1786 = vadd.s32 %v1781, 1
    %vm1787 = vcmp.gt.s32.totalorder %v1786, 0
    %v1788 = vsel %vm1787, %v1786, 0
    %v1789 = vshrl.u32 %v1788, 5
    %v1790 = vand.u32 %v1788, 31
    %v1791 = vsub.s32 32, %v1790
    %v1792 = vshrl.u32 683565275, %v1791
    %v1793 = vshll.u32 683565275, %v1790
    %v1794 = vshrl.u32 2475754826, %v1791
    %v1795 = vor.u32 %v1793, %v1794
    %v1796 = vshll.u32 2475754826, %v1790
    %v1797 = vshrl.u32 2131351028, %v1791
    %v1798 = vor.u32 %v1796, %v1797
    %v1799 = vshll.u32 2131351028, %v1790
    %v1800 = vshrl.u32 2102212464, %v1791
    %v1801 = vor.u32 %v1799, %v1800
    %v1802 = vshll.u32 2102212464, %v1790
    %v1803 = vshrl.u32 920167782, %v1791
    %v1804 = vor.u32 %v1802, %v1803
    %v1805 = vshll.u32 920167782, %v1790
    %v1806 = vshrl.u32 1326507024, %v1791
    %v1807 = vor.u32 %v1805, %v1806
    %vm1808 = vcmp.lt.s32.totalorder %v1789, 1
    %vm1809 = vcmp.lt.s32.totalorder %v1789, 2
    %vm1810 = vcmp.lt.s32.totalorder %v1789, 3
    %vm1811 = vcmp.lt.s32.totalorder %v1789, 4
    %v1812 = vsel %vm1808, %v1792, %v1795
    %v1813 = vsel %vm1811, %v1801, 2102212464
    %v1814 = vsel %vm1810, %v1798, %v1813
    %v1815 = vsel %vm1809, %v1812, %v1814
    %v1816 = vsel %vm1808, %v1795, %v1798
    %v1817 = vsel %vm1811, %v1804, 920167782
    %v1818 = vsel %vm1810, %v1801, %v1817
    %v1819 = vsel %vm1809, %v1816, %v1818
    %v1820 = vsel %vm1808, %v1798, %v1801
    %v1821 = vsel %vm1811, %v1807, 1326507024
    %v1822 = vsel %vm1810, %v1804, %v1821
    %v1823 = vsel %vm1809, %v1820, %v1822
    %v1824 = vshll.u32 %v1784, 8
    %v1825 = vmul.u32.u64.compose %v1824, %v1823
    %v1826 = vextract.low.u32 %v1825
    %v1827 = vextract.high.u32 %v1825
    %v1828 = vmul.u32.u64.compose %v1824, %v1819
    %v1829 = vextract.low.u32 %v1828
    %v1830 = vextract.high.u32 %v1828
    %v1831 = vmul.u32 %v1824, %v1815
    %v1832 = vadd.s32 %v1827, %v1829
    %vm1833 = vc.u32 %v1827, %v1829
    %v1834 = vadd.s32 %v1830, 1
    %v1835 = vsel %vm1833, %v1834, %v1830
    %v1836 = vadd.s32 %v1831, %v1835
    %v1837 = vadd.s32 %v1836, 536870912
    %v1838 = vshrl.u32 %v1837, 30
    %v1839 = vshll.u32 %v1838, 30
    %v1840 = vsub.s32 %v1836, %v1839
    %vm1841 = vcmp.lt.s32.totalorder %v1840, 0
    %v1842 = vsub.s32 0, %v1840
    %v1843 = vsel %vm1841, %v1842, %v1840
    %v1844 = vclz %v1843
    %v1845 = vsub.s32 %v1844, 2
    %vm1846 = vcmp.gt.s32.totalorder 0, %v1845
    %v1847 = vsel %vm1846, 0, %v1845
    %v1848 = vsub.s32 32, %v1847
    %v1849 = vshll.u32 %v1840, %v1847
    %v1850 = vshrl.u32 %v1832, %v1848
    %v1851 = vor.u32 %v1849, %v1850
    %v1852 = vsub.s32 4294967266, %v1847
    %v1853 = vadd.s32 %v1852, 127
    %v1854 = vshll.u32 %v1853, 23
    %v1855 = vor.u32 4788187, %v1854
    %v1856 = vand.u32 2147483647, %v1855
    %v1858 = vcvt.s32.f32 %v1851
    %v1859 = vmul.f32 %v1858, %v1856
    %v1860 = vxor.u32 %v1859, 2147483648
    %v1861 = vsel %vm1778, %v1860, %v1859
    %v1862 = vsub.s32 4, %v1838
    %v1863 = vsel %vm1778, %v1862, %v1838
    %v1864 = vsel %vm1777, %v1665, %v1861
    %v1865 = vsel %vm1777, 0, %v1863
    %v1866 = vcosq.f32.pop %v1864
    %v1867 = vsinq.f32.pop %v1864
    %vm1868 = vweird.f32 %v1665
    %v1869 = vadd.s32 %v1865, 3
    %v1870 = vand.u32 %v1869, 3
    %vm1871 = vcmp.lt.s32.totalorder %v1870, 2
    %vm1872 = vcmp.eq.s32.totalorder %v1870, 0
    %v1873 = vxor.u32 %v1867, 2147483648
    %v1874 = vsel %vm1872, %v1866, %v1873
    %vm1875 = vcmp.eq.s32.totalorder %v1870, 2
    %v1876 = vxor.u32 %v1866, 2147483648
    %v1877 = vsel %vm1875, %v1876, %v1867
    %v1878 = vsel %vm1871, %v1874, %v1877
    %v1879 = vsel %vm1868, nan, %v1878
    %v1880 = vand.u32 2147483647, %v1666
    %vm1881 = vcmp.le.f32.partialorder %v1880, 0.7853982
    %vm1882 = vcmp.lt.s32.totalorder %v1666, 0
    %v1883 = vand.u32 %v1666, 2139095040
    %v1884 = vshrl.u32 %v1883, 23
    %v1885 = vsub.s32 %v1884, 127
    %v1886 = vand.u32 2147483647, %v1666
    %v1887 = vand.u32 %v1886, 8388607
    %v1888 = vor.u32 %v1887, 8388608
    %v1889 = vsub.s32 0, %v1888
    %v1890 = vadd.s32 %v1885, 1
    %vm1891 = vcmp.gt.s32.totalorder %v1890, 0
    %v1892 = vsel %vm1891, %v1890, 0
    %v1893 = vshrl.u32 %v1892, 5
    %v1894 = vand.u32 %v1892, 31
    %v1895 = vsub.s32 32, %v1894
    %v1896 = vshrl.u32 683565275, %v1895
    %v1897 = vshll.u32 683565275, %v1894
    %v1898 = vshrl.u32 2475754826, %v1895
    %v1899 = vor.u32 %v1897, %v1898
    %v1900 = vshll.u32 2475754826, %v1894
    %v1901 = vshrl.u32 2131351028, %v1895
    %v1902 = vor.u32 %v1900, %v1901
    %v1903 = vshll.u32 2131351028, %v1894
    %v1904 = vshrl.u32 2102212464, %v1895
    %v1905 = vor.u32 %v1903, %v1904
    %v1906 = vshll.u32 2102212464, %v1894
    %v1907 = vshrl.u32 920167782, %v1895
    %v1908 = vor.u32 %v1906, %v1907
    %v1909 = vshll.u32 920167782, %v1894
    %v1910 = vshrl.u32 1326507024, %v1895
    %v1911 = vor.u32 %v1909, %v1910
    %vm1912 = vcmp.lt.s32.totalorder %v1893, 1
    %vm1913 = vcmp.lt.s32.totalorder %v1893, 2
    %vm1914 = vcmp.lt.s32.totalorder %v1893, 3
    %vm1915 = vcmp.lt.s32.totalorder %v1893, 4
    %v1916 = vsel %vm1912, %v1896, %v1899
    %v1917 = vsel %vm1915, %v1905, 2102212464
    %v1918 = vsel %vm1914, %v1902, %v1917
    %v1919 = vsel %vm1913, %v1916, %v1918
    %v1920 = vsel %vm1912, %v1899, %v1902
    %v1921 = vsel %vm1915, %v1908, 920167782
    %v1922 = vsel %vm1914, %v1905, %v1921
    %v1923 = vsel %vm1913, %v1920, %v1922
    %v1924 = vsel %vm1912, %v1902, %v1905
    %v1925 = vsel %vm1915, %v1911, 1326507024
    %v1926 = vsel %vm1914, %v1908, %v1925
    %v1927 = vsel %vm1913, %v1924, %v1926
    %v1928 = vshll.u32 %v1888, 8
    %v1929 = vmul.u32.u64.compose %v1928, %v1927
    %v1930 = vextract.low.u32 %v1929
    %v1931 = vextract.high.u32 %v1929
    %v1932 = vmul.u32.u64.compose %v1928, %v1923
    %v1933 = vextract.low.u32 %v1932
    %v1934 = vextract.high.u32 %v1932
    %v1935 = vmul.u32 %v1928, %v1919
    %v1936 = vadd.s32 %v1931, %v1933
    %vm1937 = vc.u32 %v1931, %v1933
    %v1938 = vadd.s32 %v1934, 1
    %v1939 = vsel %vm1937, %v1938, %v1934
    %v1940 = vadd.s32 %v1935, %v1939
    %v1941 = vadd.s32 %v1940, 536870912
    %v1942 = vshrl.u32 %v1941, 30
    %v1943 = vshll.u32 %v1942, 30
    %v1944 = vsub.s32 %v1940, %v1943
    %vm1945 = vcmp.lt.s32.totalorder %v1944, 0
    %v1946 = vsub.s32 0, %v1944
    %v1947 = vsel %vm1945, %v1946, %v1944
    %v1948 = vclz %v1947
    %v1949 = vsub.s32 %v1948, 2
    %vm1950 = vcmp.gt.s32.totalorder 0, %v1949
    %v1951 = vsel %vm1950, 0, %v1949
    %v1952 = vsub.s32 32, %v1951
    %v1953 = vshll.u32 %v1944, %v1951
    %v1954 = vshrl.u32 %v1936, %v1952
    %v1955 = vor.u32 %v1953, %v1954
    %v1956 = vsub.s32 4294967266, %v1951
    %v1957 = vadd.s32 %v1956, 127
    %v1958 = vshll.u32 %v1957, 23
    %v1959 = vor.u32 4788187, %v1958
    %v1960 = vand.u32 2147483647, %v1959
    %v1962 = vcvt.s32.f32 %v1955
    %v1963 = vmul.f32 %v1962, %v1960
    %v1964 = vxor.u32 %v1963, 2147483648
    %v1965 = vsel %vm1882, %v1964, %v1963
    %v1966 = vsub.s32 4, %v1942
    %v1967 = vsel %vm1882, %v1966, %v1942
    %v1968 = vsel %vm1881, %v1666, %v1965
    %v1969 = vsel %vm1881, 0, %v1967
    %v1970 = vcosq.f32.pop %v1968
    %v1971 = vsinq.f32.pop %v1968
    %vm1972 = vweird.f32 %v1666
    %v1973 = vadd.s32 %v1969, 3
    %v1974 = vand.u32 %v1973, 3
    %vm1975 = vcmp.lt.s32.totalorder %v1974, 2
    %vm1976 = vcmp.eq.s32.totalorder %v1974, 0
    %v1977 = vxor.u32 %v1971, 2147483648
    %v1978 = vsel %vm1976, %v1970, %v1977
    %vm1979 = vcmp.eq.s32.totalorder %v1974, 2
    %v1980 = vxor.u32 %v1970, 2147483648
    %v1981 = vsel %vm1979, %v1980, %v1971
    %v1982 = vsel %vm1975, %v1978, %v1981
    %v1983 = vsel %vm1972, nan, %v1982
    %v1984 = vand.u32 2147483647, %v1667
    %vm1985 = vcmp.le.f32.partialorder %v1984, 0.7853982
    %vm1986 = vcmp.lt.s32.totalorder %v1667, 0
    %v1987 = vand.u32 %v1667, 2139095040
    %v1988 = vshrl.u32 %v1987, 23
    %v1989 = vsub.s32 %v1988, 127
    %v1990 = vand.u32 2147483647, %v1667
    %v1991 = vand.u32 %v1990, 8388607
    %v1992 = vor.u32 %v1991, 8388608
    %v1993 = vsub.s32 0, %v1992
    %v1994 = vadd.s32 %v1989, 1
    %vm1995 = vcmp.gt.s32.totalorder %v1994, 0
    %v1996 = vsel %vm1995, %v1994, 0
    %v1997 = vshrl.u32 %v1996, 5
    %v1998 = vand.u32 %v1996, 31
    %v1999 = vsub.s32 32, %v1998
    %v2000 = vshrl.u32 683565275, %v1999
    %v2001 = vshll.u32 683565275, %v1998
    %v2002 = vshrl.u32 2475754826, %v1999
    %v2003 = vor.u32 %v2001, %v2002
    %v2004 = vshll.u32 2475754826, %v1998
    %v2005 = vshrl.u32 2131351028, %v1999
    %v2006 = vor.u32 %v2004, %v2005
    %v2007 = vshll.u32 2131351028, %v1998
    %v2008 = vshrl.u32 2102212464, %v1999
    %v2009 = vor.u32 %v2007, %v2008
    %v2010 = vshll.u32 2102212464, %v1998
    %v2011 = vshrl.u32 920167782, %v1999
    %v2012 = vor.u32 %v2010, %v2011
    %v2013 = vshll.u32 920167782, %v1998
    %v2014 = vshrl.u32 1326507024, %v1999
    %v2015 = vor.u32 %v2013, %v2014
    %vm2016 = vcmp.lt.s32.totalorder %v1997, 1
    %vm2017 = vcmp.lt.s32.totalorder %v1997, 2
    %vm2018 = vcmp.lt.s32.totalorder %v1997, 3
    %vm2019 = vcmp.lt.s32.totalorder %v1997, 4
    %v2020 = vsel %vm2016, %v2000, %v2003
    %v2021 = vsel %vm2019, %v2009, 2102212464
    %v2022 = vsel %vm2018, %v2006, %v2021
    %v2023 = vsel %vm2017, %v2020, %v2022
    %v2024 = vsel %vm2016, %v2003, %v2006
    %v2025 = vsel %vm2019, %v2012, 920167782
    %v2026 = vsel %vm2018, %v2009, %v2025
    %v2027 = vsel %vm2017, %v2024, %v2026
    %v2028 = vsel %vm2016, %v2006, %v2009
    %v2029 = vsel %vm2019, %v2015, 1326507024
    %v2030 = vsel %vm2018, %v2012, %v2029
    %v2031 = vsel %vm2017, %v2028, %v2030
    %v2032 = vshll.u32 %v1992, 8
    %v2033 = vmul.u32.u64.compose %v2032, %v2031
    %v2034 = vextract.low.u32 %v2033
    %v2035 = vextract.high.u32 %v2033
    %v2036 = vmul.u32.u64.compose %v2032, %v2027
    %v2037 = vextract.low.u32 %v2036
    %v2038 = vextract.high.u32 %v2036
    %v2039 = vmul.u32 %v2032, %v2023
    %v2040 = vadd.s32 %v2035, %v2037
    %vm2041 = vc.u32 %v2035, %v2037
    %v2042 = vadd.s32 %v2038, 1
    %v2043 = vsel %vm2041, %v2042, %v2038
    %v2044 = vadd.s32 %v2039, %v2043
    %v2045 = vadd.s32 %v2044, 536870912
    %v2046 = vshrl.u32 %v2045, 30
    %v2047 = vshll.u32 %v2046, 30
    %v2048 = vsub.s32 %v2044, %v2047
    %vm2049 = vcmp.lt.s32.totalorder %v2048, 0
    %v2050 = vsub.s32 0, %v2048
    %v2051 = vsel %vm2049, %v2050, %v2048
    %v2052 = vclz %v2051
    %v2053 = vsub.s32 %v2052, 2
    %vm2054 = vcmp.gt.s32.totalorder 0, %v2053
    %v2055 = vsel %vm2054, 0, %v2053
    %v2056 = vsub.s32 32, %v2055
    %v2057 = vshll.u32 %v2048, %v2055
    %v2058 = vshrl.u32 %v2040, %v2056
    %v2059 = vor.u32 %v2057, %v2058
    %v2060 = vsub.s32 4294967266, %v2055
    %v2061 = vadd.s32 %v2060, 127
    %v2062 = vshll.u32 %v2061, 23
    %v2063 = vor.u32 4788187, %v2062
    %v2064 = vand.u32 2147483647, %v2063
    %v2066 = vcvt.s32.f32 %v2059
    %v2067 = vmul.f32 %v2066, %v2064
    %v2068 = vxor.u32 %v2067, 2147483648
    %v2069 = vsel %vm1986, %v2068, %v2067
    %v2070 = vsub.s32 4, %v2046
    %v2071 = vsel %vm1986, %v2070, %v2046
    %v2072 = vsel %vm1985, %v1667, %v2069
    %v2073 = vsel %vm1985, 0, %v2071
    %v2074 = vcosq.f32.pop %v2072
    %v2075 = vsinq.f32.pop %v2072
    %vm2076 = vweird.f32 %v1667
    %v2077 = vadd.s32 %v2073, 3
    %v2078 = vand.u32 %v2077, 3
    %vm2079 = vcmp.lt.s32.totalorder %v2078, 2
    %vm2080 = vcmp.eq.s32.totalorder %v2078, 0
    %v2081 = vxor.u32 %v2075, 2147483648
    %v2082 = vsel %vm2080, %v2074, %v2081
    %vm2083 = vcmp.eq.s32.totalorder %v2078, 2
    %v2084 = vxor.u32 %v2074, 2147483648
    %v2085 = vsel %vm2083, %v2084, %v2075
    %v2086 = vsel %vm2079, %v2082, %v2085
    %v2087 = vsel %vm2076, nan, %v2086
    %v2088 = vand.u32 2147483647, %v1668
    %vm2089 = vcmp.le.f32.partialorder %v2088, 0.7853982
    %vm2090 = vcmp.lt.s32.totalorder %v1668, 0
    %v2091 = vand.u32 %v1668, 2139095040
    %v2092 = vshrl.u32 %v2091, 23
    %v2093 = vsub.s32 %v2092, 127
    %v2094 = vand.u32 2147483647, %v1668
    %v2095 = vand.u32 %v2094, 8388607
    %v2096 = vor.u32 %v2095, 8388608
    %v2097 = vsub.s32 0, %v2096
    %v2098 = vadd.s32 %v2093, 1
    %vm2099 = vcmp.gt.s32.totalorder %v2098, 0
    %v2100 = vsel %vm2099, %v2098, 0
    %v2101 = vshrl.u32 %v2100, 5
    %v2102 = vand.u32 %v2100, 31
    %v2103 = vsub.s32 32, %v2102
    %v2104 = vshrl.u32 683565275, %v2103
    %v2105 = vshll.u32 683565275, %v2102
    %v2106 = vshrl.u32 2475754826, %v2103
    %v2107 = vor.u32 %v2105, %v2106
    %v2108 = vshll.u32 2475754826, %v2102
    %v2109 = vshrl.u32 2131351028, %v2103
    %v2110 = vor.u32 %v2108, %v2109
    %v2111 = vshll.u32 2131351028, %v2102
    %v2112 = vshrl.u32 2102212464, %v2103
    %v2113 = vor.u32 %v2111, %v2112
    %v2114 = vshll.u32 2102212464, %v2102
    %v2115 = vshrl.u32 920167782, %v2103
    %v2116 = vor.u32 %v2114, %v2115
    %v2117 = vshll.u32 920167782, %v2102
    %v2118 = vshrl.u32 1326507024, %v2103
    %v2119 = vor.u32 %v2117, %v2118
    %vm2120 = vcmp.lt.s32.totalorder %v2101, 1
    %vm2121 = vcmp.lt.s32.totalorder %v2101, 2
    %vm2122 = vcmp.lt.s32.totalorder %v2101, 3
    %vm2123 = vcmp.lt.s32.totalorder %v2101, 4
    %v2124 = vsel %vm2120, %v2104, %v2107
    %v2125 = vsel %vm2123, %v2113, 2102212464
    %v2126 = vsel %vm2122, %v2110, %v2125
    %v2127 = vsel %vm2121, %v2124, %v2126
    %v2128 = vsel %vm2120, %v2107, %v2110
    %v2129 = vsel %vm2123, %v2116, 920167782
    %v2130 = vsel %vm2122, %v2113, %v2129
    %v2131 = vsel %vm2121, %v2128, %v2130
    %v2132 = vsel %vm2120, %v2110, %v2113
    %v2133 = vsel %vm2123, %v2119, 1326507024
    %v2134 = vsel %vm2122, %v2116, %v2133
    %v2135 = vsel %vm2121, %v2132, %v2134
    %v2136 = vshll.u32 %v2096, 8
    %v2137 = vmul.u32.u64.compose %v2136, %v2135
    %v2138 = vextract.low.u32 %v2137
    %v2139 = vextract.high.u32 %v2137
    %v2140 = vmul.u32.u64.compose %v2136, %v2131
    %v2141 = vextract.low.u32 %v2140
    %v2142 = vextract.high.u32 %v2140
    %v2143 = vmul.u32 %v2136, %v2127
    %v2144 = vadd.s32 %v2139, %v2141
    %vm2145 = vc.u32 %v2139, %v2141
    %v2146 = vadd.s32 %v2142, 1
    %v2147 = vsel %vm2145, %v2146, %v2142
    %v2148 = vadd.s32 %v2143, %v2147
    %v2149 = vadd.s32 %v2148, 536870912
    %v2150 = vshrl.u32 %v2149, 30
    %v2151 = vshll.u32 %v2150, 30
    %v2152 = vsub.s32 %v2148, %v2151
    %vm2153 = vcmp.lt.s32.totalorder %v2152, 0
    %v2154 = vsub.s32 0, %v2152
    %v2155 = vsel %vm2153, %v2154, %v2152
    %v2156 = vclz %v2155
    %v2157 = vsub.s32 %v2156, 2
    %vm2158 = vcmp.gt.s32.totalorder 0, %v2157
    %v2159 = vsel %vm2158, 0, %v2157
    %v2160 = vsub.s32 32, %v2159
    %v2161 = vshll.u32 %v2152, %v2159
    %v2162 = vshrl.u32 %v2144, %v2160
    %v2163 = vor.u32 %v2161, %v2162
    %v2164 = vsub.s32 4294967266, %v2159
    %v2165 = vadd.s32 %v2164, 127
    %v2166 = vshll.u32 %v2165, 23
    %v2167 = vor.u32 4788187, %v2166
    %v2168 = vand.u32 2147483647, %v2167
    %v2170 = vcvt.s32.f32 %v2163
    %v2171 = vmul.f32 %v2170, %v2168
    %v2172 = vxor.u32 %v2171, 2147483648
    %v2173 = vsel %vm2090, %v2172, %v2171
    %v2174 = vsub.s32 4, %v2150
    %v2175 = vsel %vm2090, %v2174, %v2150
    %v2176 = vsel %vm2089, %v1668, %v2173
    %v2177 = vsel %vm2089, 0, %v2175
    %v2178 = vcosq.f32.pop %v2176
    %v2179 = vsinq.f32.pop %v2176
    %vm2180 = vweird.f32 %v1668
    %v2181 = vadd.s32 %v2177, 3
    %v2182 = vand.u32 %v2181, 3
    %vm2183 = vcmp.lt.s32.totalorder %v2182, 2
    %vm2184 = vcmp.eq.s32.totalorder %v2182, 0
    %v2185 = vxor.u32 %v2179, 2147483648
    %v2186 = vsel %vm2184, %v2178, %v2185
    %vm2187 = vcmp.eq.s32.totalorder %v2182, 2
    %v2188 = vxor.u32 %v2178, 2147483648
    %v2189 = vsel %vm2187, %v2188, %v2179
    %v2190 = vsel %vm2183, %v2186, %v2189
    %v2191 = vsel %vm2180, nan, %v2190
    %v2192 = vand.u32 2147483647, %v1669
    %vm2193 = vcmp.le.f32.partialorder %v2192, 0.7853982
    %vm2194 = vcmp.lt.s32.totalorder %v1669, 0
    %v2195 = vand.u32 %v1669, 2139095040
    %v2196 = vshrl.u32 %v2195, 23
    %v2197 = vsub.s32 %v2196, 127
    %v2198 = vand.u32 2147483647, %v1669
    %v2199 = vand.u32 %v2198, 8388607
    %v2200 = vor.u32 %v2199, 8388608
    %v2201 = vsub.s32 0, %v2200
    %v2202 = vadd.s32 %v2197, 1
    %vm2203 = vcmp.gt.s32.totalorder %v2202, 0
    %v2204 = vsel %vm2203, %v2202, 0
    %v2205 = vshrl.u32 %v2204, 5
    %v2206 = vand.u32 %v2204, 31
    %v2207 = vsub.s32 32, %v2206
    %v2208 = vshrl.u32 683565275, %v2207
    %v2209 = vshll.u32 683565275, %v2206
    %v2210 = vshrl.u32 2475754826, %v2207
    %v2211 = vor.u32 %v2209, %v2210
    %v2212 = vshll.u32 2475754826, %v2206
    %v2213 = vshrl.u32 2131351028, %v2207
    %v2214 = vor.u32 %v2212, %v2213
    %v2215 = vshll.u32 2131351028, %v2206
    %v2216 = vshrl.u32 2102212464, %v2207
    %v2217 = vor.u32 %v2215, %v2216
    %v2218 = vshll.u32 2102212464, %v2206
    %v2219 = vshrl.u32 920167782, %v2207
    %v2220 = vor.u32 %v2218, %v2219
    %v2221 = vshll.u32 920167782, %v2206
    %v2222 = vshrl.u32 1326507024, %v2207
    %v2223 = vor.u32 %v2221, %v2222
    %vm2224 = vcmp.lt.s32.totalorder %v2205, 1
    %vm2225 = vcmp.lt.s32.totalorder %v2205, 2
    %vm2226 = vcmp.lt.s32.totalorder %v2205, 3
    %vm2227 = vcmp.lt.s32.totalorder %v2205, 4
    %v2228 = vsel %vm2224, %v2208, %v2211
    %v2229 = vsel %vm2227, %v2217, 2102212464
    %v2230 = vsel %vm2226, %v2214, %v2229
    %v2231 = vsel %vm2225, %v2228, %v2230
    %v2232 = vsel %vm2224, %v2211, %v2214
    %v2233 = vsel %vm2227, %v2220, 920167782
    %v2234 = vsel %vm2226, %v2217, %v2233
    %v2235 = vsel %vm2225, %v2232, %v2234
    %v2236 = vsel %vm2224, %v2214, %v2217
    %v2237 = vsel %vm2227, %v2223, 1326507024
    %v2238 = vsel %vm2226, %v2220, %v2237
    %v2239 = vsel %vm2225, %v2236, %v2238
    %v2240 = vshll.u32 %v2200, 8
    %v2241 = vmul.u32.u64.compose %v2240, %v2239
    %v2242 = vextract.low.u32 %v2241
    %v2243 = vextract.high.u32 %v2241
    %v2244 = vmul.u32.u64.compose %v2240, %v2235
    %v2245 = vextract.low.u32 %v2244
    %v2246 = vextract.high.u32 %v2244
    %v2247 = vmul.u32 %v2240, %v2231
    %v2248 = vadd.s32 %v2243, %v2245
    %vm2249 = vc.u32 %v2243, %v2245
    %v2250 = vadd.s32 %v2246, 1
    %v2251 = vsel %vm2249, %v2250, %v2246
    %v2252 = vadd.s32 %v2247, %v2251
    %v2253 = vadd.s32 %v2252, 536870912
    %v2254 = vshrl.u32 %v2253, 30
    %v2255 = vshll.u32 %v2254, 30
    %v2256 = vsub.s32 %v2252, %v2255
    %vm2257 = vcmp.lt.s32.totalorder %v2256, 0
    %v2258 = vsub.s32 0, %v2256
    %v2259 = vsel %vm2257, %v2258, %v2256
    %v2260 = vclz %v2259
    %v2261 = vsub.s32 %v2260, 2
    %vm2262 = vcmp.gt.s32.totalorder 0, %v2261
    %v2263 = vsel %vm2262, 0, %v2261
    %v2264 = vsub.s32 32, %v2263
    %v2265 = vshll.u32 %v2256, %v2263
    %v2266 = vshrl.u32 %v2248, %v2264
    %v2267 = vor.u32 %v2265, %v2266
    %v2268 = vsub.s32 4294967266, %v2263
    %v2269 = vadd.s32 %v2268, 127
    %v2270 = vshll.u32 %v2269, 23
    %v2271 = vor.u32 4788187, %v2270
    %v2272 = vand.u32 2147483647, %v2271
    %v2274 = vcvt.s32.f32 %v2267
    %v2275 = vmul.f32 %v2274, %v2272
    %v2276 = vxor.u32 %v2275, 2147483648
    %v2277 = vsel %vm2194, %v2276, %v2275
    %v2278 = vsub.s32 4, %v2254
    %v2279 = vsel %vm2194, %v2278, %v2254
    %v2280 = vsel %vm2193, %v1669, %v2277
    %v2281 = vsel %vm2193, 0, %v2279
    %v2282 = vcosq.f32.pop %v2280
    %v2283 = vsinq.f32.pop %v2280
    %vm2284 = vweird.f32 %v1669
    %v2285 = vadd.s32 %v2281, 3
    %v2286 = vand.u32 %v2285, 3
    %vm2287 = vcmp.lt.s32.totalorder %v2286, 2
    %vm2288 = vcmp.eq.s32.totalorder %v2286, 0
    %v2289 = vxor.u32 %v2283, 2147483648
    %v2290 = vsel %vm2288, %v2282, %v2289
    %vm2291 = vcmp.eq.s32.totalorder %v2286, 2
    %v2292 = vxor.u32 %v2282, 2147483648
    %v2293 = vsel %vm2291, %v2292, %v2283
    %v2294 = vsel %vm2287, %v2290, %v2293
    %v2295 = vsel %vm2284, nan, %v2294
    %v2296 = vand.u32 2147483647, %v1670
    %vm2297 = vcmp.le.f32.partialorder %v2296, 0.7853982
    %vm2298 = vcmp.lt.s32.totalorder %v1670, 0
    %v2299 = vand.u32 %v1670, 2139095040
    %v2300 = vshrl.u32 %v2299, 23
    %v2301 = vsub.s32 %v2300, 127
    %v2302 = vand.u32 2147483647, %v1670
    %v2303 = vand.u32 %v2302, 8388607
    %v2304 = vor.u32 %v2303, 8388608
    %v2305 = vsub.s32 0, %v2304
    %v2306 = vadd.s32 %v2301, 1
    %vm2307 = vcmp.gt.s32.totalorder %v2306, 0
    %v2308 = vsel %vm2307, %v2306, 0
    %v2309 = vshrl.u32 %v2308, 5
    %v2310 = vand.u32 %v2308, 31
    %v2311 = vsub.s32 32, %v2310
    %v2312 = vshrl.u32 683565275, %v2311
    %v2313 = vshll.u32 683565275, %v2310
    %v2314 = vshrl.u32 2475754826, %v2311
    %v2315 = vor.u32 %v2313, %v2314
    %v2316 = vshll.u32 2475754826, %v2310
    %v2317 = vshrl.u32 2131351028, %v2311
    %v2318 = vor.u32 %v2316, %v2317
    %v2319 = vshll.u32 2131351028, %v2310
    %v2320 = vshrl.u32 2102212464, %v2311
    %v2321 = vor.u32 %v2319, %v2320
    %v2322 = vshll.u32 2102212464, %v2310
    %v2323 = vshrl.u32 920167782, %v2311
    %v2324 = vor.u32 %v2322, %v2323
    %v2325 = vshll.u32 920167782, %v2310
    %v2326 = vshrl.u32 1326507024, %v2311
    %v2327 = vor.u32 %v2325, %v2326
    %vm2328 = vcmp.lt.s32.totalorder %v2309, 1
    %vm2329 = vcmp.lt.s32.totalorder %v2309, 2
    %vm2330 = vcmp.lt.s32.totalorder %v2309, 3
    %vm2331 = vcmp.lt.s32.totalorder %v2309, 4
    %v2332 = vsel %vm2328, %v2312, %v2315
    %v2333 = vsel %vm2331, %v2321, 2102212464
    %v2334 = vsel %vm2330, %v2318, %v2333
    %v2335 = vsel %vm2329, %v2332, %v2334
    %v2336 = vsel %vm2328, %v2315, %v2318
    %v2337 = vsel %vm2331, %v2324, 920167782
    %v2338 = vsel %vm2330, %v2321, %v2337
    %v2339 = vsel %vm2329, %v2336, %v2338
    %v2340 = vsel %vm2328, %v2318, %v2321
    %v2341 = vsel %vm2331, %v2327, 1326507024
    %v2342 = vsel %vm2330, %v2324, %v2341
    %v2343 = vsel %vm2329, %v2340, %v2342
    %v2344 = vshll.u32 %v2304, 8
    %v2345 = vmul.u32.u64.compose %v2344, %v2343
    %v2346 = vextract.low.u32 %v2345
    %v2347 = vextract.high.u32 %v2345
    %v2348 = vmul.u32.u64.compose %v2344, %v2339
    %v2349 = vextract.low.u32 %v2348
    %v2350 = vextract.high.u32 %v2348
    %v2351 = vmul.u32 %v2344, %v2335
    %v2352 = vadd.s32 %v2347, %v2349
    %vm2353 = vc.u32 %v2347, %v2349
    %v2354 = vadd.s32 %v2350, 1
    %v2355 = vsel %vm2353, %v2354, %v2350
    %v2356 = vadd.s32 %v2351, %v2355
    %v2357 = vadd.s32 %v2356, 536870912
    %v2358 = vshrl.u32 %v2357, 30
    %v2359 = vshll.u32 %v2358, 30
    %v2360 = vsub.s32 %v2356, %v2359
    %vm2361 = vcmp.lt.s32.totalorder %v2360, 0
    %v2362 = vsub.s32 0, %v2360
    %v2363 = vsel %vm2361, %v2362, %v2360
    %v2364 = vclz %v2363
    %v2365 = vsub.s32 %v2364, 2
    %vm2366 = vcmp.gt.s32.totalorder 0, %v2365
    %v2367 = vsel %vm2366, 0, %v2365
    %v2368 = vsub.s32 32, %v2367
    %v2369 = vshll.u32 %v2360, %v2367
    %v2370 = vshrl.u32 %v2352, %v2368
    %v2371 = vor.u32 %v2369, %v2370
    %v2372 = vsub.s32 4294967266, %v2367
    %v2373 = vadd.s32 %v2372, 127
    %v2374 = vshll.u32 %v2373, 23
    %v2375 = vor.u32 4788187, %v2374
    %v2376 = vand.u32 2147483647, %v2375
    %v2378 = vcvt.s32.f32 %v2371
    %v2379 = vmul.f32 %v2378, %v2376
    %v2380 = vxor.u32 %v2379, 2147483648
    %v2381 = vsel %vm2298, %v2380, %v2379
    %v2382 = vsub.s32 4, %v2358
    %v2383 = vsel %vm2298, %v2382, %v2358
    %v2384 = vsel %vm2297, %v1670, %v2381
    %v2385 = vsel %vm2297, 0, %v2383
    %v2386 = vcosq.f32.pop %v2384
    %v2387 = vsinq.f32.pop %v2384
    %vm2388 = vweird.f32 %v1670
    %v2389 = vadd.s32 %v2385, 3
    %v2390 = vand.u32 %v2389, 3
    %vm2391 = vcmp.lt.s32.totalorder %v2390, 2
    %vm2392 = vcmp.eq.s32.totalorder %v2390, 0
    %v2393 = vxor.u32 %v2387, 2147483648
    %v2394 = vsel %vm2392, %v2386, %v2393
    %vm2395 = vcmp.eq.s32.totalorder %v2390, 2
    %v2396 = vxor.u32 %v2386, 2147483648
    %v2397 = vsel %vm2395, %v2396, %v2387
    %v2398 = vsel %vm2391, %v2394, %v2397
    %v2399 = vsel %vm2388, nan, %v2398
    %v2400 = vand.u32 2147483647, %v1671
    %vm2401 = vcmp.le.f32.partialorder %v2400, 0.7853982
    %vm2402 = vcmp.lt.s32.totalorder %v1671, 0
    %v2403 = vand.u32 %v1671, 2139095040
    %v2404 = vshrl.u32 %v2403, 23
    %v2405 = vsub.s32 %v2404, 127
    %v2406 = vand.u32 2147483647, %v1671
    %v2407 = vand.u32 %v2406, 8388607
    %v2408 = vor.u32 %v2407, 8388608
    %v2409 = vsub.s32 0, %v2408
    %v2410 = vadd.s32 %v2405, 1
    %vm2411 = vcmp.gt.s32.totalorder %v2410, 0
    %v2412 = vsel %vm2411, %v2410, 0
    %v2413 = vshrl.u32 %v2412, 5
    %v2414 = vand.u32 %v2412, 31
    %v2415 = vsub.s32 32, %v2414
    %v2416 = vshrl.u32 683565275, %v2415
    %v2417 = vshll.u32 683565275, %v2414
    %v2418 = vshrl.u32 2475754826, %v2415
    %v2419 = vor.u32 %v2417, %v2418
    %v2420 = vshll.u32 2475754826, %v2414
    %v2421 = vshrl.u32 2131351028, %v2415
    %v2422 = vor.u32 %v2420, %v2421
    %v2423 = vshll.u32 2131351028, %v2414
    %v2424 = vshrl.u32 2102212464, %v2415
    %v2425 = vor.u32 %v2423, %v2424
    %v2426 = vshll.u32 2102212464, %v2414
    %v2427 = vshrl.u32 920167782, %v2415
    %v2428 = vor.u32 %v2426, %v2427
    %v2429 = vshll.u32 920167782, %v2414
    %v2430 = vshrl.u32 1326507024, %v2415
    %v2431 = vor.u32 %v2429, %v2430
    %vm2432 = vcmp.lt.s32.totalorder %v2413, 1
    %vm2433 = vcmp.lt.s32.totalorder %v2413, 2
    %vm2434 = vcmp.lt.s32.totalorder %v2413, 3
    %vm2435 = vcmp.lt.s32.totalorder %v2413, 4
    %v2436 = vsel %vm2432, %v2416, %v2419
    %v2437 = vsel %vm2435, %v2425, 2102212464
    %v2438 = vsel %vm2434, %v2422, %v2437
    %v2439 = vsel %vm2433, %v2436, %v2438
    %v2440 = vsel %vm2432, %v2419, %v2422
    %v2441 = vsel %vm2435, %v2428, 920167782
    %v2442 = vsel %vm2434, %v2425, %v2441
    %v2443 = vsel %vm2433, %v2440, %v2442
    %v2444 = vsel %vm2432, %v2422, %v2425
    %v2445 = vsel %vm2435, %v2431, 1326507024
    %v2446 = vsel %vm2434, %v2428, %v2445
    %v2447 = vsel %vm2433, %v2444, %v2446
    %v2448 = vshll.u32 %v2408, 8
    %v2449 = vmul.u32.u64.compose %v2448, %v2447
    %v2450 = vextract.low.u32 %v2449
    %v2451 = vextract.high.u32 %v2449
    %v2452 = vmul.u32.u64.compose %v2448, %v2443
    %v2453 = vextract.low.u32 %v2452
    %v2454 = vextract.high.u32 %v2452
    %v2455 = vmul.u32 %v2448, %v2439
    %v2456 = vadd.s32 %v2451, %v2453
    %vm2457 = vc.u32 %v2451, %v2453
    %v2458 = vadd.s32 %v2454, 1
    %v2459 = vsel %vm2457, %v2458, %v2454
    %v2460 = vadd.s32 %v2455, %v2459
    %v2461 = vadd.s32 %v2460, 536870912
    %v2462 = vshrl.u32 %v2461, 30
    %v2463 = vshll.u32 %v2462, 30
    %v2464 = vsub.s32 %v2460, %v2463
    %vm2465 = vcmp.lt.s32.totalorder %v2464, 0
    %v2466 = vsub.s32 0, %v2464
    %v2467 = vsel %vm2465, %v2466, %v2464
    %v2468 = vclz %v2467
    %v2469 = vsub.s32 %v2468, 2
    %vm2470 = vcmp.gt.s32.totalorder 0, %v2469
    %v2471 = vsel %vm2470, 0, %v2469
    %v2472 = vsub.s32 32, %v2471
    %v2473 = vshll.u32 %v2464, %v2471
    %v2474 = vshrl.u32 %v2456, %v2472
    %v2475 = vor.u32 %v2473, %v2474
    %v2476 = vsub.s32 4294967266, %v2471
    %v2477 = vadd.s32 %v2476, 127
    %v2478 = vshll.u32 %v2477, 23
    %v2479 = vor.u32 4788187, %v2478
    %v2480 = vand.u32 2147483647, %v2479
    %v2482 = vcvt.s32.f32 %v2475
    %v2483 = vmul.f32 %v2482, %v2480
    %v2484 = vxor.u32 %v2483, 2147483648
    %v2485 = vsel %vm2402, %v2484, %v2483
    %v2486 = vsub.s32 4, %v2462
    %v2487 = vsel %vm2402, %v2486, %v2462
    %v2488 = vsel %vm2401, %v1671, %v2485
    %v2489 = vsel %vm2401, 0, %v2487
    %v2490 = vcosq.f32.pop %v2488
    %v2491 = vsinq.f32.pop %v2488
    %vm2492 = vweird.f32 %v1671
    %v2493 = vadd.s32 %v2489, 3
    %v2494 = vand.u32 %v2493, 3
    %vm2495 = vcmp.lt.s32.totalorder %v2494, 2
    %vm2496 = vcmp.eq.s32.totalorder %v2494, 0
    %v2497 = vxor.u32 %v2491, 2147483648
    %v2498 = vsel %vm2496, %v2490, %v2497
    %vm2499 = vcmp.eq.s32.totalorder %v2494, 2
    %v2500 = vxor.u32 %v2490, 2147483648
    %v2501 = vsel %vm2499, %v2500, %v2491
    %v2502 = vsel %vm2495, %v2498, %v2501
    %v2503 = vsel %vm2492, nan, %v2502
    %2504 = vst [vmem:[#allocation2] sm:$0xff] %v1775
    %2505 = vst [vmem:[#allocation2 + $0x10] sm:$0xff] %v1879
    %2506 = vst [vmem:[#allocation2 + $0x20] sm:$0xff] %v1983
    %2507 = vst [vmem:[#allocation2 + $0x30] sm:$0xff] %v2087
    %2508 = vst [vmem:[#allocation2 + $0x40] sm:$0xff] %v2191
    %2509 = vst [vmem:[#allocation2 + $0x50] sm:$0xff] %v2295
    %2510 = vst [vmem:[#allocation2 + $0x60] sm:$0xff] %v2399
    %2511 = vst [vmem:[#allocation2 + $0x70] sm:$0xff] %v2503
    %2512 = vst [vmem:[#allocation3] sm:$0xff] %v1480
    %2513 = vst [vmem:[#allocation3 + $0x10] sm:$0xff] %v1481
    %2514 = vst [vmem:[#allocation3 + $0x20] sm:$0xff] %v1482
    %2515 = vst [vmem:[#allocation3 + $0x30] sm:$0xff] %v1483
    %2516 = vst [vmem:[#allocation3 + $0x40] sm:$0xff] %v1484
    %2517 = vst [vmem:[#allocation3 + $0x50] sm:$0xff] %v1485
    %2518 = vst [vmem:[#allocation3 + $0x60] sm:$0xff] %v1486
    %2519 = vst [vmem:[#allocation3 + $0x70] sm:$0xff] %v1487
    %s2520 = scalar_lea.vmem [#allocation6], 128
    %v2521 = vld [vmem:[%s2520] sm:$0xff]
    %v2522 = vld [vmem:[%s2520 + $0x8] sm:$0xff]
    %v2523 = vld [vmem:[%s2520 + $0x10] sm:$0xff]
    %v2524 = vld [vmem:[%s2520 + $0x18] sm:$0xff]
    %v2525 = vld [vmem:[%s2520 + $0x20] sm:$0xff]
    %v2526 = vld [vmem:[%s2520 + $0x28] sm:$0xff]
    %v2527 = vld [vmem:[%s2520 + $0x30] sm:$0xff]
    %v2528 = vld [vmem:[%s2520 + $0x38] sm:$0xff]
    %v2529 = vld [vmem:[%s2520 + $0x40] sm:$0xff]
    %v2530 = vld [vmem:[%s2520 + $0x48] sm:$0xff]
    %v2531 = vld [vmem:[%s2520 + $0x50] sm:$0xff]
    %v2532 = vld [vmem:[%s2520 + $0x58] sm:$0xff]
    %v2533 = vld [vmem:[%s2520 + $0x60] sm:$0xff]
    %v2534 = vld [vmem:[%s2520 + $0x68] sm:$0xff]
    %v2535 = vld [vmem:[%s2520 + $0x70] sm:$0xff]
    %v2536 = vld [vmem:[%s2520 + $0x78] sm:$0xff]
    %s2537 = scalar_lea.vmem %s9, 1
    %v2538 = vld [vmem:[%s2537] sm:$0x1]
    %v2540 = vlaneseq
    %v2541 = vshrl.u32 %v2540, 7
    %v2542 = vsub.s32 0, %v2541
    %v2543 = vrot.slane %v2538, %v2542
    %2545 = vmatprep.subr.mxu0 0.0
    %2546 = vmatpush1.msra.mxu0 %v2521
    %2547 = vmatprep.subr.mxu0 0.0
    %2548 = vmatpush1.msra.mxu0 %v2522
    %2549 = vmatprep.subr.mxu0 0.0
    %2550 = vmatpush1.msra.mxu0 %v2523
    %2551 = vmatprep.subr.mxu0 0.0
    %2552 = vmatpush1.msra.mxu0 %v2524
    %2553 = vmatprep.subr.mxu0 0.0
    %2554 = vmatpush1.msra.mxu0 %v2525
    %2555 = vmatprep.subr.mxu0 0.0
    %2556 = vmatpush1.msra.mxu0 %v2526
    %2557 = vmatprep.subr.mxu0 0.0
    %2558 = vmatpush1.msra.mxu0 %v2527
    %2559 = vmatprep.subr.mxu0 0.0
    %2560 = vmatpush1.msra.mxu0 %v2528
    %2561 = vmatprep.subr.mxu0 0.0
    %2562 = vmatpush1.msra.mxu0 %v2529
    %2563 = vmatprep.subr.mxu0 0.0
    %2564 = vmatpush1.msra.mxu0 %v2530
    %2565 = vmatprep.subr.mxu0 0.0
    %2566 = vmatpush1.msra.mxu0 %v2531
    %2567 = vmatprep.subr.mxu0 0.0
    %2568 = vmatpush1.msra.mxu0 %v2532
    %2569 = vmatprep.subr.mxu0 0.0
    %2570 = vmatpush1.msra.mxu0 %v2533
    %2571 = vmatprep.subr.mxu0 0.0
    %2572 = vmatpush1.msra.mxu0 %v2534
    %2573 = vmatprep.subr.mxu0 0.0
    %2574 = vmatpush1.msra.mxu0 %v2535
    %2575 = vmatprep.subr.mxu0 0.0
    %2576 = vmatpush1.msra.mxu0 %v2536
    %2577 = vmatprep.subr.mxu0 0.0
    %2578 = vmatpush1.msra.mxu0 0.0
    %2579 = vmatprep.subr.mxu0 0.0
    %2580 = vmatpush1.msra.mxu0 0.0
    %2581 = vmatprep.subr.mxu0 0.0
    %2582 = vmatpush1.msra.mxu0 0.0
    %2583 = vmatprep.subr.mxu0 0.0
    %2584 = vmatpush1.msra.mxu0 0.0
    %2585 = vmatprep.subr.mxu0 0.0
    %2586 = vmatpush1.msra.mxu0 0.0
    %2587 = vmatprep.subr.mxu0 0.0
    %2588 = vmatpush1.msra.mxu0 0.0
    %2589 = vmatprep.subr.mxu0 0.0
    %2590 = vmatpush1.msra.mxu0 0.0
    %2591 = vmatprep.subr.mxu0 0.0
    %2592 = vmatpush1.msra.mxu0 0.0
    %2593 = vmatprep.subr.mxu0 0.0
    %2594 = vmatpush1.msra.mxu0 0.0
    %2595 = vmatprep.subr.mxu0 0.0
    %2596 = vmatpush1.msra.mxu0 0.0
    %2597 = vmatprep.subr.mxu0 0.0
    %2598 = vmatpush1.msra.mxu0 0.0
    %2599 = vmatprep.subr.mxu0 0.0
    %2600 = vmatpush1.msra.mxu0 0.0
    %2601 = vmatprep.subr.mxu0 0.0
    %2602 = vmatpush1.msra.mxu0 0.0
    %2603 = vmatprep.subr.mxu0 0.0
    %2604 = vmatpush1.msra.mxu0 0.0
    %2605 = vmatprep.subr.mxu0 0.0
    %2606 = vmatpush1.msra.mxu0 0.0
    %2607 = vmatprep.subr.mxu0 0.0
    %2608 = vmatpush1.msra.mxu0 0.0
    %2609 = vmatprep.mubr.f32.mxu0 0.0
    %2610 = vmatmul.mubr.f32.gmra.mrb[0].mxu0 %v1480
    %v2611 = vpop.f32.mrb[0].mxu0
    %v2612 = vadd.f32 %v2543, %v2611
    %v2613 = vpop.f32.mrb[0].mxu0
    %2614 = vmatprep.mubr.f32.mxu0 0.0
    %2615 = vmatmul.mubr.f32.gmra.mrb[0].mxu0 %v1481
    %v2616 = vpop.f32.mrb[0].mxu0
    %v2617 = vadd.f32 %v2543, %v2616
    %v2618 = vpop.f32.mrb[0].mxu0
    %2619 = vmatprep.mubr.f32.mxu0 0.0
    %2620 = vmatmul.mubr.f32.gmra.mrb[0].mxu0 %v1482
    %v2621 = vpop.f32.mrb[0].mxu0
    %v2622 = vadd.f32 %v2543, %v2621
    %v2623 = vpop.f32.mrb[0].mxu0
    %2624 = vmatprep.mubr.f32.mxu0 0.0
    %2625 = vmatmul.mubr.f32.gmra.mrb[0].mxu0 %v1483
    %v2626 = vpop.f32.mrb[0].mxu0
    %v2627 = vadd.f32 %v2543, %v2626
    %v2628 = vpop.f32.mrb[0].mxu0
    %2629 = vmatprep.mubr.f32.mxu0 0.0
    %2630 = vmatmul.mubr.f32.gmra.mrb[0].mxu0 %v1484
    %v2631 = vpop.f32.mrb[0].mxu0
    %v2632 = vadd.f32 %v2543, %v2631
    %v2633 = vpop.f32.mrb[0].mxu0
    %2634 = vmatprep.mubr.f32.mxu0 0.0
    %2635 = vmatmul.mubr.f32.gmra.mrb[0].mxu0 %v1485
    %v2636 = vpop.f32.mrb[0].mxu0
    %v2637 = vadd.f32 %v2543, %v2636
    %v2638 = vpop.f32.mrb[0].mxu0
    %2639 = vmatprep.mubr.f32.mxu0 0.0
    %2640 = vmatmul.mubr.f32.gmra.mrb[0].mxu0 %v1486
    %v2641 = vpop.f32.mrb[0].mxu0
    %v2642 = vadd.f32 %v2543, %v2641
    %v2643 = vpop.f32.mrb[0].mxu0
    %2644 = vmatprep.mubr.f32.mxu0 0.0
    %2645 = vmatmul.mubr.f32.gmra.mrb[0].mxu0 %v1487
    %v2646 = vpop.f32.mrb[0].mxu0
    %v2647 = vadd.f32 %v2543, %v2646
    %v2648 = vpop.f32.mrb[0].mxu0
    %2649 = vdwg.mxu0
    %v2650 = vxor.u32 %v2612, 2147483648
    %v2651 = vxor.u32 %v2617, 2147483648
    %v2652 = vxor.u32 %v2622, 2147483648
    %v2653 = vxor.u32 %v2627, 2147483648
    %v2654 = vxor.u32 %v2632, 2147483648
    %v2655 = vxor.u32 %v2637, 2147483648
    %v2656 = vxor.u32 %v2642, 2147483648
    %v2657 = vxor.u32 %v2647, 2147483648
    %v2658 = vmul.f32 %v2650, 1.442695
    %v2659 = vpow.pop %v2658
    %v2660 = vmul.f32 %v2651, 1.442695
    %v2661 = vpow.pop %v2660
    %v2662 = vmul.f32 %v2652, 1.442695
    %v2663 = vpow.pop %v2662
    %v2664 = vmul.f32 %v2653, 1.442695
    %v2665 = vpow.pop %v2664
    %v2666 = vmul.f32 %v2654, 1.442695
    %v2667 = vpow.pop %v2666
    %v2668 = vmul.f32 %v2655, 1.442695
    %v2669 = vpow.pop %v2668
    %v2670 = vmul.f32 %v2656, 1.442695
    %v2671 = vpow.pop %v2670
    %v2672 = vmul.f32 %v2657, 1.442695
    %v2673 = vpow.pop %v2672
    %v2674 = vadd.f32 %v2659, 1.0
    %v2675 = vadd.f32 %v2661, 1.0
    %v2676 = vadd.f32 %v2663, 1.0
    %v2677 = vadd.f32 %v2665, 1.0
    %v2678 = vadd.f32 %v2667, 1.0
    %v2679 = vadd.f32 %v2669, 1.0
    %v2680 = vadd.f32 %v2671, 1.0
    %v2681 = vadd.f32 %v2673, 1.0
    %v2682 = vrcp.pop %v2674
    %v2683 = vmul.f32 1.0, %v2682
    %v2684 = vrcp.pop %v2675
    %v2685 = vmul.f32 1.0, %v2684
    %v2686 = vrcp.pop %v2676
    %v2687 = vmul.f32 1.0, %v2686
    %v2688 = vrcp.pop %v2677
    %v2689 = vmul.f32 1.0, %v2688
    %v2690 = vrcp.pop %v2678
    %v2691 = vmul.f32 1.0, %v2690
    %v2692 = vrcp.pop %v2679
    %v2693 = vmul.f32 1.0, %v2692
    %v2694 = vrcp.pop %v2680
    %v2695 = vmul.f32 1.0, %v2694
    %v2696 = vrcp.pop %v2681
    %v2697 = vmul.f32 1.0, %v2696
    %v2698 = vmul.f32 %v2612, %v2683
    %v2699 = vmul.f32 %v2617, %v2685
    %v2700 = vmul.f32 %v2622, %v2687
    %v2701 = vmul.f32 %v2627, %v2689
    %v2702 = vmul.f32 %v2632, %v2691
    %v2703 = vmul.f32 %v2637, %v2693
    %v2704 = vmul.f32 %v2642, %v2695
    %v2705 = vmul.f32 %v2647, %v2697
    %s2706 = scalar_lea.vmem [#allocation4], 128
    %v2707 = vld [vmem:[%s2706] sm:$0xff]
    %v2708 = vld [vmem:[%s2706 + $0x8] sm:$0xff]
    %v2709 = vld [vmem:[%s2706 + $0x10] sm:$0xff]
    %v2710 = vld [vmem:[%s2706 + $0x18] sm:$0xff]
    %v2711 = vld [vmem:[%s2706 + $0x20] sm:$0xff]
    %v2712 = vld [vmem:[%s2706 + $0x28] sm:$0xff]
    %v2713 = vld [vmem:[%s2706 + $0x30] sm:$0xff]
    %v2714 = vld [vmem:[%s2706 + $0x38] sm:$0xff]
    %v2715 = vld [vmem:[%s2706 + $0x40] sm:$0xff]
    %v2716 = vld [vmem:[%s2706 + $0x48] sm:$0xff]
    %v2717 = vld [vmem:[%s2706 + $0x50] sm:$0xff]
    %v2718 = vld [vmem:[%s2706 + $0x58] sm:$0xff]
    %v2719 = vld [vmem:[%s2706 + $0x60] sm:$0xff]
    %v2720 = vld [vmem:[%s2706 + $0x68] sm:$0xff]
    %v2721 = vld [vmem:[%s2706 + $0x70] sm:$0xff]
    %v2722 = vld [vmem:[%s2706 + $0x78] sm:$0xff]
    %s2723 = scalar_lea.vmem %s7, 1
    %v2724 = vld [vmem:[%s2723] sm:$0x1]
    %v2726 = vlaneseq
    %v2727 = vshrl.u32 %v2726, 7
    %v2728 = vsub.s32 0, %v2727
    %v2729 = vrot.slane %v2724, %v2728
    %2731 = vmatprep.subr.mxu0 0.0
    %2732 = vmatpush1.msra.mxu0 %v2707
    %2733 = vmatprep.subr.mxu0 0.0
    %2734 = vmatpush1.msra.mxu0 %v2708
    %2735 = vmatprep.subr.mxu0 0.0
    %2736 = vmatpush1.msra.mxu0 %v2709
    %2737 = vmatprep.subr.mxu0 0.0
    %2738 = vmatpush1.msra.mxu0 %v2710
    %2739 = vmatprep.subr.mxu0 0.0
    %2740 = vmatpush1.msra.mxu0 %v2711
    %2741 = vmatprep.subr.mxu0 0.0
    %2742 = vmatpush1.msra.mxu0 %v2712
    %2743 = vmatprep.subr.mxu0 0.0
    %2744 = vmatpush1.msra.mxu0 %v2713
    %2745 = vmatprep.subr.mxu0 0.0
    %2746 = vmatpush1.msra.mxu0 %v2714
    %2747 = vmatprep.subr.mxu0 0.0
    %2748 = vmatpush1.msra.mxu0 %v2715
    %2749 = vmatprep.subr.mxu0 0.0
    %2750 = vmatpush1.msra.mxu0 %v2716
    %2751 = vmatprep.subr.mxu0 0.0
    %2752 = vmatpush1.msra.mxu0 %v2717
    %2753 = vmatprep.subr.mxu0 0.0
    %2754 = vmatpush1.msra.mxu0 %v2718
    %2755 = vmatprep.subr.mxu0 0.0
    %2756 = vmatpush1.msra.mxu0 %v2719
    %2757 = vmatprep.subr.mxu0 0.0
    %2758 = vmatpush1.msra.mxu0 %v2720
    %2759 = vmatprep.subr.mxu0 0.0
    %2760 = vmatpush1.msra.mxu0 %v2721
    %2761 = vmatprep.subr.mxu0 0.0
    %2762 = vmatpush1.msra.mxu0 %v2722
    %2763 = vmatprep.subr.mxu0 0.0
    %2764 = vmatpush1.msra.mxu0 0.0
    %2765 = vmatprep.subr.mxu0 0.0
    %2766 = vmatpush1.msra.mxu0 0.0
    %2767 = vmatprep.subr.mxu0 0.0
    %2768 = vmatpush1.msra.mxu0 0.0
    %2769 = vmatprep.subr.mxu0 0.0
    %2770 = vmatpush1.msra.mxu0 0.0
    %2771 = vmatprep.subr.mxu0 0.0
    %2772 = vmatpush1.msra.mxu0 0.0
    %2773 = vmatprep.subr.mxu0 0.0
    %2774 = vmatpush1.msra.mxu0 0.0
    %2775 = vmatprep.subr.mxu0 0.0
    %2776 = vmatpush1.msra.mxu0 0.0
    %2777 = vmatprep.subr.mxu0 0.0
    %2778 = vmatpush1.msra.mxu0 0.0
    %2779 = vmatprep.subr.mxu0 0.0
    %2780 = vmatpush1.msra.mxu0 0.0
    %2781 = vmatprep.subr.mxu0 0.0
    %2782 = vmatpush1.msra.mxu0 0.0
    %2783 = vmatprep.subr.mxu0 0.0
    %2784 = vmatpush1.msra.mxu0 0.0
    %2785 = vmatprep.subr.mxu0 0.0
    %2786 = vmatpush1.msra.mxu0 0.0
    %2787 = vmatprep.subr.mxu0 0.0
    %2788 = vmatpush1.msra.mxu0 0.0
    %2789 = vmatprep.subr.mxu0 0.0
    %2790 = vmatpush1.msra.mxu0 0.0
    %2791 = vmatprep.subr.mxu0 0.0
    %2792 = vmatpush1.msra.mxu0 0.0
    %2793 = vmatprep.subr.mxu0 0.0
    %2794 = vmatpush1.msra.mxu0 0.0
    %2795 = vmatprep.mubr.f32.mxu0 0.0
    %2796 = vmatmul.mubr.f32.gmra.mrb[0].mxu0 %v1775
    %v2797 = vpop.f32.mrb[0].mxu0
    %v2798 = vadd.f32 %v2729, %v2797
    %v2799 = vpop.f32.mrb[0].mxu0
    %2800 = vmatprep.mubr.f32.mxu0 0.0
    %2801 = vmatmul.mubr.f32.gmra.mrb[0].mxu0 %v1879
    %v2802 = vpop.f32.mrb[0].mxu0
    %v2803 = vadd.f32 %v2729, %v2802
    %v2804 = vpop.f32.mrb[0].mxu0
    %2805 = vmatprep.mubr.f32.mxu0 0.0
    %2806 = vmatmul.mubr.f32.gmra.mrb[0].mxu0 %v1983
    %v2807 = vpop.f32.mrb[0].mxu0
    %v2808 = vadd.f32 %v2729, %v2807
    %v2809 = vpop.f32.mrb[0].mxu0
    %2810 = vmatprep.mubr.f32.mxu0 0.0
    %2811 = vmatmul.mubr.f32.gmra.mrb[0].mxu0 %v2087
    %v2812 = vpop.f32.mrb[0].mxu0
    %v2813 = vadd.f32 %v2729, %v2812
    %v2814 = vpop.f32.mrb[0].mxu0
    %2815 = vmatprep.mubr.f32.mxu0 0.0
    %2816 = vmatmul.mubr.f32.gmra.mrb[0].mxu0 %v2191
    %v2817 = vpop.f32.mrb[0].mxu0
    %v2818 = vadd.f32 %v2729, %v2817
    %v2819 = vpop.f32.mrb[0].mxu0
    %2820 = vmatprep.mubr.f32.mxu0 0.0
    %2821 = vmatmul.mubr.f32.gmra.mrb[0].mxu0 %v2295
    %v2822 = vpop.f32.mrb[0].mxu0
    %v2823 = vadd.f32 %v2729, %v2822
    %v2824 = vpop.f32.mrb[0].mxu0
    %2825 = vmatprep.mubr.f32.mxu0 0.0
    %2826 = vmatmul.mubr.f32.gmra.mrb[0].mxu0 %v2399
    %v2827 = vpop.f32.mrb[0].mxu0
    %v2828 = vadd.f32 %v2729, %v2827
    %v2829 = vpop.f32.mrb[0].mxu0
    %2830 = vmatprep.mubr.f32.mxu0 0.0
    %2831 = vmatmul.mubr.f32.gmra.mrb[0].mxu0 %v2503
    %v2832 = vpop.f32.mrb[0].mxu0
    %v2833 = vadd.f32 %v2729, %v2832
    %v2834 = vpop.f32.mrb[0].mxu0
    %2835 = vdwg.mxu0
    %v2836 = vxor.u32 %v2798, 2147483648
    %v2837 = vxor.u32 %v2803, 2147483648
    %v2838 = vxor.u32 %v2808, 2147483648
    %v2839 = vxor.u32 %v2813, 2147483648
    %v2840 = vxor.u32 %v2818, 2147483648
    %v2841 = vxor.u32 %v2823, 2147483648
    %v2842 = vxor.u32 %v2828, 2147483648
    %v2843 = vxor.u32 %v2833, 2147483648
    %v2844 = vmul.f32 %v2836, 1.442695
    %v2845 = vpow.pop %v2844
    %v2846 = vmul.f32 %v2837, 1.442695
    %v2847 = vpow.pop %v2846
    %v2848 = vmul.f32 %v2838, 1.442695
    %v2849 = vpow.pop %v2848
    %v2850 = vmul.f32 %v2839, 1.442695
    %v2851 = vpow.pop %v2850
    %v2852 = vmul.f32 %v2840, 1.442695
    %v2853 = vpow.pop %v2852
    %v2854 = vmul.f32 %v2841, 1.442695
    %v2855 = vpow.pop %v2854
    %v2856 = vmul.f32 %v2842, 1.442695
    %v2857 = vpow.pop %v2856
    %v2858 = vmul.f32 %v2843, 1.442695
    %v2859 = vpow.pop %v2858
    %v2860 = vadd.f32 %v2845, 1.0
    %v2861 = vadd.f32 %v2847, 1.0
    %v2862 = vadd.f32 %v2849, 1.0
    %v2863 = vadd.f32 %v2851, 1.0
    %v2864 = vadd.f32 %v2853, 1.0
    %v2865 = vadd.f32 %v2855, 1.0
    %v2866 = vadd.f32 %v2857, 1.0
    %v2867 = vadd.f32 %v2859, 1.0
    %v2868 = vrcp.pop %v2860
    %v2869 = vmul.f32 1.0, %v2868
    %v2870 = vrcp.pop %v2861
    %v2871 = vmul.f32 1.0, %v2870
    %v2872 = vrcp.pop %v2862
    %v2873 = vmul.f32 1.0, %v2872
    %v2874 = vrcp.pop %v2863
    %v2875 = vmul.f32 1.0, %v2874
    %v2876 = vrcp.pop %v2864
    %v2877 = vmul.f32 1.0, %v2876
    %v2878 = vrcp.pop %v2865
    %v2879 = vmul.f32 1.0, %v2878
    %v2880 = vrcp.pop %v2866
    %v2881 = vmul.f32 1.0, %v2880
    %v2882 = vrcp.pop %v2867
    %v2883 = vmul.f32 1.0, %v2882
    %v2884 = vmul.f32 %v2798, %v2869
    %v2885 = vmul.f32 %v2803, %v2871
    %v2886 = vmul.f32 %v2808, %v2873
    %v2887 = vmul.f32 %v2813, %v2875
    %v2888 = vmul.f32 %v2818, %v2877
    %v2889 = vmul.f32 %v2823, %v2879
    %v2890 = vmul.f32 %v2828, %v2881
    %v2891 = vmul.f32 %v2833, %v2883
    %v2892 = vand.u32 2147483647, %v2884
    %vm2893 = vcmp.le.f32.partialorder %v2892, 0.7853982
    %vm2894 = vcmp.lt.s32.totalorder %v2884, 0
    %v2895 = vand.u32 %v2884, 2139095040
    %v2896 = vshrl.u32 %v2895, 23
    %v2897 = vsub.s32 %v2896, 127
    %v2898 = vand.u32 2147483647, %v2884
    %v2899 = vand.u32 %v2898, 8388607
    %v2900 = vor.u32 %v2899, 8388608
    %v2901 = vsub.s32 0, %v2900
    %v2902 = vadd.s32 %v2897, 1
    %vm2903 = vcmp.gt.s32.totalorder %v2902, 0
    %v2904 = vsel %vm2903, %v2902, 0
    %v2905 = vshrl.u32 %v2904, 5
    %v2906 = vand.u32 %v2904, 31
    %v2907 = vsub.s32 32, %v2906
    %v2908 = vshrl.u32 683565275, %v2907
    %v2909 = vshll.u32 683565275, %v2906
    %v2910 = vshrl.u32 2475754826, %v2907
    %v2911 = vor.u32 %v2909, %v2910
    %v2912 = vshll.u32 2475754826, %v2906
    %v2913 = vshrl.u32 2131351028, %v2907
    %v2914 = vor.u32 %v2912, %v2913
    %v2915 = vshll.u32 2131351028, %v2906
    %v2916 = vshrl.u32 2102212464, %v2907
    %v2917 = vor.u32 %v2915, %v2916
    %v2918 = vshll.u32 2102212464, %v2906
    %v2919 = vshrl.u32 920167782, %v2907
    %v2920 = vor.u32 %v2918, %v2919
    %v2921 = vshll.u32 920167782, %v2906
    %v2922 = vshrl.u32 1326507024, %v2907
    %v2923 = vor.u32 %v2921, %v2922
    %vm2924 = vcmp.lt.s32.totalorder %v2905, 1
    %vm2925 = vcmp.lt.s32.totalorder %v2905, 2
    %vm2926 = vcmp.lt.s32.totalorder %v2905, 3
    %vm2927 = vcmp.lt.s32.totalorder %v2905, 4
    %v2928 = vsel %vm2924, %v2908, %v2911
    %v2929 = vsel %vm2927, %v2917, 2102212464
    %v2930 = vsel %vm2926, %v2914, %v2929
    %v2931 = vsel %vm2925, %v2928, %v2930
    %v2932 = vsel %vm2924, %v2911, %v2914
    %v2933 = vsel %vm2927, %v2920, 920167782
    %v2934 = vsel %vm2926, %v2917, %v2933
    %v2935 = vsel %vm2925, %v2932, %v2934
    %v2936 = vsel %vm2924, %v2914, %v2917
    %v2937 = vsel %vm2927, %v2923, 1326507024
    %v2938 = vsel %vm2926, %v2920, %v2937
    %v2939 = vsel %vm2925, %v2936, %v2938
    %v2940 = vshll.u32 %v2900, 8
    %v2941 = vmul.u32.u64.compose %v2940, %v2939
    %v2942 = vextract.low.u32 %v2941
    %v2943 = vextract.high.u32 %v2941
    %v2944 = vmul.u32.u64.compose %v2940, %v2935
    %v2945 = vextract.low.u32 %v2944
    %v2946 = vextract.high.u32 %v2944
    %v2947 = vmul.u32 %v2940, %v2931
    %v2948 = vadd.s32 %v2943, %v2945
    %vm2949 = vc.u32 %v2943, %v2945
    %v2950 = vadd.s32 %v2946, 1
    %v2951 = vsel %vm2949, %v2950, %v2946
    %v2952 = vadd.s32 %v2947, %v2951
    %v2953 = vadd.s32 %v2952, 536870912
    %v2954 = vshrl.u32 %v2953, 30
    %v2955 = vshll.u32 %v2954, 30
    %v2956 = vsub.s32 %v2952, %v2955
    %vm2957 = vcmp.lt.s32.totalorder %v2956, 0
    %v2958 = vsub.s32 0, %v2956
    %v2959 = vsel %vm2957, %v2958, %v2956
    %v2960 = vclz %v2959
    %v2961 = vsub.s32 %v2960, 2
    %vm2962 = vcmp.gt.s32.totalorder 0, %v2961
    %v2963 = vsel %vm2962, 0, %v2961
    %v2964 = vsub.s32 32, %v2963
    %v2965 = vshll.u32 %v2956, %v2963
    %v2966 = vshrl.u32 %v2948, %v2964
    %v2967 = vor.u32 %v2965, %v2966
    %v2968 = vsub.s32 4294967266, %v2963
    %v2969 = vadd.s32 %v2968, 127
    %v2970 = vshll.u32 %v2969, 23
    %v2971 = vor.u32 4788187, %v2970
    %v2972 = vand.u32 2147483647, %v2971
    %v2974 = vcvt.s32.f32 %v2967
    %v2975 = vmul.f32 %v2974, %v2972
    %v2976 = vxor.u32 %v2975, 2147483648
    %v2977 = vsel %vm2894, %v2976, %v2975
    %v2978 = vsub.s32 4, %v2954
    %v2979 = vsel %vm2894, %v2978, %v2954
    %v2980 = vsel %vm2893, %v2884, %v2977
    %v2981 = vsel %vm2893, 0, %v2979
    %v2982 = vcosq.f32.pop %v2980
    %v2983 = vsinq.f32.pop %v2980
    %vm2984 = vweird.f32 %v2884
    %v2985 = vadd.s32 %v2981, 3
    %v2986 = vand.u32 %v2985, 3
    %vm2987 = vcmp.lt.s32.totalorder %v2986, 2
    %vm2988 = vcmp.eq.s32.totalorder %v2986, 0
    %v2989 = vxor.u32 %v2983, 2147483648
    %v2990 = vsel %vm2988, %v2982, %v2989
    %vm2991 = vcmp.eq.s32.totalorder %v2986, 2
    %v2992 = vxor.u32 %v2982, 2147483648
    %v2993 = vsel %vm2991, %v2992, %v2983
    %v2994 = vsel %vm2987, %v2990, %v2993
    %v2995 = vsel %vm2984, nan, %v2994
    %v2996 = vand.u32 2147483647, %v2885
    %vm2997 = vcmp.le.f32.partialorder %v2996, 0.7853982
    %vm2998 = vcmp.lt.s32.totalorder %v2885, 0
    %v2999 = vand.u32 %v2885, 2139095040
    %v3000 = vshrl.u32 %v2999, 23
    %v3001 = vsub.s32 %v3000, 127
    %v3002 = vand.u32 2147483647, %v2885
    %v3003 = vand.u32 %v3002, 8388607
    %v3004 = vor.u32 %v3003, 8388608
    %v3005 = vsub.s32 0, %v3004
    %v3006 = vadd.s32 %v3001, 1
    %vm3007 = vcmp.gt.s32.totalorder %v3006, 0
    %v3008 = vsel %vm3007, %v3006, 0
    %v3009 = vshrl.u32 %v3008, 5
    %v3010 = vand.u32 %v3008, 31
    %v3011 = vsub.s32 32, %v3010
    %v3012 = vshrl.u32 683565275, %v3011
    %v3013 = vshll.u32 683565275, %v3010
    %v3014 = vshrl.u32 2475754826, %v3011
    %v3015 = vor.u32 %v3013, %v3014
    %v3016 = vshll.u32 2475754826, %v3010
    %v3017 = vshrl.u32 2131351028, %v3011
    %v3018 = vor.u32 %v3016, %v3017
    %v3019 = vshll.u32 2131351028, %v3010
    %v3020 = vshrl.u32 2102212464, %v3011
    %v3021 = vor.u32 %v3019, %v3020
    %v3022 = vshll.u32 2102212464, %v3010
    %v3023 = vshrl.u32 920167782, %v3011
    %v3024 = vor.u32 %v3022, %v3023
    %v3025 = vshll.u32 920167782, %v3010
    %v3026 = vshrl.u32 1326507024, %v3011
    %v3027 = vor.u32 %v3025, %v3026
    %vm3028 = vcmp.lt.s32.totalorder %v3009, 1
    %vm3029 = vcmp.lt.s32.totalorder %v3009, 2
    %vm3030 = vcmp.lt.s32.totalorder %v3009, 3
    %vm3031 = vcmp.lt.s32.totalorder %v3009, 4
    %v3032 = vsel %vm3028, %v3012, %v3015
    %v3033 = vsel %vm3031, %v3021, 2102212464
    %v3034 = vsel %vm3030, %v3018, %v3033
    %v3035 = vsel %vm3029, %v3032, %v3034
    %v3036 = vsel %vm3028, %v3015, %v3018
    %v3037 = vsel %vm3031, %v3024, 920167782
    %v3038 = vsel %vm3030, %v3021, %v3037
    %v3039 = vsel %vm3029, %v3036, %v3038
    %v3040 = vsel %vm3028, %v3018, %v3021
    %v3041 = vsel %vm3031, %v3027, 1326507024
    %v3042 = vsel %vm3030, %v3024, %v3041
    %v3043 = vsel %vm3029, %v3040, %v3042
    %v3044 = vshll.u32 %v3004, 8
    %v3045 = vmul.u32.u64.compose %v3044, %v3043
    %v3046 = vextract.low.u32 %v3045
    %v3047 = vextract.high.u32 %v3045
    %v3048 = vmul.u32.u64.compose %v3044, %v3039
    %v3049 = vextract.low.u32 %v3048
    %v3050 = vextract.high.u32 %v3048
    %v3051 = vmul.u32 %v3044, %v3035
    %v3052 = vadd.s32 %v3047, %v3049
    %vm3053 = vc.u32 %v3047, %v3049
    %v3054 = vadd.s32 %v3050, 1
    %v3055 = vsel %vm3053, %v3054, %v3050
    %v3056 = vadd.s32 %v3051, %v3055
    %v3057 = vadd.s32 %v3056, 536870912
    %v3058 = vshrl.u32 %v3057, 30
    %v3059 = vshll.u32 %v3058, 30
    %v3060 = vsub.s32 %v3056, %v3059
    %vm3061 = vcmp.lt.s32.totalorder %v3060, 0
    %v3062 = vsub.s32 0, %v3060
    %v3063 = vsel %vm3061, %v3062, %v3060
    %v3064 = vclz %v3063
    %v3065 = vsub.s32 %v3064, 2
    %vm3066 = vcmp.gt.s32.totalorder 0, %v3065
    %v3067 = vsel %vm3066, 0, %v3065
    %v3068 = vsub.s32 32, %v3067
    %v3069 = vshll.u32 %v3060, %v3067
    %v3070 = vshrl.u32 %v3052, %v3068
    %v3071 = vor.u32 %v3069, %v3070
    %v3072 = vsub.s32 4294967266, %v3067
    %v3073 = vadd.s32 %v3072, 127
    %v3074 = vshll.u32 %v3073, 23
    %v3075 = vor.u32 4788187, %v3074
    %v3076 = vand.u32 2147483647, %v3075
    %v3078 = vcvt.s32.f32 %v3071
    %v3079 = vmul.f32 %v3078, %v3076
    %v3080 = vxor.u32 %v3079, 2147483648
    %v3081 = vsel %vm2998, %v3080, %v3079
    %v3082 = vsub.s32 4, %v3058
    %v3083 = vsel %vm2998, %v3082, %v3058
    %v3084 = vsel %vm2997, %v2885, %v3081
    %v3085 = vsel %vm2997, 0, %v3083
    %v3086 = vcosq.f32.pop %v3084
    %v3087 = vsinq.f32.pop %v3084
    %vm3088 = vweird.f32 %v2885
    %v3089 = vadd.s32 %v3085, 3
    %v3090 = vand.u32 %v3089, 3
    %vm3091 = vcmp.lt.s32.totalorder %v3090, 2
    %vm3092 = vcmp.eq.s32.totalorder %v3090, 0
    %v3093 = vxor.u32 %v3087, 2147483648
    %v3094 = vsel %vm3092, %v3086, %v3093
    %vm3095 = vcmp.eq.s32.totalorder %v3090, 2
    %v3096 = vxor.u32 %v3086, 2147483648
    %v3097 = vsel %vm3095, %v3096, %v3087
    %v3098 = vsel %vm3091, %v3094, %v3097
    %v3099 = vsel %vm3088, nan, %v3098
    %v3100 = vand.u32 2147483647, %v2886
    %vm3101 = vcmp.le.f32.partialorder %v3100, 0.7853982
    %vm3102 = vcmp.lt.s32.totalorder %v2886, 0
    %v3103 = vand.u32 %v2886, 2139095040
    %v3104 = vshrl.u32 %v3103, 23
    %v3105 = vsub.s32 %v3104, 127
    %v3106 = vand.u32 2147483647, %v2886
    %v3107 = vand.u32 %v3106, 8388607
    %v3108 = vor.u32 %v3107, 8388608
    %v3109 = vsub.s32 0, %v3108
    %v3110 = vadd.s32 %v3105, 1
    %vm3111 = vcmp.gt.s32.totalorder %v3110, 0
    %v3112 = vsel %vm3111, %v3110, 0
    %v3113 = vshrl.u32 %v3112, 5
    %v3114 = vand.u32 %v3112, 31
    %v3115 = vsub.s32 32, %v3114
    %v3116 = vshrl.u32 683565275, %v3115
    %v3117 = vshll.u32 683565275, %v3114
    %v3118 = vshrl.u32 2475754826, %v3115
    %v3119 = vor.u32 %v3117, %v3118
    %v3120 = vshll.u32 2475754826, %v3114
    %v3121 = vshrl.u32 2131351028, %v3115
    %v3122 = vor.u32 %v3120, %v3121
    %v3123 = vshll.u32 2131351028, %v3114
    %v3124 = vshrl.u32 2102212464, %v3115
    %v3125 = vor.u32 %v3123, %v3124
    %v3126 = vshll.u32 2102212464, %v3114
    %v3127 = vshrl.u32 920167782, %v3115
    %v3128 = vor.u32 %v3126, %v3127
    %v3129 = vshll.u32 920167782, %v3114
    %v3130 = vshrl.u32 1326507024, %v3115
    %v3131 = vor.u32 %v3129, %v3130
    %vm3132 = vcmp.lt.s32.totalorder %v3113, 1
    %vm3133 = vcmp.lt.s32.totalorder %v3113, 2
    %vm3134 = vcmp.lt.s32.totalorder %v3113, 3
    %vm3135 = vcmp.lt.s32.totalorder %v3113, 4
    %v3136 = vsel %vm3132, %v3116, %v3119
    %v3137 = vsel %vm3135, %v3125, 2102212464
    %v3138 = vsel %vm3134, %v3122, %v3137
    %v3139 = vsel %vm3133, %v3136, %v3138
    %v3140 = vsel %vm3132, %v3119, %v3122
    %v3141 = vsel %vm3135, %v3128, 920167782
    %v3142 = vsel %vm3134, %v3125, %v3141
    %v3143 = vsel %vm3133, %v3140, %v3142
    %v3144 = vsel %vm3132, %v3122, %v3125
    %v3145 = vsel %vm3135, %v3131, 1326507024
    %v3146 = vsel %vm3134, %v3128, %v3145
    %v3147 = vsel %vm3133, %v3144, %v3146
    %v3148 = vshll.u32 %v3108, 8
    %v3149 = vmul.u32.u64.compose %v3148, %v3147
    %v3150 = vextract.low.u32 %v3149
    %v3151 = vextract.high.u32 %v3149
    %v3152 = vmul.u32.u64.compose %v3148, %v3143
    %v3153 = vextract.low.u32 %v3152
    %v3154 = vextract.high.u32 %v3152
    %v3155 = vmul.u32 %v3148, %v3139
    %v3156 = vadd.s32 %v3151, %v3153
    %vm3157 = vc.u32 %v3151, %v3153
    %v3158 = vadd.s32 %v3154, 1
    %v3159 = vsel %vm3157, %v3158, %v3154
    %v3160 = vadd.s32 %v3155, %v3159
    %v3161 = vadd.s32 %v3160, 536870912
    %v3162 = vshrl.u32 %v3161, 30
    %v3163 = vshll.u32 %v3162, 30
    %v3164 = vsub.s32 %v3160, %v3163
    %vm3165 = vcmp.lt.s32.totalorder %v3164, 0
    %v3166 = vsub.s32 0, %v3164
    %v3167 = vsel %vm3165, %v3166, %v3164
    %v3168 = vclz %v3167
    %v3169 = vsub.s32 %v3168, 2
    %vm3170 = vcmp.gt.s32.totalorder 0, %v3169
    %v3171 = vsel %vm3170, 0, %v3169
    %v3172 = vsub.s32 32, %v3171
    %v3173 = vshll.u32 %v3164, %v3171
    %v3174 = vshrl.u32 %v3156, %v3172
    %v3175 = vor.u32 %v3173, %v3174
    %v3176 = vsub.s32 4294967266, %v3171
    %v3177 = vadd.s32 %v3176, 127
    %v3178 = vshll.u32 %v3177, 23
    %v3179 = vor.u32 4788187, %v3178
    %v3180 = vand.u32 2147483647, %v3179
    %v3182 = vcvt.s32.f32 %v3175
    %v3183 = vmul.f32 %v3182, %v3180
    %v3184 = vxor.u32 %v3183, 2147483648
    %v3185 = vsel %vm3102, %v3184, %v3183
    %v3186 = vsub.s32 4, %v3162
    %v3187 = vsel %vm3102, %v3186, %v3162
    %v3188 = vsel %vm3101, %v2886, %v3185
    %v3189 = vsel %vm3101, 0, %v3187
    %v3190 = vcosq.f32.pop %v3188
    %v3191 = vsinq.f32.pop %v3188
    %vm3192 = vweird.f32 %v2886
    %v3193 = vadd.s32 %v3189, 3
    %v3194 = vand.u32 %v3193, 3
    %vm3195 = vcmp.lt.s32.totalorder %v3194, 2
    %vm3196 = vcmp.eq.s32.totalorder %v3194, 0
    %v3197 = vxor.u32 %v3191, 2147483648
    %v3198 = vsel %vm3196, %v3190, %v3197
    %vm3199 = vcmp.eq.s32.totalorder %v3194, 2
    %v3200 = vxor.u32 %v3190, 2147483648
    %v3201 = vsel %vm3199, %v3200, %v3191
    %v3202 = vsel %vm3195, %v3198, %v3201
    %v3203 = vsel %vm3192, nan, %v3202
    %v3204 = vand.u32 2147483647, %v2887
    %vm3205 = vcmp.le.f32.partialorder %v3204, 0.7853982
    %vm3206 = vcmp.lt.s32.totalorder %v2887, 0
    %v3207 = vand.u32 %v2887, 2139095040
    %v3208 = vshrl.u32 %v3207, 23
    %v3209 = vsub.s32 %v3208, 127
    %v3210 = vand.u32 2147483647, %v2887
    %v3211 = vand.u32 %v3210, 8388607
    %v3212 = vor.u32 %v3211, 8388608
    %v3213 = vsub.s32 0, %v3212
    %v3214 = vadd.s32 %v3209, 1
    %vm3215 = vcmp.gt.s32.totalorder %v3214, 0
    %v3216 = vsel %vm3215, %v3214, 0
    %v3217 = vshrl.u32 %v3216, 5
    %v3218 = vand.u32 %v3216, 31
    %v3219 = vsub.s32 32, %v3218
    %v3220 = vshrl.u32 683565275, %v3219
    %v3221 = vshll.u32 683565275, %v3218
    %v3222 = vshrl.u32 2475754826, %v3219
    %v3223 = vor.u32 %v3221, %v3222
    %v3224 = vshll.u32 2475754826, %v3218
    %v3225 = vshrl.u32 2131351028, %v3219
    %v3226 = vor.u32 %v3224, %v3225
    %v3227 = vshll.u32 2131351028, %v3218
    %v3228 = vshrl.u32 2102212464, %v3219
    %v3229 = vor.u32 %v3227, %v3228
    %v3230 = vshll.u32 2102212464, %v3218
    %v3231 = vshrl.u32 920167782, %v3219
    %v3232 = vor.u32 %v3230, %v3231
    %v3233 = vshll.u32 920167782, %v3218
    %v3234 = vshrl.u32 1326507024, %v3219
    %v3235 = vor.u32 %v3233, %v3234
    %vm3236 = vcmp.lt.s32.totalorder %v3217, 1
    %vm3237 = vcmp.lt.s32.totalorder %v3217, 2
    %vm3238 = vcmp.lt.s32.totalorder %v3217, 3
    %vm3239 = vcmp.lt.s32.totalorder %v3217, 4
    %v3240 = vsel %vm3236, %v3220, %v3223
    %v3241 = vsel %vm3239, %v3229, 2102212464
    %v3242 = vsel %vm3238, %v3226, %v3241
    %v3243 = vsel %vm3237, %v3240, %v3242
    %v3244 = vsel %vm3236, %v3223, %v3226
    %v3245 = vsel %vm3239, %v3232, 920167782
    %v3246 = vsel %vm3238, %v3229, %v3245
    %v3247 = vsel %vm3237, %v3244, %v3246
    %v3248 = vsel %vm3236, %v3226, %v3229
    %v3249 = vsel %vm3239, %v3235, 1326507024
    %v3250 = vsel %vm3238, %v3232, %v3249
    %v3251 = vsel %vm3237, %v3248, %v3250
    %v3252 = vshll.u32 %v3212, 8
    %v3253 = vmul.u32.u64.compose %v3252, %v3251
    %v3254 = vextract.low.u32 %v3253
    %v3255 = vextract.high.u32 %v3253
    %v3256 = vmul.u32.u64.compose %v3252, %v3247
    %v3257 = vextract.low.u32 %v3256
    %v3258 = vextract.high.u32 %v3256
    %v3259 = vmul.u32 %v3252, %v3243
    %v3260 = vadd.s32 %v3255, %v3257
    %vm3261 = vc.u32 %v3255, %v3257
    %v3262 = vadd.s32 %v3258, 1
    %v3263 = vsel %vm3261, %v3262, %v3258
    %v3264 = vadd.s32 %v3259, %v3263
    %v3265 = vadd.s32 %v3264, 536870912
    %v3266 = vshrl.u32 %v3265, 30
    %v3267 = vshll.u32 %v3266, 30
    %v3268 = vsub.s32 %v3264, %v3267
    %vm3269 = vcmp.lt.s32.totalorder %v3268, 0
    %v3270 = vsub.s32 0, %v3268
    %v3271 = vsel %vm3269, %v3270, %v3268
    %v3272 = vclz %v3271
    %v3273 = vsub.s32 %v3272, 2
    %vm3274 = vcmp.gt.s32.totalorder 0, %v3273
    %v3275 = vsel %vm3274, 0, %v3273
    %v3276 = vsub.s32 32, %v3275
    %v3277 = vshll.u32 %v3268, %v3275
    %v3278 = vshrl.u32 %v3260, %v3276
    %v3279 = vor.u32 %v3277, %v3278
    %v3280 = vsub.s32 4294967266, %v3275
    %v3281 = vadd.s32 %v3280, 127
    %v3282 = vshll.u32 %v3281, 23
    %v3283 = vor.u32 4788187, %v3282
    %v3284 = vand.u32 2147483647, %v3283
    %v3286 = vcvt.s32.f32 %v3279
    %v3287 = vmul.f32 %v3286, %v3284
    %v3288 = vxor.u32 %v3287, 2147483648
    %v3289 = vsel %vm3206, %v3288, %v3287
    %v3290 = vsub.s32 4, %v3266
    %v3291 = vsel %vm3206, %v3290, %v3266
    %v3292 = vsel %vm3205, %v2887, %v3289
    %v3293 = vsel %vm3205, 0, %v3291
    %v3294 = vcosq.f32.pop %v3292
    %v3295 = vsinq.f32.pop %v3292
    %vm3296 = vweird.f32 %v2887
    %v3297 = vadd.s32 %v3293, 3
    %v3298 = vand.u32 %v3297, 3
    %vm3299 = vcmp.lt.s32.totalorder %v3298, 2
    %vm3300 = vcmp.eq.s32.totalorder %v3298, 0
    %v3301 = vxor.u32 %v3295, 2147483648
    %v3302 = vsel %vm3300, %v3294, %v3301
    %vm3303 = vcmp.eq.s32.totalorder %v3298, 2
    %v3304 = vxor.u32 %v3294, 2147483648
    %v3305 = vsel %vm3303, %v3304, %v3295
    %v3306 = vsel %vm3299, %v3302, %v3305
    %v3307 = vsel %vm3296, nan, %v3306
    %v3308 = vand.u32 2147483647, %v2888
    %vm3309 = vcmp.le.f32.partialorder %v3308, 0.7853982
    %vm3310 = vcmp.lt.s32.totalorder %v2888, 0
    %v3311 = vand.u32 %v2888, 2139095040
    %v3312 = vshrl.u32 %v3311, 23
    %v3313 = vsub.s32 %v3312, 127
    %v3314 = vand.u32 2147483647, %v2888
    %v3315 = vand.u32 %v3314, 8388607
    %v3316 = vor.u32 %v3315, 8388608
    %v3317 = vsub.s32 0, %v3316
    %v3318 = vadd.s32 %v3313, 1
    %vm3319 = vcmp.gt.s32.totalorder %v3318, 0
    %v3320 = vsel %vm3319, %v3318, 0
    %v3321 = vshrl.u32 %v3320, 5
    %v3322 = vand.u32 %v3320, 31
    %v3323 = vsub.s32 32, %v3322
    %v3324 = vshrl.u32 683565275, %v3323
    %v3325 = vshll.u32 683565275, %v3322
    %v3326 = vshrl.u32 2475754826, %v3323
    %v3327 = vor.u32 %v3325, %v3326
    %v3328 = vshll.u32 2475754826, %v3322
    %v3329 = vshrl.u32 2131351028, %v3323
    %v3330 = vor.u32 %v3328, %v3329
    %v3331 = vshll.u32 2131351028, %v3322
    %v3332 = vshrl.u32 2102212464, %v3323
    %v3333 = vor.u32 %v3331, %v3332
    %v3334 = vshll.u32 2102212464, %v3322
    %v3335 = vshrl.u32 920167782, %v3323
    %v3336 = vor.u32 %v3334, %v3335
    %v3337 = vshll.u32 920167782, %v3322
    %v3338 = vshrl.u32 1326507024, %v3323
    %v3339 = vor.u32 %v3337, %v3338
    %vm3340 = vcmp.lt.s32.totalorder %v3321, 1
    %vm3341 = vcmp.lt.s32.totalorder %v3321, 2
    %vm3342 = vcmp.lt.s32.totalorder %v3321, 3
    %vm3343 = vcmp.lt.s32.totalorder %v3321, 4
    %v3344 = vsel %vm3340, %v3324, %v3327
    %v3345 = vsel %vm3343, %v3333, 2102212464
    %v3346 = vsel %vm3342, %v3330, %v3345
    %v3347 = vsel %vm3341, %v3344, %v3346
    %v3348 = vsel %vm3340, %v3327, %v3330
    %v3349 = vsel %vm3343, %v3336, 920167782
    %v3350 = vsel %vm3342, %v3333, %v3349
    %v3351 = vsel %vm3341, %v3348, %v3350
    %v3352 = vsel %vm3340, %v3330, %v3333
    %v3353 = vsel %vm3343, %v3339, 1326507024
    %v3354 = vsel %vm3342, %v3336, %v3353
    %v3355 = vsel %vm3341, %v3352, %v3354
    %v3356 = vshll.u32 %v3316, 8
    %v3357 = vmul.u32.u64.compose %v3356, %v3355
    %v3358 = vextract.low.u32 %v3357
    %v3359 = vextract.high.u32 %v3357
    %v3360 = vmul.u32.u64.compose %v3356, %v3351
    %v3361 = vextract.low.u32 %v3360
    %v3362 = vextract.high.u32 %v3360
    %v3363 = vmul.u32 %v3356, %v3347
    %v3364 = vadd.s32 %v3359, %v3361
    %vm3365 = vc.u32 %v3359, %v3361
    %v3366 = vadd.s32 %v3362, 1
    %v3367 = vsel %vm3365, %v3366, %v3362
    %v3368 = vadd.s32 %v3363, %v3367
    %v3369 = vadd.s32 %v3368, 536870912
    %v3370 = vshrl.u32 %v3369, 30
    %v3371 = vshll.u32 %v3370, 30
    %v3372 = vsub.s32 %v3368, %v3371
    %vm3373 = vcmp.lt.s32.totalorder %v3372, 0
    %v3374 = vsub.s32 0, %v3372
    %v3375 = vsel %vm3373, %v3374, %v3372
    %v3376 = vclz %v3375
    %v3377 = vsub.s32 %v3376, 2
    %vm3378 = vcmp.gt.s32.totalorder 0, %v3377
    %v3379 = vsel %vm3378, 0, %v3377
    %v3380 = vsub.s32 32, %v3379
    %v3381 = vshll.u32 %v3372, %v3379
    %v3382 = vshrl.u32 %v3364, %v3380
    %v3383 = vor.u32 %v3381, %v3382
    %v3384 = vsub.s32 4294967266, %v3379
    %v3385 = vadd.s32 %v3384, 127
    %v3386 = vshll.u32 %v3385, 23
    %v3387 = vor.u32 4788187, %v3386
    %v3388 = vand.u32 2147483647, %v3387
    %v3390 = vcvt.s32.f32 %v3383
    %v3391 = vmul.f32 %v3390, %v3388
    %v3392 = vxor.u32 %v3391, 2147483648
    %v3393 = vsel %vm3310, %v3392, %v3391
    %v3394 = vsub.s32 4, %v3370
    %v3395 = vsel %vm3310, %v3394, %v3370
    %v3396 = vsel %vm3309, %v2888, %v3393
    %v3397 = vsel %vm3309, 0, %v3395
    %v3398 = vcosq.f32.pop %v3396
    %v3399 = vsinq.f32.pop %v3396
    %vm3400 = vweird.f32 %v2888
    %v3401 = vadd.s32 %v3397, 3
    %v3402 = vand.u32 %v3401, 3
    %vm3403 = vcmp.lt.s32.totalorder %v3402, 2
    %vm3404 = vcmp.eq.s32.totalorder %v3402, 0
    %v3405 = vxor.u32 %v3399, 2147483648
    %v3406 = vsel %vm3404, %v3398, %v3405
    %vm3407 = vcmp.eq.s32.totalorder %v3402, 2
    %v3408 = vxor.u32 %v3398, 2147483648
    %v3409 = vsel %vm3407, %v3408, %v3399
    %v3410 = vsel %vm3403, %v3406, %v3409
    %v3411 = vsel %vm3400, nan, %v3410
    %v3412 = vand.u32 2147483647, %v2889
    %vm3413 = vcmp.le.f32.partialorder %v3412, 0.7853982
    %vm3414 = vcmp.lt.s32.totalorder %v2889, 0
    %v3415 = vand.u32 %v2889, 2139095040
    %v3416 = vshrl.u32 %v3415, 23
    %v3417 = vsub.s32 %v3416, 127
    %v3418 = vand.u32 2147483647, %v2889
    %v3419 = vand.u32 %v3418, 8388607
    %v3420 = vor.u32 %v3419, 8388608
    %v3421 = vsub.s32 0, %v3420
    %v3422 = vadd.s32 %v3417, 1
    %vm3423 = vcmp.gt.s32.totalorder %v3422, 0
    %v3424 = vsel %vm3423, %v3422, 0
    %v3425 = vshrl.u32 %v3424, 5
    %v3426 = vand.u32 %v3424, 31
    %v3427 = vsub.s32 32, %v3426
    %v3428 = vshrl.u32 683565275, %v3427
    %v3429 = vshll.u32 683565275, %v3426
    %v3430 = vshrl.u32 2475754826, %v3427
    %v3431 = vor.u32 %v3429, %v3430
    %v3432 = vshll.u32 2475754826, %v3426
    %v3433 = vshrl.u32 2131351028, %v3427
    %v3434 = vor.u32 %v3432, %v3433
    %v3435 = vshll.u32 2131351028, %v3426
    %v3436 = vshrl.u32 2102212464, %v3427
    %v3437 = vor.u32 %v3435, %v3436
    %v3438 = vshll.u32 2102212464, %v3426
    %v3439 = vshrl.u32 920167782, %v3427
    %v3440 = vor.u32 %v3438, %v3439
    %v3441 = vshll.u32 920167782, %v3426
    %v3442 = vshrl.u32 1326507024, %v3427
    %v3443 = vor.u32 %v3441, %v3442
    %vm3444 = vcmp.lt.s32.totalorder %v3425, 1
    %vm3445 = vcmp.lt.s32.totalorder %v3425, 2
    %vm3446 = vcmp.lt.s32.totalorder %v3425, 3
    %vm3447 = vcmp.lt.s32.totalorder %v3425, 4
    %v3448 = vsel %vm3444, %v3428, %v3431
    %v3449 = vsel %vm3447, %v3437, 2102212464
    %v3450 = vsel %vm3446, %v3434, %v3449
    %v3451 = vsel %vm3445, %v3448, %v3450
    %v3452 = vsel %vm3444, %v3431, %v3434
    %v3453 = vsel %vm3447, %v3440, 920167782
    %v3454 = vsel %vm3446, %v3437, %v3453
    %v3455 = vsel %vm3445, %v3452, %v3454
    %v3456 = vsel %vm3444, %v3434, %v3437
    %v3457 = vsel %vm3447, %v3443, 1326507024
    %v3458 = vsel %vm3446, %v3440, %v3457
    %v3459 = vsel %vm3445, %v3456, %v3458
    %v3460 = vshll.u32 %v3420, 8
    %v3461 = vmul.u32.u64.compose %v3460, %v3459
    %v3462 = vextract.low.u32 %v3461
    %v3463 = vextract.high.u32 %v3461
    %v3464 = vmul.u32.u64.compose %v3460, %v3455
    %v3465 = vextract.low.u32 %v3464
    %v3466 = vextract.high.u32 %v3464
    %v3467 = vmul.u32 %v3460, %v3451
    %v3468 = vadd.s32 %v3463, %v3465
    %vm3469 = vc.u32 %v3463, %v3465
    %v3470 = vadd.s32 %v3466, 1
    %v3471 = vsel %vm3469, %v3470, %v3466
    %v3472 = vadd.s32 %v3467, %v3471
    %v3473 = vadd.s32 %v3472, 536870912
    %v3474 = vshrl.u32 %v3473, 30
    %v3475 = vshll.u32 %v3474, 30
    %v3476 = vsub.s32 %v3472, %v3475
    %vm3477 = vcmp.lt.s32.totalorder %v3476, 0
    %v3478 = vsub.s32 0, %v3476
    %v3479 = vsel %vm3477, %v3478, %v3476
    %v3480 = vclz %v3479
    %v3481 = vsub.s32 %v3480, 2
    %vm3482 = vcmp.gt.s32.totalorder 0, %v3481
    %v3483 = vsel %vm3482, 0, %v3481
    %v3484 = vsub.s32 32, %v3483
    %v3485 = vshll.u32 %v3476, %v3483
    %v3486 = vshrl.u32 %v3468, %v3484
    %v3487 = vor.u32 %v3485, %v3486
    %v3488 = vsub.s32 4294967266, %v3483
    %v3489 = vadd.s32 %v3488, 127
    %v3490 = vshll.u32 %v3489, 23
    %v3491 = vor.u32 4788187, %v3490
    %v3492 = vand.u32 2147483647, %v3491
    %v3494 = vcvt.s32.f32 %v3487
    %v3495 = vmul.f32 %v3494, %v3492
    %v3496 = vxor.u32 %v3495, 2147483648
    %v3497 = vsel %vm3414, %v3496, %v3495
    %v3498 = vsub.s32 4, %v3474
    %v3499 = vsel %vm3414, %v3498, %v3474
    %v3500 = vsel %vm3413, %v2889, %v3497
    %v3501 = vsel %vm3413, 0, %v3499
    %v3502 = vcosq.f32.pop %v3500
    %v3503 = vsinq.f32.pop %v3500
    %vm3504 = vweird.f32 %v2889
    %v3505 = vadd.s32 %v3501, 3
    %v3506 = vand.u32 %v3505, 3
    %vm3507 = vcmp.lt.s32.totalorder %v3506, 2
    %vm3508 = vcmp.eq.s32.totalorder %v3506, 0
    %v3509 = vxor.u32 %v3503, 2147483648
    %v3510 = vsel %vm3508, %v3502, %v3509
    %vm3511 = vcmp.eq.s32.totalorder %v3506, 2
    %v3512 = vxor.u32 %v3502, 2147483648
    %v3513 = vsel %vm3511, %v3512, %v3503
    %v3514 = vsel %vm3507, %v3510, %v3513
    %v3515 = vsel %vm3504, nan, %v3514
    %v3516 = vand.u32 2147483647, %v2890
    %vm3517 = vcmp.le.f32.partialorder %v3516, 0.7853982
    %vm3518 = vcmp.lt.s32.totalorder %v2890, 0
    %v3519 = vand.u32 %v2890, 2139095040
    %v3520 = vshrl.u32 %v3519, 23
    %v3521 = vsub.s32 %v3520, 127
    %v3522 = vand.u32 2147483647, %v2890
    %v3523 = vand.u32 %v3522, 8388607
    %v3524 = vor.u32 %v3523, 8388608
    %v3525 = vsub.s32 0, %v3524
    %v3526 = vadd.s32 %v3521, 1
    %vm3527 = vcmp.gt.s32.totalorder %v3526, 0
    %v3528 = vsel %vm3527, %v3526, 0
    %v3529 = vshrl.u32 %v3528, 5
    %v3530 = vand.u32 %v3528, 31
    %v3531 = vsub.s32 32, %v3530
    %v3532 = vshrl.u32 683565275, %v3531
    %v3533 = vshll.u32 683565275, %v3530
    %v3534 = vshrl.u32 2475754826, %v3531
    %v3535 = vor.u32 %v3533, %v3534
    %v3536 = vshll.u32 2475754826, %v3530
    %v3537 = vshrl.u32 2131351028, %v3531
    %v3538 = vor.u32 %v3536, %v3537
    %v3539 = vshll.u32 2131351028, %v3530
    %v3540 = vshrl.u32 2102212464, %v3531
    %v3541 = vor.u32 %v3539, %v3540
    %v3542 = vshll.u32 2102212464, %v3530
    %v3543 = vshrl.u32 920167782, %v3531
    %v3544 = vor.u32 %v3542, %v3543
    %v3545 = vshll.u32 920167782, %v3530
    %v3546 = vshrl.u32 1326507024, %v3531
    %v3547 = vor.u32 %v3545, %v3546
    %vm3548 = vcmp.lt.s32.totalorder %v3529, 1
    %vm3549 = vcmp.lt.s32.totalorder %v3529, 2
    %vm3550 = vcmp.lt.s32.totalorder %v3529, 3
    %vm3551 = vcmp.lt.s32.totalorder %v3529, 4
    %v3552 = vsel %vm3548, %v3532, %v3535
    %v3553 = vsel %vm3551, %v3541, 2102212464
    %v3554 = vsel %vm3550, %v3538, %v3553
    %v3555 = vsel %vm3549, %v3552, %v3554
    %v3556 = vsel %vm3548, %v3535, %v3538
    %v3557 = vsel %vm3551, %v3544, 920167782
    %v3558 = vsel %vm3550, %v3541, %v3557
    %v3559 = vsel %vm3549, %v3556, %v3558
    %v3560 = vsel %vm3548, %v3538, %v3541
    %v3561 = vsel %vm3551, %v3547, 1326507024
    %v3562 = vsel %vm3550, %v3544, %v3561
    %v3563 = vsel %vm3549, %v3560, %v3562
    %v3564 = vshll.u32 %v3524, 8
    %v3565 = vmul.u32.u64.compose %v3564, %v3563
    %v3566 = vextract.low.u32 %v3565
    %v3567 = vextract.high.u32 %v3565
    %v3568 = vmul.u32.u64.compose %v3564, %v3559
    %v3569 = vextract.low.u32 %v3568
    %v3570 = vextract.high.u32 %v3568
    %v3571 = vmul.u32 %v3564, %v3555
    %v3572 = vadd.s32 %v3567, %v3569
    %vm3573 = vc.u32 %v3567, %v3569
    %v3574 = vadd.s32 %v3570, 1
    %v3575 = vsel %vm3573, %v3574, %v3570
    %v3576 = vadd.s32 %v3571, %v3575
    %v3577 = vadd.s32 %v3576, 536870912
    %v3578 = vshrl.u32 %v3577, 30
    %v3579 = vshll.u32 %v3578, 30
    %v3580 = vsub.s32 %v3576, %v3579
    %vm3581 = vcmp.lt.s32.totalorder %v3580, 0
    %v3582 = vsub.s32 0, %v3580
    %v3583 = vsel %vm3581, %v3582, %v3580
    %v3584 = vclz %v3583
    %v3585 = vsub.s32 %v3584, 2
    %vm3586 = vcmp.gt.s32.totalorder 0, %v3585
    %v3587 = vsel %vm3586, 0, %v3585
    %v3588 = vsub.s32 32, %v3587
    %v3589 = vshll.u32 %v3580, %v3587
    %v3590 = vshrl.u32 %v3572, %v3588
    %v3591 = vor.u32 %v3589, %v3590
    %v3592 = vsub.s32 4294967266, %v3587
    %v3593 = vadd.s32 %v3592, 127
    %v3594 = vshll.u32 %v3593, 23
    %v3595 = vor.u32 4788187, %v3594
    %v3596 = vand.u32 2147483647, %v3595
    %v3598 = vcvt.s32.f32 %v3591
    %v3599 = vmul.f32 %v3598, %v3596
    %v3600 = vxor.u32 %v3599, 2147483648
    %v3601 = vsel %vm3518, %v3600, %v3599
    %v3602 = vsub.s32 4, %v3578
    %v3603 = vsel %vm3518, %v3602, %v3578
    %v3604 = vsel %vm3517, %v2890, %v3601
    %v3605 = vsel %vm3517, 0, %v3603
    %v3606 = vcosq.f32.pop %v3604
    %v3607 = vsinq.f32.pop %v3604
    %vm3608 = vweird.f32 %v2890
    %v3609 = vadd.s32 %v3605, 3
    %v3610 = vand.u32 %v3609, 3
    %vm3611 = vcmp.lt.s32.totalorder %v3610, 2
    %vm3612 = vcmp.eq.s32.totalorder %v3610, 0
    %v3613 = vxor.u32 %v3607, 2147483648
    %v3614 = vsel %vm3612, %v3606, %v3613
    %vm3615 = vcmp.eq.s32.totalorder %v3610, 2
    %v3616 = vxor.u32 %v3606, 2147483648
    %v3617 = vsel %vm3615, %v3616, %v3607
    %v3618 = vsel %vm3611, %v3614, %v3617
    %v3619 = vsel %vm3608, nan, %v3618
    %v3620 = vand.u32 2147483647, %v2891
    %vm3621 = vcmp.le.f32.partialorder %v3620, 0.7853982
    %vm3622 = vcmp.lt.s32.totalorder %v2891, 0
    %v3623 = vand.u32 %v2891, 2139095040
    %v3624 = vshrl.u32 %v3623, 23
    %v3625 = vsub.s32 %v3624, 127
    %v3626 = vand.u32 2147483647, %v2891
    %v3627 = vand.u32 %v3626, 8388607
    %v3628 = vor.u32 %v3627, 8388608
    %v3629 = vsub.s32 0, %v3628
    %v3630 = vadd.s32 %v3625, 1
    %vm3631 = vcmp.gt.s32.totalorder %v3630, 0
    %v3632 = vsel %vm3631, %v3630, 0
    %v3633 = vshrl.u32 %v3632, 5
    %v3634 = vand.u32 %v3632, 31
    %v3635 = vsub.s32 32, %v3634
    %v3636 = vshrl.u32 683565275, %v3635
    %v3637 = vshll.u32 683565275, %v3634
    %v3638 = vshrl.u32 2475754826, %v3635
    %v3639 = vor.u32 %v3637, %v3638
    %v3640 = vshll.u32 2475754826, %v3634
    %v3641 = vshrl.u32 2131351028, %v3635
    %v3642 = vor.u32 %v3640, %v3641
    %v3643 = vshll.u32 2131351028, %v3634
    %v3644 = vshrl.u32 2102212464, %v3635
    %v3645 = vor.u32 %v3643, %v3644
    %v3646 = vshll.u32 2102212464, %v3634
    %v3647 = vshrl.u32 920167782, %v3635
    %v3648 = vor.u32 %v3646, %v3647
    %v3649 = vshll.u32 920167782, %v3634
    %v3650 = vshrl.u32 1326507024, %v3635
    %v3651 = vor.u32 %v3649, %v3650
    %vm3652 = vcmp.lt.s32.totalorder %v3633, 1
    %vm3653 = vcmp.lt.s32.totalorder %v3633, 2
    %vm3654 = vcmp.lt.s32.totalorder %v3633, 3
    %vm3655 = vcmp.lt.s32.totalorder %v3633, 4
    %v3656 = vsel %vm3652, %v3636, %v3639
    %v3657 = vsel %vm3655, %v3645, 2102212464
    %v3658 = vsel %vm3654, %v3642, %v3657
    %v3659 = vsel %vm3653, %v3656, %v3658
    %v3660 = vsel %vm3652, %v3639, %v3642
    %v3661 = vsel %vm3655, %v3648, 920167782
    %v3662 = vsel %vm3654, %v3645, %v3661
    %v3663 = vsel %vm3653, %v3660, %v3662
    %v3664 = vsel %vm3652, %v3642, %v3645
    %v3665 = vsel %vm3655, %v3651, 1326507024
    %v3666 = vsel %vm3654, %v3648, %v3665
    %v3667 = vsel %vm3653, %v3664, %v3666
    %v3668 = vshll.u32 %v3628, 8
    %v3669 = vmul.u32.u64.compose %v3668, %v3667
    %v3670 = vextract.low.u32 %v3669
    %v3671 = vextract.high.u32 %v3669
    %v3672 = vmul.u32.u64.compose %v3668, %v3663
    %v3673 = vextract.low.u32 %v3672
    %v3674 = vextract.high.u32 %v3672
    %v3675 = vmul.u32 %v3668, %v3659
    %v3676 = vadd.s32 %v3671, %v3673
    %vm3677 = vc.u32 %v3671, %v3673
    %v3678 = vadd.s32 %v3674, 1
    %v3679 = vsel %vm3677, %v3678, %v3674
    %v3680 = vadd.s32 %v3675, %v3679
    %v3681 = vadd.s32 %v3680, 536870912
    %v3682 = vshrl.u32 %v3681, 30
    %v3683 = vshll.u32 %v3682, 30
    %v3684 = vsub.s32 %v3680, %v3683
    %vm3685 = vcmp.lt.s32.totalorder %v3684, 0
    %v3686 = vsub.s32 0, %v3684
    %v3687 = vsel %vm3685, %v3686, %v3684
    %v3688 = vclz %v3687
    %v3689 = vsub.s32 %v3688, 2
    %vm3690 = vcmp.gt.s32.totalorder 0, %v3689
    %v3691 = vsel %vm3690, 0, %v3689
    %v3692 = vsub.s32 32, %v3691
    %v3693 = vshll.u32 %v3684, %v3691
    %v3694 = vshrl.u32 %v3676, %v3692
    %v3695 = vor.u32 %v3693, %v3694
    %v3696 = vsub.s32 4294967266, %v3691
    %v3697 = vadd.s32 %v3696, 127
    %v3698 = vshll.u32 %v3697, 23
    %v3699 = vor.u32 4788187, %v3698
    %v3700 = vand.u32 2147483647, %v3699
    %v3702 = vcvt.s32.f32 %v3695
    %v3703 = vmul.f32 %v3702, %v3700
    %v3704 = vxor.u32 %v3703, 2147483648
    %v3705 = vsel %vm3622, %v3704, %v3703
    %v3706 = vsub.s32 4, %v3682
    %v3707 = vsel %vm3622, %v3706, %v3682
    %v3708 = vsel %vm3621, %v2891, %v3705
    %v3709 = vsel %vm3621, 0, %v3707
    %v3710 = vcosq.f32.pop %v3708
    %v3711 = vsinq.f32.pop %v3708
    %vm3712 = vweird.f32 %v2891
    %v3713 = vadd.s32 %v3709, 3
    %v3714 = vand.u32 %v3713, 3
    %vm3715 = vcmp.lt.s32.totalorder %v3714, 2
    %vm3716 = vcmp.eq.s32.totalorder %v3714, 0
    %v3717 = vxor.u32 %v3711, 2147483648
    %v3718 = vsel %vm3716, %v3710, %v3717
    %vm3719 = vcmp.eq.s32.totalorder %v3714, 2
    %v3720 = vxor.u32 %v3710, 2147483648
    %v3721 = vsel %vm3719, %v3720, %v3711
    %v3722 = vsel %vm3715, %v3718, %v3721
    %v3723 = vsel %vm3712, nan, %v3722
    %3724 = vst [vmem:[#allocation2 + $0x8] sm:$0xff] %v2995
    %3725 = vst [vmem:[#allocation2 + $0x18] sm:$0xff] %v3099
    %3726 = vst [vmem:[#allocation2 + $0x28] sm:$0xff] %v3203
    %3727 = vst [vmem:[#allocation2 + $0x38] sm:$0xff] %v3307
    %3728 = vst [vmem:[#allocation2 + $0x48] sm:$0xff] %v3411
    %3729 = vst [vmem:[#allocation2 + $0x58] sm:$0xff] %v3515
    %3730 = vst [vmem:[#allocation2 + $0x68] sm:$0xff] %v3619
    %3731 = vst [vmem:[#allocation2 + $0x78] sm:$0xff] %v3723
    %3732 = vst [vmem:[#allocation3 + $0x8] sm:$0xff] %v2698
    %3733 = vst [vmem:[#allocation3 + $0x18] sm:$0xff] %v2699
    %3734 = vst [vmem:[#allocation3 + $0x28] sm:$0xff] %v2700
    %3735 = vst [vmem:[#allocation3 + $0x38] sm:$0xff] %v2701
    %3736 = vst [vmem:[#allocation3 + $0x48] sm:$0xff] %v2702
    %3737 = vst [vmem:[#allocation3 + $0x58] sm:$0xff] %v2703
    %3738 = vst [vmem:[#allocation3 + $0x68] sm:$0xff] %v2704
    %3739 = vst [vmem:[#allocation3 + $0x78] sm:$0xff] %v2705
    %v3740 = vld [vmem:[#allocation2] sm:$0xff]
    %v3741 = vld [vmem:[#allocation2 + $0x8] sm:$0xff]
    %v3742 = vld [vmem:[#allocation2 + $0x10] sm:$0xff]
    %v3743 = vld [vmem:[#allocation2 + $0x18] sm:$0xff]
    %v3744 = vld [vmem:[#allocation2 + $0x20] sm:$0xff]
    %v3745 = vld [vmem:[#allocation2 + $0x28] sm:$0xff]
    %v3746 = vld [vmem:[#allocation2 + $0x30] sm:$0xff]
    %v3747 = vld [vmem:[#allocation2 + $0x38] sm:$0xff]
    %v3748 = vld [vmem:[#allocation2 + $0x40] sm:$0xff]
    %v3749 = vld [vmem:[#allocation2 + $0x48] sm:$0xff]
    %v3750 = vld [vmem:[#allocation2 + $0x50] sm:$0xff]
    %v3751 = vld [vmem:[#allocation2 + $0x58] sm:$0xff]
    %v3752 = vld [vmem:[#allocation2 + $0x60] sm:$0xff]
    %v3753 = vld [vmem:[#allocation2 + $0x68] sm:$0xff]
    %v3754 = vld [vmem:[#allocation2 + $0x70] sm:$0xff]
    %v3755 = vld [vmem:[#allocation2 + $0x78] sm:$0xff]
    %v3756 = vld [vmem:[#allocation3] sm:$0xff]
    %v3757 = vld [vmem:[#allocation3 + $0x8] sm:$0xff]
    %v3758 = vld [vmem:[#allocation3 + $0x10] sm:$0xff]
    %v3759 = vld [vmem:[#allocation3 + $0x18] sm:$0xff]
    %v3760 = vld [vmem:[#allocation3 + $0x20] sm:$0xff]
    %v3761 = vld [vmem:[#allocation3 + $0x28] sm:$0xff]
    %v3762 = vld [vmem:[#allocation3 + $0x30] sm:$0xff]
    %v3763 = vld [vmem:[#allocation3 + $0x38] sm:$0xff]
    %v3764 = vld [vmem:[#allocation3 + $0x40] sm:$0xff]
    %v3765 = vld [vmem:[#allocation3 + $0x48] sm:$0xff]
    %v3766 = vld [vmem:[#allocation3 + $0x50] sm:$0xff]
    %v3767 = vld [vmem:[#allocation3 + $0x58] sm:$0xff]
    %v3768 = vld [vmem:[#allocation3 + $0x60] sm:$0xff]
    %v3769 = vld [vmem:[#allocation3 + $0x68] sm:$0xff]
    %v3770 = vld [vmem:[#allocation3 + $0x70] sm:$0xff]
    %v3771 = vld [vmem:[#allocation3 + $0x78] sm:$0xff]
    %3772 = vmatprep.subr.mxu0 %v3757
    %3773 = vmatpush1.xpose.msra.mxu0 %v3756
    %3774 = vmatprep.subr.mxu0 %v3759
    %3775 = vmatpush1.xpose.msra.mxu0 %v3758
    %3776 = vmatprep.subr.mxu0 0.0
    %3777 = vmatpush1.xpose.msra.mxu0 0.0
    %3778 = vmatprep.subr.mxu0 0.0
    %3779 = vmatpush1.xpose.msra.mxu0 0.0
    %3780 = vmatprep.subr.mxu0 0.0
    %3781 = vmatpush1.xpose.msra.mxu0 0.0
    %3782 = vmatprep.subr.mxu0 0.0
    %3783 = vmatpush1.xpose.msra.mxu0 0.0
    %3784 = vmatprep.subr.mxu0 0.0
    %3785 = vmatpush1.xpose.msra.mxu0 0.0
    %3786 = vmatprep.subr.mxu0 0.0
    %3787 = vmatpush1.xpose.msra.mxu0 0.0
    %3788 = vmatprep.subr.mxu0 0.0
    %3789 = vmatpush1.xpose.msra.mxu0 0.0
    %3790 = vmatprep.subr.mxu0 0.0
    %3791 = vmatpush1.xpose.msra.mxu0 0.0
    %3792 = vmatprep.subr.mxu0 0.0
    %3793 = vmatpush1.xpose.msra.mxu0 0.0
    %3794 = vmatprep.subr.mxu0 0.0
    %3795 = vmatpush1.xpose.msra.mxu0 0.0
    %3796 = vmatprep.subr.mxu0 0.0
    %3797 = vmatpush1.xpose.msra.mxu0 0.0
    %3798 = vmatprep.subr.mxu0 0.0
    %3799 = vmatpush1.xpose.msra.mxu0 0.0
    %3800 = vmatprep.subr.mxu0 0.0
    %3801 = vmatpush1.xpose.msra.mxu0 0.0
    %3802 = vmatprep.subr.mxu0 0.0
    %3803 = vmatpush1.xpose.msra.mxu0 0.0
    %3804 = vmatprep.subr.mxu0 0.0
    %3805 = vmatpush1.xpose.msra.mxu0 0.0
    %3806 = vmatprep.subr.mxu0 0.0
    %3807 = vmatpush1.xpose.msra.mxu0 0.0
    %3808 = vmatprep.subr.mxu0 0.0
    %3809 = vmatpush1.xpose.msra.mxu0 0.0
    %3810 = vmatprep.subr.mxu0 0.0
    %3811 = vmatpush1.xpose.msra.mxu0 0.0
    %3812 = vmatprep.subr.mxu0 0.0
    %3813 = vmatpush1.xpose.msra.mxu0 0.0
    %3814 = vmatprep.subr.mxu0 0.0
    %3815 = vmatpush1.xpose.msra.mxu0 0.0
    %3816 = vmatprep.subr.mxu0 0.0
    %3817 = vmatpush1.xpose.msra.mxu0 0.0
    %3818 = vmatprep.subr.mxu0 0.0
    %3819 = vmatpush1.xpose.msra.mxu0 0.0
    %3820 = vmatprep.subr.mxu0 0.0
    %3821 = vmatpush1.xpose.msra.mxu0 0.0
    %3822 = vmatprep.subr.mxu0 0.0
    %3823 = vmatpush1.xpose.msra.mxu0 0.0
    %3824 = vmatprep.subr.mxu0 0.0
    %3825 = vmatpush1.xpose.msra.mxu0 0.0
    %3826 = vmatprep.subr.mxu0 0.0
    %3827 = vmatpush1.xpose.msra.mxu0 0.0
    %3828 = vmatprep.subr.mxu0 0.0
    %3829 = vmatpush1.xpose.msra.mxu0 0.0
    %3830 = vmatprep.subr.mxu0 0.0
    %3831 = vmatpush1.xpose.msra.mxu0 0.0
    %3832 = vmatprep.subr.mxu0 0.0
    %3833 = vmatpush1.xpose.msra.mxu0 0.0
    %3834 = vmatprep.subr.mxu0 0.0
    %3835 = vmatpush1.xpose.msra.mxu0 0.0
    %3836 = vmatprep.mubr.f32.mxu0 %v3741
    %3837 = vmatmul.mubr.f32.gmra.mrb[0].mxu0 %v3740
    %v3838 = vpop.f32.mrb[0].mxu0
    %v3839 = vadd.f32 0.0, %v3838
    %v3840 = vpop.f32.mrb[0].mxu0
    %3841 = vmatprep.mubr.f32.mxu0 %v3743
    %3842 = vmatmul.mubr.f32.gmra.mrb[0].mxu0 %v3742
    %v3843 = vpop.f32.mrb[0].mxu0
    %v3844 = vadd.f32 0.0, %v3843
    %v3845 = vpop.f32.mrb[0].mxu0
    %3846 = vdwg.mxu0
    %3847 = vmatprep.subr.mxu0 %v3761
    %3848 = vmatpush1.xpose.msra.mxu0 %v3760
    %3849 = vmatprep.subr.mxu0 %v3763
    %3850 = vmatpush1.xpose.msra.mxu0 %v3762
    %3851 = vmatprep.subr.mxu0 0.0
    %3852 = vmatpush1.xpose.msra.mxu0 0.0
    %3853 = vmatprep.subr.mxu0 0.0
    %3854 = vmatpush1.xpose.msra.mxu0 0.0
    %3855 = vmatprep.subr.mxu0 0.0
    %3856 = vmatpush1.xpose.msra.mxu0 0.0
    %3857 = vmatprep.subr.mxu0 0.0
    %3858 = vmatpush1.xpose.msra.mxu0 0.0
    %3859 = vmatprep.subr.mxu0 0.0
    %3860 = vmatpush1.xpose.msra.mxu0 0.0
    %3861 = vmatprep.subr.mxu0 0.0
    %3862 = vmatpush1.xpose.msra.mxu0 0.0
    %3863 = vmatprep.subr.mxu0 0.0
    %3864 = vmatpush1.xpose.msra.mxu0 0.0
    %3865 = vmatprep.subr.mxu0 0.0
    %3866 = vmatpush1.xpose.msra.mxu0 0.0
    %3867 = vmatprep.subr.mxu0 0.0
    %3868 = vmatpush1.xpose.msra.mxu0 0.0
    %3869 = vmatprep.subr.mxu0 0.0
    %3870 = vmatpush1.xpose.msra.mxu0 0.0
    %3871 = vmatprep.subr.mxu0 0.0
    %3872 = vmatpush1.xpose.msra.mxu0 0.0
    %3873 = vmatprep.subr.mxu0 0.0
    %3874 = vmatpush1.xpose.msra.mxu0 0.0
    %3875 = vmatprep.subr.mxu0 0.0
    %3876 = vmatpush1.xpose.msra.mxu0 0.0
    %3877 = vmatprep.subr.mxu0 0.0
    %3878 = vmatpush1.xpose.msra.mxu0 0.0
    %3879 = vmatprep.subr.mxu0 0.0
    %3880 = vmatpush1.xpose.msra.mxu0 0.0
    %3881 = vmatprep.subr.mxu0 0.0
    %3882 = vmatpush1.xpose.msra.mxu0 0.0
    %3883 = vmatprep.subr.mxu0 0.0
    %3884 = vmatpush1.xpose.msra.mxu0 0.0
    %3885 = vmatprep.subr.mxu0 0.0
    %3886 = vmatpush1.xpose.msra.mxu0 0.0
    %3887 = vmatprep.subr.mxu0 0.0
    %3888 = vmatpush1.xpose.msra.mxu0 0.0
    %3889 = vmatprep.subr.mxu0 0.0
    %3890 = vmatpush1.xpose.msra.mxu0 0.0
    %3891 = vmatprep.subr.mxu0 0.0
    %3892 = vmatpush1.xpose.msra.mxu0 0.0
    %3893 = vmatprep.subr.mxu0 0.0
    %3894 = vmatpush1.xpose.msra.mxu0 0.0
    %3895 = vmatprep.subr.mxu0 0.0
    %3896 = vmatpush1.xpose.msra.mxu0 0.0
    %3897 = vmatprep.subr.mxu0 0.0
    %3898 = vmatpush1.xpose.msra.mxu0 0.0
    %3899 = vmatprep.subr.mxu0 0.0
    %3900 = vmatpush1.xpose.msra.mxu0 0.0
    %3901 = vmatprep.subr.mxu0 0.0
    %3902 = vmatpush1.xpose.msra.mxu0 0.0
    %3903 = vmatprep.subr.mxu0 0.0
    %3904 = vmatpush1.xpose.msra.mxu0 0.0
    %3905 = vmatprep.subr.mxu0 0.0
    %3906 = vmatpush1.xpose.msra.mxu0 0.0
    %3907 = vmatprep.subr.mxu0 0.0
    %3908 = vmatpush1.xpose.msra.mxu0 0.0
    %3909 = vmatprep.subr.mxu0 0.0
    %3910 = vmatpush1.xpose.msra.mxu0 0.0
    %3911 = vmatprep.mubr.f32.mxu0 %v3745
    %3912 = vmatmul.mubr.f32.gmra.mrb[0].mxu0 %v3744
    %v3913 = vpop.f32.mrb[0].mxu0
    %v3914 = vadd.f32 0.0, %v3913
    %v3915 = vpop.f32.mrb[0].mxu0
    %3916 = vmatprep.mubr.f32.mxu0 %v3747
    %3917 = vmatmul.mubr.f32.gmra.mrb[0].mxu0 %v3746
    %v3918 = vpop.f32.mrb[0].mxu0
    %v3919 = vadd.f32 0.0, %v3918
    %v3920 = vpop.f32.mrb[0].mxu0
    %3921 = vdwg.mxu0
    %3922 = vmatprep.subr.mxu0 %v3765
    %3923 = vmatpush1.xpose.msra.mxu0 %v3764
    %3924 = vmatprep.subr.mxu0 %v3767
    %3925 = vmatpush1.xpose.msra.mxu0 %v3766
    %3926 = vmatprep.subr.mxu0 0.0
    %3927 = vmatpush1.xpose.msra.mxu0 0.0
    %3928 = vmatprep.subr.mxu0 0.0
    %3929 = vmatpush1.xpose.msra.mxu0 0.0
    %3930 = vmatprep.subr.mxu0 0.0
    %3931 = vmatpush1.xpose.msra.mxu0 0.0
    %3932 = vmatprep.subr.mxu0 0.0
    %3933 = vmatpush1.xpose.msra.mxu0 0.0
    %3934 = vmatprep.subr.mxu0 0.0
    %3935 = vmatpush1.xpose.msra.mxu0 0.0
    %3936 = vmatprep.subr.mxu0 0.0
    %3937 = vmatpush1.xpose.msra.mxu0 0.0
    %3938 = vmatprep.subr.mxu0 0.0
    %3939 = vmatpush1.xpose.msra.mxu0 0.0
    %3940 = vmatprep.subr.mxu0 0.0
    %3941 = vmatpush1.xpose.msra.mxu0 0.0
    %3942 = vmatprep.subr.mxu0 0.0
    %3943 = vmatpush1.xpose.msra.mxu0 0.0
    %3944 = vmatprep.subr.mxu0 0.0
    %3945 = vmatpush1.xpose.msra.mxu0 0.0
    %3946 = vmatprep.subr.mxu0 0.0
    %3947 = vmatpush1.xpose.msra.mxu0 0.0
    %3948 = vmatprep.subr.mxu0 0.0
    %3949 = vmatpush1.xpose.msra.mxu0 0.0
    %3950 = vmatprep.subr.mxu0 0.0
    %3951 = vmatpush1.xpose.msra.mxu0 0.0
    %3952 = vmatprep.subr.mxu0 0.0
    %3953 = vmatpush1.xpose.msra.mxu0 0.0
    %3954 = vmatprep.subr.mxu0 0.0
    %3955 = vmatpush1.xpose.msra.mxu0 0.0
    %3956 = vmatprep.subr.mxu0 0.0
    %3957 = vmatpush1.xpose.msra.mxu0 0.0
    %3958 = vmatprep.subr.mxu0 0.0
    %3959 = vmatpush1.xpose.msra.mxu0 0.0
    %3960 = vmatprep.subr.mxu0 0.0
    %3961 = vmatpush1.xpose.msra.mxu0 0.0
    %3962 = vmatprep.subr.mxu0 0.0
    %3963 = vmatpush1.xpose.msra.mxu0 0.0
    %3964 = vmatprep.subr.mxu0 0.0
    %3965 = vmatpush1.xpose.msra.mxu0 0.0
    %3966 = vmatprep.subr.mxu0 0.0
    %3967 = vmatpush1.xpose.msra.mxu0 0.0
    %3968 = vmatprep.subr.mxu0 0.0
    %3969 = vmatpush1.xpose.msra.mxu0 0.0
    %3970 = vmatprep.subr.mxu0 0.0
    %3971 = vmatpush1.xpose.msra.mxu0 0.0
    %3972 = vmatprep.subr.mxu0 0.0
    %3973 = vmatpush1.xpose.msra.mxu0 0.0
    %3974 = vmatprep.subr.mxu0 0.0
    %3975 = vmatpush1.xpose.msra.mxu0 0.0
    %3976 = vmatprep.subr.mxu0 0.0
    %3977 = vmatpush1.xpose.msra.mxu0 0.0
    %3978 = vmatprep.subr.mxu0 0.0
    %3979 = vmatpush1.xpose.msra.mxu0 0.0
    %3980 = vmatprep.subr.mxu0 0.0
    %3981 = vmatpush1.xpose.msra.mxu0 0.0
    %3982 = vmatprep.subr.mxu0 0.0
    %3983 = vmatpush1.xpose.msra.mxu0 0.0
    %3984 = vmatprep.subr.mxu0 0.0
    %3985 = vmatpush1.xpose.msra.mxu0 0.0
    %3986 = vmatprep.mubr.f32.mxu0 %v3749
    %3987 = vmatmul.mubr.f32.gmra.mrb[0].mxu0 %v3748
    %v3988 = vpop.f32.mrb[0].mxu0
    %v3989 = vadd.f32 0.0, %v3988
    %v3990 = vpop.f32.mrb[0].mxu0
    %3991 = vmatprep.mubr.f32.mxu0 %v3751
    %3992 = vmatmul.mubr.f32.gmra.mrb[0].mxu0 %v3750
    %v3993 = vpop.f32.mrb[0].mxu0
    %v3994 = vadd.f32 0.0, %v3993
    %v3995 = vpop.f32.mrb[0].mxu0
    %3996 = vdwg.mxu0
    %3997 = vmatprep.subr.mxu0 %v3769
    %3998 = vmatpush1.xpose.msra.mxu0 %v3768
    %3999 = vmatprep.subr.mxu0 %v3771
    %4000 = vmatpush1.xpose.msra.mxu0 %v3770
    %4001 = vmatprep.subr.mxu0 0.0
    %4002 = vmatpush1.xpose.msra.mxu0 0.0
    %4003 = vmatprep.subr.mxu0 0.0
    %4004 = vmatpush1.xpose.msra.mxu0 0.0
    %4005 = vmatprep.subr.mxu0 0.0
    %4006 = vmatpush1.xpose.msra.mxu0 0.0
    %4007 = vmatprep.subr.mxu0 0.0
    %4008 = vmatpush1.xpose.msra.mxu0 0.0
    %4009 = vmatprep.subr.mxu0 0.0
    %4010 = vmatpush1.xpose.msra.mxu0 0.0
    %4011 = vmatprep.subr.mxu0 0.0
    %4012 = vmatpush1.xpose.msra.mxu0 0.0
    %4013 = vmatprep.subr.mxu0 0.0
    %4014 = vmatpush1.xpose.msra.mxu0 0.0
    %4015 = vmatprep.subr.mxu0 0.0
    %4016 = vmatpush1.xpose.msra.mxu0 0.0
    %4017 = vmatprep.subr.mxu0 0.0
    %4018 = vmatpush1.xpose.msra.mxu0 0.0
    %4019 = vmatprep.subr.mxu0 0.0
    %4020 = vmatpush1.xpose.msra.mxu0 0.0
    %4021 = vmatprep.subr.mxu0 0.0
    %4022 = vmatpush1.xpose.msra.mxu0 0.0
    %4023 = vmatprep.subr.mxu0 0.0
    %4024 = vmatpush1.xpose.msra.mxu0 0.0
    %4025 = vmatprep.subr.mxu0 0.0
    %4026 = vmatpush1.xpose.msra.mxu0 0.0
    %4027 = vmatprep.subr.mxu0 0.0
    %4028 = vmatpush1.xpose.msra.mxu0 0.0
    %4029 = vmatprep.subr.mxu0 0.0
    %4030 = vmatpush1.xpose.msra.mxu0 0.0
    %4031 = vmatprep.subr.mxu0 0.0
    %4032 = vmatpush1.xpose.msra.mxu0 0.0
    %4033 = vmatprep.subr.mxu0 0.0
    %4034 = vmatpush1.xpose.msra.mxu0 0.0
    %4035 = vmatprep.subr.mxu0 0.0
    %4036 = vmatpush1.xpose.msra.mxu0 0.0
    %4037 = vmatprep.subr.mxu0 0.0
    %4038 = vmatpush1.xpose.msra.mxu0 0.0
    %4039 = vmatprep.subr.mxu0 0.0
    %4040 = vmatpush1.xpose.msra.mxu0 0.0
    %4041 = vmatprep.subr.mxu0 0.0
    %4042 = vmatpush1.xpose.msra.mxu0 0.0
    %4043 = vmatprep.subr.mxu0 0.0
    %4044 = vmatpush1.xpose.msra.mxu0 0.0
    %4045 = vmatprep.subr.mxu0 0.0
    %4046 = vmatpush1.xpose.msra.mxu0 0.0
    %4047 = vmatprep.subr.mxu0 0.0
    %4048 = vmatpush1.xpose.msra.mxu0 0.0
    %4049 = vmatprep.subr.mxu0 0.0
    %4050 = vmatpush1.xpose.msra.mxu0 0.0
    %4051 = vmatprep.subr.mxu0 0.0
    %4052 = vmatpush1.xpose.msra.mxu0 0.0
    %4053 = vmatprep.subr.mxu0 0.0
    %4054 = vmatpush1.xpose.msra.mxu0 0.0
    %4055 = vmatprep.subr.mxu0 0.0
    %4056 = vmatpush1.xpose.msra.mxu0 0.0
    %4057 = vmatprep.subr.mxu0 0.0
    %4058 = vmatpush1.xpose.msra.mxu0 0.0
    %4059 = vmatprep.subr.mxu0 0.0
    %4060 = vmatpush1.xpose.msra.mxu0 0.0
    %4061 = vmatprep.mubr.f32.mxu0 %v3753
    %4062 = vmatmul.mubr.f32.gmra.mrb[0].mxu0 %v3752
    %v4063 = vpop.f32.mrb[0].mxu0
    %v4064 = vadd.f32 0.0, %v4063
    %v4065 = vpop.f32.mrb[0].mxu0
    %4066 = vmatprep.mubr.f32.mxu0 %v3755
    %4067 = vmatmul.mubr.f32.gmra.mrb[0].mxu0 %v3754
    %v4068 = vpop.f32.mrb[0].mxu0
    %v4069 = vadd.f32 0.0, %v4068
    %v4070 = vpop.f32.mrb[0].mxu0
    %4071 = vdwg.mxu0
    %v4072 = vld [vmem:[%s10] sm:$0xff]
    %v4073 = vld [vmem:[%s10 + $0x8] sm:$0xff]
    %v4074 = vld [vmem:[%s11] sm:$0x1]
    %v4076 = vlaneseq
    %v4077 = vshrl.u32 %v4076, 7
    %v4078 = vsub.s32 0, %v4077
    %v4079 = vrot.slane %v4074, %v4078
    %vm4081 = vcmask 130048
    %v4083 = vsel %vm4081, %v3839, 0
    %v4086 = vsel %vm4081, %v3844, 0
    %v4089 = vsel %vm4081, %v3914, 0
    %v4092 = vsel %vm4081, %v3919, 0
    %v4095 = vsel %vm4081, %v3989, 0
    %v4098 = vsel %vm4081, %v3994, 0
    %v4101 = vsel %vm4081, %v4064, 0
    %v4104 = vsel %vm4081, %v4069, 0
    %4106 = vmatprep.subr.mxu0 0.0
    %4107 = vmatpush1.msra.mxu0 %v4072
    %4108 = vmatprep.subr.mxu0 0.0
    %4109 = vmatpush1.msra.mxu0 %v4073
    %4110 = vmatprep.subr.mxu0 0.0
    %4111 = vmatpush1.msra.mxu0 0.0
    %4112 = vmatprep.subr.mxu0 0.0
    %4113 = vmatpush1.msra.mxu0 0.0
    %4114 = vmatprep.subr.mxu0 0.0
    %4115 = vmatpush1.msra.mxu0 0.0
    %4116 = vmatprep.subr.mxu0 0.0
    %4117 = vmatpush1.msra.mxu0 0.0
    %4118 = vmatprep.subr.mxu0 0.0
    %4119 = vmatpush1.msra.mxu0 0.0
    %4120 = vmatprep.subr.mxu0 0.0
    %4121 = vmatpush1.msra.mxu0 0.0
    %4122 = vmatprep.subr.mxu0 0.0
    %4123 = vmatpush1.msra.mxu0 0.0
    %4124 = vmatprep.subr.mxu0 0.0
    %4125 = vmatpush1.msra.mxu0 0.0
    %4126 = vmatprep.subr.mxu0 0.0
    %4127 = vmatpush1.msra.mxu0 0.0
    %4128 = vmatprep.subr.mxu0 0.0
    %4129 = vmatpush1.msra.mxu0 0.0
    %4130 = vmatprep.subr.mxu0 0.0
    %4131 = vmatpush1.msra.mxu0 0.0
    %4132 = vmatprep.subr.mxu0 0.0
    %4133 = vmatpush1.msra.mxu0 0.0
    %4134 = vmatprep.subr.mxu0 0.0
    %4135 = vmatpush1.msra.mxu0 0.0
    %4136 = vmatprep.subr.mxu0 0.0
    %4137 = vmatpush1.msra.mxu0 0.0
    %4138 = vmatprep.subr.mxu0 0.0
    %4139 = vmatpush1.msra.mxu0 0.0
    %4140 = vmatprep.subr.mxu0 0.0
    %4141 = vmatpush1.msra.mxu0 0.0
    %4142 = vmatprep.subr.mxu0 0.0
    %4143 = vmatpush1.msra.mxu0 0.0
    %4144 = vmatprep.subr.mxu0 0.0
    %4145 = vmatpush1.msra.mxu0 0.0
    %4146 = vmatprep.subr.mxu0 0.0
    %4147 = vmatpush1.msra.mxu0 0.0
    %4148 = vmatprep.subr.mxu0 0.0
    %4149 = vmatpush1.msra.mxu0 0.0
    %4150 = vmatprep.subr.mxu0 0.0
    %4151 = vmatpush1.msra.mxu0 0.0
    %4152 = vmatprep.subr.mxu0 0.0
    %4153 = vmatpush1.msra.mxu0 0.0
    %4154 = vmatprep.subr.mxu0 0.0
    %4155 = vmatpush1.msra.mxu0 0.0
    %4156 = vmatprep.subr.mxu0 0.0
    %4157 = vmatpush1.msra.mxu0 0.0
    %4158 = vmatprep.subr.mxu0 0.0
    %4159 = vmatpush1.msra.mxu0 0.0
    %4160 = vmatprep.subr.mxu0 0.0
    %4161 = vmatpush1.msra.mxu0 0.0
    %4162 = vmatprep.subr.mxu0 0.0
    %4163 = vmatpush1.msra.mxu0 0.0
    %4164 = vmatprep.subr.mxu0 0.0
    %4165 = vmatpush1.msra.mxu0 0.0
    %4166 = vmatprep.subr.mxu0 0.0
    %4167 = vmatpush1.msra.mxu0 0.0
    %4168 = vmatprep.subr.mxu0 0.0
    %4169 = vmatpush1.msra.mxu0 0.0
    %4170 = vmatprep.mubr.f32.mxu0 0.0
    %4171 = vmatmul.mubr.f32.gmra.mrb[0].mxu0 %v4083
    %v4172 = vpop.f32.mrb[0].mxu0
    %v4173 = vadd.f32 %v4079, %v4172
    %v4174 = vpop.f32.mrb[0].mxu0
    %4175 = vmatprep.mubr.f32.mxu0 0.0
    %4176 = vmatmul.mubr.f32.gmra.mrb[0].mxu0 %v4086
    %v4177 = vpop.f32.mrb[0].mxu0
    %v4178 = vadd.f32 %v4079, %v4177
    %v4179 = vpop.f32.mrb[0].mxu0
    %4180 = vmatprep.mubr.f32.mxu0 0.0
    %4181 = vmatmul.mubr.f32.gmra.mrb[0].mxu0 %v4089
    %v4182 = vpop.f32.mrb[0].mxu0
    %v4183 = vadd.f32 %v4079, %v4182
    %v4184 = vpop.f32.mrb[0].mxu0
    %4185 = vmatprep.mubr.f32.mxu0 0.0
    %4186 = vmatmul.mubr.f32.gmra.mrb[0].mxu0 %v4092
    %v4187 = vpop.f32.mrb[0].mxu0
    %v4188 = vadd.f32 %v4079, %v4187
    %v4189 = vpop.f32.mrb[0].mxu0
    %4190 = vmatprep.mubr.f32.mxu0 0.0
    %4191 = vmatmul.mubr.f32.gmra.mrb[0].mxu0 %v4095
    %v4192 = vpop.f32.mrb[0].mxu0
    %v4193 = vadd.f32 %v4079, %v4192
    %v4194 = vpop.f32.mrb[0].mxu0
    %4195 = vmatprep.mubr.f32.mxu0 0.0
    %4196 = vmatmul.mubr.f32.gmra.mrb[0].mxu0 %v4098
    %v4197 = vpop.f32.mrb[0].mxu0
    %v4198 = vadd.f32 %v4079, %v4197
    %v4199 = vpop.f32.mrb[0].mxu0
    %4200 = vmatprep.mubr.f32.mxu0 0.0
    %4201 = vmatmul.mubr.f32.gmra.mrb[0].mxu0 %v4101
    %v4202 = vpop.f32.mrb[0].mxu0
    %v4203 = vadd.f32 %v4079, %v4202
    %v4204 = vpop.f32.mrb[0].mxu0
    %4205 = vmatprep.mubr.f32.mxu0 0.0
    %4206 = vmatmul.mubr.f32.gmra.mrb[0].mxu0 %v4104
    %v4207 = vpop.f32.mrb[0].mxu0
    %v4208 = vadd.f32 %v4079, %v4207
    %v4209 = vpop.f32.mrb[0].mxu0
    %4210 = vdwg.mxu0
    %4211 = vst.msk [vmem:[%s12] sm:$0xff] %vm93, %v4173
    %4212 = vst.msk [vmem:[%s12 + $0x8] sm:$0xff] %vm93, %v4178
    %4213 = vst.msk [vmem:[%s12 + $0x10] sm:$0xff] %vm93, %v4183
    %4214 = vst.msk [vmem:[%s12 + $0x18] sm:$0xff] %vm93, %v4188
    %4215 = vst.msk [vmem:[%s12 + $0x20] sm:$0xff] %vm93, %v4193
    %4216 = vst.msk [vmem:[%s12 + $0x28] sm:$0xff] %vm93, %v4198
    %4217 = vst.msk [vmem:[%s12 + $0x30] sm:$0xff] %vm93, %v4203
    %4218 = vst.msk [vmem:[%s12 + $0x38] sm:$0xff] %vm93, %v4208
    // Predicated region
    $region58: #{tpu_custom_call.1} parent=1 // pred_check
      _
    $region59: #{tpu_custom_call.1} parent=1 // pred_check_branch
      %4220 = sbr.rel (0) target = $region61
    $region60: #{tpu_custom_call.1} parent=1 // pred_region
      _
    $region61: #{tpu_custom_call.1} parent=1 // pred_fallthru
      _
    // Predicated region
    $region62: #{tpu_custom_call.1} parent=1 // pred_check
      _
    $region63: #{tpu_custom_call.1} parent=1 // pred_check_branch
      %4222 = sbr.rel (0) target = $region65
    $region64: #{tpu_custom_call.1} parent=1 // pred_region
      _
    $region65: #{tpu_custom_call.1} parent=1 // pred_fallthru
      _
    %4223 = vsyncpa [#allocation5], 1
    %4224 = vsyncpa [#allocation7], 1

</llo_original>
